<compile_context>
chip_gen: v6e
topology: v6e:2x2x1
jax: 0.10.0
libtpu: 0.0.40
codegen_flags: <defaults>
</compile_context>

<pallas_src>
import functools

import jax
import jax.numpy as jnp
from jax.experimental import pallas as pl
from jax.experimental.pallas import tpu as pltpu


def _cdiv(a, b):
    return -(-a // b)


def _window_attention_kernel(x_ref, wq_ref, wk_ref, wv_ref, bq_ref, bk_ref,
                             bv_ref, bias_ref, wproj_ref, bproj_ref, o_ref, *,
                             num_heads):
    tg, n, c = x_ref.shape            # window-group dim is squeezed away
    hd = c // num_heads

    # --- QKV projections: bf16 operands, f32 accumulation on the MXU. ---
    xf = x_ref[...].reshape(tg * n, c)                            # (TG*N, C) bf16
    q = jnp.dot(xf, wq_ref[...], preferred_element_type=jnp.float32) + bq_ref[...]
    k = jnp.dot(xf, wk_ref[...], preferred_element_type=jnp.float32) + bk_ref[...]
    v = jnp.dot(xf, wv_ref[...], preferred_element_type=jnp.float32) + bv_ref[...]
    q = q.astype(jnp.bfloat16)
    k = k.astype(jnp.bfloat16)
    v = v.astype(jnp.bfloat16)

    def split_heads(t):
        # (TG*N, C) -> (H*TG, N, hd); head-major batch for the batched einsums.
        parts = [t[:, h * hd:(h + 1) * hd].reshape(1, tg, n, hd)
                 for h in range(num_heads)]
        return jnp.concatenate(parts, axis=0).reshape(num_heads * tg, n, hd)

    qh = split_heads(q)
    kh = split_heads(k)
    vh = split_heads(v)

    # --- Scores + bias + softmax (stats in f32), batched over (H, TG). ---
    s = jnp.einsum('bnd,bmd->bnm', qh, kh,
                   preferred_element_type=jnp.float32)            # (H*TG, N, N)
    s = s.reshape(num_heads, tg, n, n) + bias_ref[...][:, None, :, :]
    s = s - jnp.max(s, axis=-1, keepdims=True)
    e = jnp.exp(s)
    r = jnp.sum(e, axis=-1, keepdims=True)                        # (H, TG, N, 1)
    p = e.astype(jnp.bfloat16).reshape(num_heads * tg, n, n)

    # Un-normalized attn @ v, then deferred normalization via EUP reciprocal.
    ov = jnp.einsum('bnm,bmd->bnd', p, vh,
                    preferred_element_type=jnp.float32)           # (H*TG, N, hd)
    ov = ov.reshape(num_heads, tg, n, hd) * pl.reciprocal(r, approx=True)

    # --- Merge heads (lane concat) + single K=C output projection. ---
    merged = jnp.concatenate([ov[h] for h in range(num_heads)], axis=-1)
    merged = merged.reshape(tg * n, c).astype(jnp.bfloat16)
    out = jnp.dot(merged, wproj_ref[...],
                  preferred_element_type=jnp.float32) + bproj_ref[...]
    o_ref[...] = out.reshape(tg, n, c).astype(o_ref.dtype)


def window_attention_forward(x, w_qkv, b_qkv, w_proj, b_proj, rpb_table, rpi,
                             mask=None, *, num_heads, qk_scale=None,
                             group_block=16):
    """WindowAttention.forward.

    x: (B_, N, C) with B_ = num_windows * batch, N = Wh*Ww, C = dim.
    w_qkv: (3C, C), b_qkv: (3C,)   [PyTorch nn.Linear layout]
    w_proj: (C, C), b_proj: (C,)
    rpb_table: ((2Wh-1)*(2Ww-1), num_heads), rpi: (N, N) int32
    mask: (nw, N, N) or None
    """
    B_, N, C = x.shape
    assert C % num_heads == 0
    hd = C // num_heads
    scale = float(qk_scale) if qk_scale is not None else float(hd) ** -0.5

    # --- tiny parameter prep (glue, stays in JAX) ---
    rpb = jnp.take(rpb_table, rpi.reshape(-1), axis=0)
    rpb = rpb.reshape(N, N, num_heads).transpose(2, 0, 1).astype(jnp.float32)
    if mask is not None:
        nw = mask.shape[0]
        bias = rpb[None] + mask[:, None, :, :].astype(jnp.float32)   # (nw,H,N,N)
    else:
        nw = 1
        bias = rpb[None]                                             # (1,H,N,N)
    assert B_ % nw == 0, "num_windows must divide batch of windows"
    G = B_ // nw

    # bf16 weights/activations (MXU peak is a bf16 rate; halves DMA + VMEM).
    # The qk scale is folded into the q projection (one-time wrapper op).
    cdt = jnp.bfloat16
    wq_t = (jnp.transpose(w_qkv[:C]) * scale).astype(cdt)            # (C, C)
    wk_t = jnp.transpose(w_qkv[C:2 * C]).astype(cdt)
    wv_t = jnp.transpose(w_qkv[2 * C:]).astype(cdt)
    bq = (b_qkv[:C] * scale).reshape(1, C).astype(cdt)
    bk = b_qkv[C:2 * C].reshape(1, C).astype(cdt)
    bv = b_qkv[2 * C:].reshape(1, C).astype(cdt)
    wproj_t = jnp.transpose(w_proj).astype(cdt)                      # (C, C)
    bproj2 = b_proj.reshape(1, C).astype(cdt)

    # Group tile TG: big TG*N row slabs for MXU fill.  Pad G up to a multiple
    # of TG (never collapse to TG=1 for prime G); only shrink TG if the slab
    # is already large and the grid would otherwise starve the pipeline /
    # second TensorCore (v7x).
    TG = max(1, min(group_block, G))
    while TG > 1 and nw * _cdiv(G, TG) < 8 and TG * N > 256:
        TG //= 2
    Gp = _cdiv(G, TG) * TG

    x_g = x.astype(cdt).reshape(G, nw, N, C)   # window b_ = g*nw + w
    if Gp != G:
        x_g = jnp.pad(x_g, ((0, Gp - G), (0, 0), (0, 0), (0, 0)))

    kernel = functools.partial(_window_attention_kernel, num_heads=num_heads)

    be = Gp * nw
    flops = (2 * be * N * C * 3 * C              # qkv proj
             + 4 * be * num_heads * N * N * hd   # q@k^T and attn@v
             + 2 * be * N * C * C)               # out proj
    bytes_accessed = (be * N * C * (2 + x.dtype.itemsize)
                      + 4 * C * C * 2 + 4 * C * 2
                      + nw * num_heads * N * N * 4)

    # VMEM budget from actual block sizes; cap at 32 MiB (v7x has 64 MiB/core,
    # leave headroom for double-buffering and internal scratch).
    blk = (2 * (TG * N * C * 2 + num_heads * N * N * 4)   # x + bias, 2-buffered
           + 2 * TG * N * C * x.dtype.itemsize            # out, 2-buffered
           + 4 * C * C * 2 + 4 * C * 2                    # resident weights
           + 3 * TG * N * C * 6                           # q,k,v (f32 + bf16)
           + num_heads * TG * N * N * 10                  # s, e, p
           + 2 * TG * N * C * 4)                          # merged / out acc
    vmem_limit = int(min(32 * 1024 * 1024, max(2 * blk, 16 * 1024 * 1024)))

    out = pl.pallas_call(
        kernel,
        out_shape=jax.ShapeDtypeStruct((Gp, nw, N, C), x.dtype),
        grid_spec=pltpu.PrefetchScalarGridSpec(
            num_scalar_prefetch=0,
            # nw on the SLOW axis: the bias/mask block is re-DMA'd only nw
            # times total (not once per grid step).
            grid=(nw, Gp // TG),
            in_specs=[
                pl.BlockSpec((TG, None, N, C), lambda w, g: (g, w, 0, 0)),
                pl.BlockSpec((C, C), lambda w, g: (0, 0)),
                pl.BlockSpec((C, C), lambda w, g: (0, 0)),
                pl.BlockSpec((C, C), lambda w, g: (0, 0)),
                pl.BlockSpec((1, C), lambda w, g: (0, 0)),
                pl.BlockSpec((1, C), lambda w, g: (0, 0)),
                pl.BlockSpec((1, C), lambda w, g: (0, 0)),
                pl.BlockSpec((None, num_heads, N, N), lambda w, g: (w, 0, 0, 0)),
                pl.BlockSpec((C, C), lambda w, g: (0, 0)),
                pl.BlockSpec((1, C), lambda w, g: (0, 0)),
            ],
            out_specs=pl.BlockSpec((TG, None, N, C), lambda w, g: (g, w, 0, 0)),
        ),
        compiler_params=pltpu.CompilerParams(
            dimension_semantics=("parallel", "parallel"),
            vmem_limit_bytes=vmem_limit,
        ),
        cost_estimate=pl.CostEstimate(
            flops=flops,
            transcendentals=be * num_heads * N * N,
            bytes_accessed=bytes_accessed),
    )(x_g, wq_t, wk_t, wv_t, bq, bk, bv, bias, wproj_t, bproj2)

    out = out[:G] if Gp != G else out
    return out.reshape(B_, N, C)


def _reference(x, w_qkv, b_qkv, w_proj, b_proj, rpb_table, rpi, mask,
               num_heads, scale):
    """Pure-JAX f32 mirror of the PyTorch forward."""
    HI = jax.lax.Precision.HIGHEST
    B_, N, C = x.shape
    hd = C // num_heads
    qkv = jnp.einsum('bnc,dc->bnd', x, w_qkv, precision=HI) + b_qkv
    qkv = qkv.reshape(B_, N, 3, num_heads, hd).transpose(2, 0, 3, 1, 4)
    q, k, v = qkv[0], qkv[1], qkv[2]
    q = q * scale
    attn = jnp.einsum('bhnd,bhmd->bhnm', q, k, precision=HI)
    rpb = rpb_table[rpi.reshape(-1)].reshape(N, N, num_heads).transpose(2, 0, 1)
    attn = attn + rpb[None]
    if mask is not None:
        nw = mask.shape[0]
        attn = attn.reshape(B_ // nw, nw, num_heads, N, N) + mask[None, :, None]
        attn = attn.reshape(B_, num_heads, N, N)
    attn = jax.nn.softmax(attn, axis=-1)
    out = jnp.einsum('bhnm,bhmd->bhnd', attn, v, precision=HI)
    out = out.transpose(0, 2, 1, 3).reshape(B_, N, C)
    return jnp.einsum('bnc,dc->bnd', out, w_proj, precision=HI) + b_proj


def _relative_position_index(wh, ww):
    coords = jnp.stack(jnp.meshgrid(jnp.arange(wh), jnp.arange(ww),
                                    indexing='ij'))                # (2, Wh, Ww)
    coords_flat = coords.reshape(2, -1)
    rel = coords_flat[:, :, None] - coords_flat[:, None, :]        # (2, N, N)
    rel = rel.transpose(1, 2, 0)
    rel = rel.at[:, :, 0].add(wh - 1)
    rel = rel.at[:, :, 1].add(ww - 1)
    rel = rel.at[:, :, 0].multiply(2 * ww - 1)
    return rel.sum(-1).astype(jnp.int32)                           # (N, N)


if __name__ == "__main__":
    key = jax.random.PRNGKey(0)
    ks = jax.random.split(key, 8)

    # Small-but-lane-dense config: window 8x8 -> N=64, dim C=128, 4 heads.
    batch, nw = 2, 4                 # 2 images * 4 windows each
    wh, ww = 8, 8
    N = wh * ww
    C = 128
    num_heads = 4
    B_ = batch * nw

    x = jax.random.normal(ks[0], (B_, N, C), dtype=jnp.float32)
    w_qkv = 0.05 * jax.random.normal(ks[1], (3 * C, C), dtype=jnp.float32)
    b_qkv = 0.05 * jax.random.normal(ks[2], (3 * C,), dtype=jnp.float32)
    w_proj = 0.05 * jax.random.normal(ks[3], (C, C), dtype=jnp.float32)
    b_proj = 0.05 * jax.random.normal(ks[4], (C,), dtype=jnp.float32)
    rpb_table = 0.02 * jax.random.normal(
        ks[5], ((2 * wh - 1) * (2 * ww - 1), num_heads), dtype=jnp.float32)
    rpi = _relative_position_index(wh, ww)
    mask = jnp.where(jax.random.bernoulli(ks[6], 0.5, (nw, N, N)),
                     0.0, -100.0).astype(jnp.float32)

    hd = C // num_heads
    scale = hd ** (-0.5)

    # Masked path.
    out = window_attention_forward(x, w_qkv, b_qkv, w_proj, b_proj,
                                   rpb_table, rpi, mask, num_heads=num_heads)
    out = jax.block_until_ready(out)
    ref = _reference(x, w_qkv, b_qkv, w_proj, b_proj, rpb_table, rpi, mask,
                     num_heads, scale)
    assert out.shape == (B_, N, C)
    # bf16 matmuls in the kernel vs f32 reference -> loosened tolerances.
    assert jnp.allclose(out, ref, atol=5e-2, rtol=5e-2), (
        "max abs err = %e" % float(jnp.max(jnp.abs(out - ref))))

    # mask=None path.
    out_nm = window_attention_forward(x, w_qkv, b_qkv, w_proj, b_proj,
                                      rpb_table, rpi, None,
                                      num_heads=num_heads)
    out_nm = jax.block_until_ready(out_nm)
    ref_nm = _reference(x, w_qkv, b_qkv, w_proj, b_proj, rpb_table, rpi, None,
                        num_heads, scale)
    assert jnp.allclose(out_nm, ref_nm, atol=5e-2, rtol=5e-2), (
        "max abs err = %e" % float(jnp.max(jnp.abs(out_nm - ref_nm))))

    print("KERNEL_OK")
</pallas_src>

<mosaic_0001>
module attributes {stable_mosaic.version = 11 : i64} {
  func.func @_window_attention_kernel(%arg0: i32, %arg1: i32, %arg2: memref<2x1x64x128xbf16, #tpu.memory_space<vmem>>, %arg3: memref<128x128xbf16, #tpu.memory_space<vmem>>, %arg4: memref<128x128xbf16, #tpu.memory_space<vmem>>, %arg5: memref<128x128xbf16, #tpu.memory_space<vmem>>, %arg6: memref<1x128xbf16, #tpu.memory_space<vmem>>, %arg7: memref<1x128xbf16, #tpu.memory_space<vmem>>, %arg8: memref<1x128xbf16, #tpu.memory_space<vmem>>, %arg9: memref<1x4x64x64xf32, #tpu.memory_space<vmem>>, %arg10: memref<128x128xbf16, #tpu.memory_space<vmem>>, %arg11: memref<1x128xbf16, #tpu.memory_space<vmem>>, %arg12: memref<2x1x64x128xf32, #tpu.memory_space<vmem>>) attributes {dimension_semantics = [#tpu.dimension_semantics<parallel>, #tpu.dimension_semantics<parallel>], iteration_bounds = array<i64: 4, 1>, scalar_prefetch = 0 : i64, scratch_operands = 0 : i64, tpu.core_type = #tpu.core_type<tc>, window_params = [{transform_indices = @transform_0, window_bounds = array<i64: 2, 1, 64, 128>}, {pipeline_mode = #tpu.pipeline_mode<synchronous>, transform_indices = @transform_1, window_bounds = array<i64: 128, 128>}, {pipeline_mode = #tpu.pipeline_mode<synchronous>, transform_indices = @transform_2, window_bounds = array<i64: 128, 128>}, {pipeline_mode = #tpu.pipeline_mode<synchronous>, transform_indices = @transform_3, window_bounds = array<i64: 128, 128>}, {pipeline_mode = #tpu.pipeline_mode<synchronous>, transform_indices = @transform_4, window_bounds = array<i64: 1, 128>}, {pipeline_mode = #tpu.pipeline_mode<synchronous>, transform_indices = @transform_5, window_bounds = array<i64: 1, 128>}, {pipeline_mode = #tpu.pipeline_mode<synchronous>, transform_indices = @transform_6, window_bounds = array<i64: 1, 128>}, {transform_indices = @transform_7, window_bounds = array<i64: 1, 4, 64, 64>}, {pipeline_mode = #tpu.pipeline_mode<synchronous>, transform_indices = @transform_8, window_bounds = array<i64: 128, 128>}, {pipeline_mode = #tpu.pipeline_mode<synchronous>, transform_indices = @transform_9, window_bounds = array<i64: 1, 128>}, {transform_indices = @transform_10, window_bounds = array<i64: 2, 1, 64, 128>}]} {
    %c0 = arith.constant 0 : index
    %c0_0 = arith.constant 0 : index
    %c0_1 = arith.constant 0 : index
    %c0_2 = arith.constant 0 : index
    %0 = vector.load %arg2[%c0, %c0_0, %c0_1, %c0_2] : memref<2x1x64x128xbf16, #tpu.memory_space<vmem>>, vector<2x1x64x128xbf16>
    %1 = vector.shape_cast %0 : vector<2x1x64x128xbf16> to vector<2x64x128xbf16>
    %2 = vector.shape_cast %1 : vector<2x64x128xbf16> to vector<128x128xbf16>
    %c0_3 = arith.constant 0 : index
    %c0_4 = arith.constant 0 : index
    %3 = vector.load %arg3[%c0_3, %c0_4] : memref<128x128xbf16, #tpu.memory_space<vmem>>, vector<128x128xbf16>
    %cst = arith.constant dense<0.000000e+00> : vector<128x128xf32>
    %4 = tpu.matmul %2, %3, %cst {dimension_numbers = #tpu.dot_dimension_numbers<[1], [0], [0], [1], [0, 0, 1, 1], [], []>} : vector<128x128xbf16>, vector<128x128xbf16>, vector<128x128xf32> -> vector<128x128xf32>
    %c0_5 = arith.constant 0 : index
    %c0_6 = arith.constant 0 : index
    %5 = vector.load %arg6[%c0_5, %c0_6] : memref<1x128xbf16, #tpu.memory_space<vmem>>, vector<1x128xbf16>
    %6 = arith.extf %5 : vector<1x128xbf16> to vector<1x128xf32>
    %7 = vector.broadcast %6 : vector<1x128xf32> to vector<128x128xf32>
    %8 = arith.addf %4, %7 : vector<128x128xf32>
    %c0_7 = arith.constant 0 : index
    %c0_8 = arith.constant 0 : index
    %9 = vector.load %arg4[%c0_7, %c0_8] : memref<128x128xbf16, #tpu.memory_space<vmem>>, vector<128x128xbf16>
    %cst_9 = arith.constant dense<0.000000e+00> : vector<128x128xf32>
    %10 = tpu.matmul %2, %9, %cst_9 {dimension_numbers = #tpu.dot_dimension_numbers<[1], [0], [0], [1], [0, 0, 1, 1], [], []>} : vector<128x128xbf16>, vector<128x128xbf16>, vector<128x128xf32> -> vector<128x128xf32>
    %c0_10 = arith.constant 0 : index
    %c0_11 = arith.constant 0 : index
    %11 = vector.load %arg7[%c0_10, %c0_11] : memref<1x128xbf16, #tpu.memory_space<vmem>>, vector<1x128xbf16>
    %12 = arith.extf %11 : vector<1x128xbf16> to vector<1x128xf32>
    %13 = vector.broadcast %12 : vector<1x128xf32> to vector<128x128xf32>
    %14 = arith.addf %10, %13 : vector<128x128xf32>
    %c0_12 = arith.constant 0 : index
    %c0_13 = arith.constant 0 : index
    %15 = vector.load %arg5[%c0_12, %c0_13] : memref<128x128xbf16, #tpu.memory_space<vmem>>, vector<128x128xbf16>
    %cst_14 = arith.constant dense<0.000000e+00> : vector<128x128xf32>
    %16 = tpu.matmul %2, %15, %cst_14 {dimension_numbers = #tpu.dot_dimension_numbers<[1], [0], [0], [1], [0, 0, 1, 1], [], []>} : vector<128x128xbf16>, vector<128x128xbf16>, vector<128x128xf32> -> vector<128x128xf32>
    %c0_15 = arith.constant 0 : index
    %c0_16 = arith.constant 0 : index
    %17 = vector.load %arg8[%c0_15, %c0_16] : memref<1x128xbf16, #tpu.memory_space<vmem>>, vector<1x128xbf16>
    %18 = arith.extf %17 : vector<1x128xbf16> to vector<1x128xf32>
    %19 = vector.broadcast %18 : vector<1x128xf32> to vector<128x128xf32>
    %20 = arith.addf %16, %19 : vector<128x128xf32>
    %21 = arith.truncf %8 : vector<128x128xf32> to vector<128x128xbf16>
    %22 = arith.truncf %14 : vector<128x128xf32> to vector<128x128xbf16>
    %23 = arith.truncf %20 : vector<128x128xf32> to vector<128x128xbf16>
    %24 = vector.extract_strided_slice %21 {offsets = [0, 0], sizes = [128, 32], strides = [1, 1]} : vector<128x128xbf16> to vector<128x32xbf16>
    %25 = vector.shape_cast %24 : vector<128x32xbf16> to vector<1x2x64x32xbf16>
    %26 = vector.extract_strided_slice %21 {offsets = [0, 32], sizes = [128, 32], strides = [1, 1]} : vector<128x128xbf16> to vector<128x32xbf16>
    %27 = vector.shape_cast %26 : vector<128x32xbf16> to vector<1x2x64x32xbf16>
    %28 = vector.extract_strided_slice %21 {offsets = [0, 64], sizes = [128, 32], strides = [1, 1]} : vector<128x128xbf16> to vector<128x32xbf16>
    %29 = vector.shape_cast %28 : vector<128x32xbf16> to vector<1x2x64x32xbf16>
    %30 = vector.extract_strided_slice %21 {offsets = [0, 96], sizes = [128, 32], strides = [1, 1]} : vector<128x128xbf16> to vector<128x32xbf16>
    %31 = vector.shape_cast %30 : vector<128x32xbf16> to vector<1x2x64x32xbf16>
    %32 = tpu.concatenate %25, %27, %29, %31 in 0 : vector<1x2x64x32xbf16>, vector<1x2x64x32xbf16>, vector<1x2x64x32xbf16>, vector<1x2x64x32xbf16> -> vector<4x2x64x32xbf16>
    %33 = vector.shape_cast %32 : vector<4x2x64x32xbf16> to vector<8x64x32xbf16>
    %34 = vector.extract_strided_slice %22 {offsets = [0, 0], sizes = [128, 32], strides = [1, 1]} : vector<128x128xbf16> to vector<128x32xbf16>
    %35 = vector.shape_cast %34 : vector<128x32xbf16> to vector<1x2x64x32xbf16>
    %36 = vector.extract_strided_slice %22 {offsets = [0, 32], sizes = [128, 32], strides = [1, 1]} : vector<128x128xbf16> to vector<128x32xbf16>
    %37 = vector.shape_cast %36 : vector<128x32xbf16> to vector<1x2x64x32xbf16>
    %38 = vector.extract_strided_slice %22 {offsets = [0, 64], sizes = [128, 32], strides = [1, 1]} : vector<128x128xbf16> to vector<128x32xbf16>
    %39 = vector.shape_cast %38 : vector<128x32xbf16> to vector<1x2x64x32xbf16>
    %40 = vector.extract_strided_slice %22 {offsets = [0, 96], sizes = [128, 32], strides = [1, 1]} : vector<128x128xbf16> to vector<128x32xbf16>
    %41 = vector.shape_cast %40 : vector<128x32xbf16> to vector<1x2x64x32xbf16>
    %42 = tpu.concatenate %35, %37, %39, %41 in 0 : vector<1x2x64x32xbf16>, vector<1x2x64x32xbf16>, vector<1x2x64x32xbf16>, vector<1x2x64x32xbf16> -> vector<4x2x64x32xbf16>
    %43 = vector.shape_cast %42 : vector<4x2x64x32xbf16> to vector<8x64x32xbf16>
    %44 = vector.extract_strided_slice %23 {offsets = [0, 0], sizes = [128, 32], strides = [1, 1]} : vector<128x128xbf16> to vector<128x32xbf16>
    %45 = vector.shape_cast %44 : vector<128x32xbf16> to vector<1x2x64x32xbf16>
    %46 = vector.extract_strided_slice %23 {offsets = [0, 32], sizes = [128, 32], strides = [1, 1]} : vector<128x128xbf16> to vector<128x32xbf16>
    %47 = vector.shape_cast %46 : vector<128x32xbf16> to vector<1x2x64x32xbf16>
    %48 = vector.extract_strided_slice %23 {offsets = [0, 64], sizes = [128, 32], strides = [1, 1]} : vector<128x128xbf16> to vector<128x32xbf16>
    %49 = vector.shape_cast %48 : vector<128x32xbf16> to vector<1x2x64x32xbf16>
    %50 = vector.extract_strided_slice %23 {offsets = [0, 96], sizes = [128, 32], strides = [1, 1]} : vector<128x128xbf16> to vector<128x32xbf16>
    %51 = vector.shape_cast %50 : vector<128x32xbf16> to vector<1x2x64x32xbf16>
    %52 = tpu.concatenate %45, %47, %49, %51 in 0 : vector<1x2x64x32xbf16>, vector<1x2x64x32xbf16>, vector<1x2x64x32xbf16>, vector<1x2x64x32xbf16> -> vector<4x2x64x32xbf16>
    %53 = vector.shape_cast %52 : vector<4x2x64x32xbf16> to vector<8x64x32xbf16>
    "tpu.trace_start"() <{level = 10 : i32, message = "bnd,bmd->bnm"}> : () -> ()
    %cst_17 = arith.constant dense<0.000000e+00> : vector<8x64x64xf32>
    %54 = tpu.matmul %33, %43, %cst_17 {dimension_numbers = #tpu.dot_dimension_numbers<[2], [2], [1], [1], [0, 0, 0, 1, 1, 1], [0], [0]>} : vector<8x64x32xbf16>, vector<8x64x32xbf16>, vector<8x64x64xf32> -> vector<8x64x64xf32>
    "tpu.trace_stop"() : () -> ()
    %55 = vector.shape_cast %54 : vector<8x64x64xf32> to vector<4x2x64x64xf32>
    %c0_18 = arith.constant 0 : index
    %c0_19 = arith.constant 0 : index
    %c0_20 = arith.constant 0 : index
    %c0_21 = arith.constant 0 : index
    %56 = vector.load %arg9[%c0_18, %c0_19, %c0_20, %c0_21] : memref<1x4x64x64xf32, #tpu.memory_space<vmem>>, vector<1x4x64x64xf32>
    %57 = vector.shape_cast %56 : vector<1x4x64x64xf32> to vector<4x64x64xf32>
    %58 = vector.shape_cast %57 : vector<4x64x64xf32> to vector<4x1x64x64xf32>
    %59 = vector.broadcast %58 : vector<4x1x64x64xf32> to vector<4x2x64x64xf32>
    %60 = arith.addf %55, %59 : vector<4x2x64x64xf32>
    %cst_22 = arith.constant dense<0xFF800000> : vector<4x2x64xf32>
    %61 = vector.multi_reduction <maximumf>, %60, %cst_22 [3] : vector<4x2x64x64xf32> to vector<4x2x64xf32>
    %62 = vector.shape_cast %61 : vector<4x2x64xf32> to vector<4x2x64x1xf32>
    %63 = vector.broadcast %62 : vector<4x2x64x1xf32> to vector<4x2x64x64xf32>
    %64 = arith.subf %60, %63 : vector<4x2x64x64xf32>
    %65 = math.exp %64 : vector<4x2x64x64xf32>
    %cst_23 = arith.constant dense<0.000000e+00> : vector<4x2x64xf32>
    %66 = vector.multi_reduction <add>, %65, %cst_23 [3] : vector<4x2x64x64xf32> to vector<4x2x64xf32>
    %67 = vector.shape_cast %66 : vector<4x2x64xf32> to vector<4x2x64x1xf32>
    %68 = arith.truncf %65 : vector<4x2x64x64xf32> to vector<4x2x64x64xbf16>
    %69 = vector.shape_cast %68 : vector<4x2x64x64xbf16> to vector<8x64x64xbf16>
    "tpu.trace_start"() <{level = 10 : i32, message = "bnm,bmd->bnd"}> : () -> ()
    %cst_24 = arith.constant dense<0.000000e+00> : vector<8x64x32xf32>
    %70 = tpu.matmul %69, %53, %cst_24 {dimension_numbers = #tpu.dot_dimension_numbers<[2], [1], [1], [2], [0, 0, 0, 1, 1, 2], [0], [0]>} : vector<8x64x64xbf16>, vector<8x64x32xbf16>, vector<8x64x32xf32> -> vector<8x64x32xf32>
    "tpu.trace_stop"() : () -> ()
    %71 = vector.shape_cast %70 : vector<8x64x32xf32> to vector<4x2x64x32xf32>
    %72 = tpu.reciprocal %67 {approx = true} : vector<4x2x64x1xf32> -> vector<4x2x64x1xf32>
    %73 = vector.broadcast %72 : vector<4x2x64x1xf32> to vector<4x2x64x32xf32>
    %74 = arith.mulf %71, %73 : vector<4x2x64x32xf32>
    %75 = vector.extract_strided_slice %74 {offsets = [0, 0, 0, 0], sizes = [1, 2, 64, 32], strides = [1, 1, 1, 1]} : vector<4x2x64x32xf32> to vector<1x2x64x32xf32>
    %76 = vector.shape_cast %75 : vector<1x2x64x32xf32> to vector<2x64x32xf32>
    %77 = vector.extract_strided_slice %74 {offsets = [1, 0, 0, 0], sizes = [1, 2, 64, 32], strides = [1, 1, 1, 1]} : vector<4x2x64x32xf32> to vector<1x2x64x32xf32>
    %78 = vector.shape_cast %77 : vector<1x2x64x32xf32> to vector<2x64x32xf32>
    %79 = vector.extract_strided_slice %74 {offsets = [2, 0, 0, 0], sizes = [1, 2, 64, 32], strides = [1, 1, 1, 1]} : vector<4x2x64x32xf32> to vector<1x2x64x32xf32>
    %80 = vector.shape_cast %79 : vector<1x2x64x32xf32> to vector<2x64x32xf32>
    %81 = vector.extract_strided_slice %74 {offsets = [3, 0, 0, 0], sizes = [1, 2, 64, 32], strides = [1, 1, 1, 1]} : vector<4x2x64x32xf32> to vector<1x2x64x32xf32>
    %82 = vector.shape_cast %81 : vector<1x2x64x32xf32> to vector<2x64x32xf32>
    %83 = tpu.concatenate %76, %78, %80, %82 in 2 : vector<2x64x32xf32>, vector<2x64x32xf32>, vector<2x64x32xf32>, vector<2x64x32xf32> -> vector<2x64x128xf32>
    %84 = vector.shape_cast %83 : vector<2x64x128xf32> to vector<128x128xf32>
    %85 = arith.truncf %84 : vector<128x128xf32> to vector<128x128xbf16>
    %c0_25 = arith.constant 0 : index
    %c0_26 = arith.constant 0 : index
    %86 = vector.load %arg10[%c0_25, %c0_26] : memref<128x128xbf16, #tpu.memory_space<vmem>>, vector<128x128xbf16>
    %cst_27 = arith.constant dense<0.000000e+00> : vector<128x128xf32>
    %87 = tpu.matmul %85, %86, %cst_27 {dimension_numbers = #tpu.dot_dimension_numbers<[1], [0], [0], [1], [0, 0, 1, 1], [], []>} : vector<128x128xbf16>, vector<128x128xbf16>, vector<128x128xf32> -> vector<128x128xf32>
    %c0_28 = arith.constant 0 : index
    %c0_29 = arith.constant 0 : index
    %88 = vector.load %arg11[%c0_28, %c0_29] : memref<1x128xbf16, #tpu.memory_space<vmem>>, vector<1x128xbf16>
    %89 = arith.extf %88 : vector<1x128xbf16> to vector<1x128xf32>
    %90 = vector.broadcast %89 : vector<1x128xf32> to vector<128x128xf32>
    %91 = arith.addf %87, %90 : vector<128x128xf32>
    %92 = vector.shape_cast %91 : vector<128x128xf32> to vector<2x64x128xf32>
    %c0_30 = arith.constant 0 : index
    %c0_31 = arith.constant 0 : index
    %c0_32 = arith.constant 0 : index
    %c0_33 = arith.constant 0 : index
    %93 = vector.load %arg12[%c0_30, %c0_31, %c0_32, %c0_33] : memref<2x1x64x128xf32, #tpu.memory_space<vmem>>, vector<2x1x64x128xf32>
    %94 = vector.shape_cast %93 : vector<2x1x64x128xf32> to vector<2x64x128xf32>
    %95 = vector.shape_cast %92 : vector<2x64x128xf32> to vector<2x1x64x128xf32>
    tpu.vector_store %arg12[%c0_30, %c0_31, %c0_32, %c0_33], %95 {strides = array<i32>} : memref<2x1x64x128xf32, #tpu.memory_space<vmem>>, vector<2x1x64x128xf32>,
    return
  }
  func.func @transform_0(%arg0: i32, %arg1: i32) -> (i32, i32, i32, i32) {
    %c0_i32 = arith.constant 0 : i32
    %c0_i32_0 = arith.constant 0 : i32
    %c0_i32_1 = arith.constant 0 : i32
    return %arg1, %arg0, %c0_i32, %c0_i32_0 : i32, i32, i32, i32
  }
  func.func @transform_1(%arg0: i32, %arg1: i32) -> (i32, i32) {
    %c0_i32 = arith.constant 0 : i32
    %c0_i32_0 = arith.constant 0 : i32
    %c0_i32_1 = arith.constant 0 : i32
    return %c0_i32, %c0_i32_0 : i32, i32
  }
  func.func @transform_2(%arg0: i32, %arg1: i32) -> (i32, i32) {
    %c0_i32 = arith.constant 0 : i32
    %c0_i32_0 = arith.constant 0 : i32
    %c0_i32_1 = arith.constant 0 : i32
    return %c0_i32, %c0_i32_0 : i32, i32
  }
  func.func @transform_3(%arg0: i32, %arg1: i32) -> (i32, i32) {
    %c0_i32 = arith.constant 0 : i32
    %c0_i32_0 = arith.constant 0 : i32
    %c0_i32_1 = arith.constant 0 : i32
    return %c0_i32, %c0_i32_0 : i32, i32
  }
  func.func @transform_4(%arg0: i32, %arg1: i32) -> (i32, i32) {
    %c0_i32 = arith.constant 0 : i32
    %c0_i32_0 = arith.constant 0 : i32
    %c0_i32_1 = arith.constant 0 : i32
    return %c0_i32, %c0_i32_0 : i32, i32
  }
  func.func @transform_5(%arg0: i32, %arg1: i32) -> (i32, i32) {
    %c0_i32 = arith.constant 0 : i32
    %c0_i32_0 = arith.constant 0 : i32
    %c0_i32_1 = arith.constant 0 : i32
    return %c0_i32, %c0_i32_0 : i32, i32
  }
  func.func @transform_6(%arg0: i32, %arg1: i32) -> (i32, i32) {
    %c0_i32 = arith.constant 0 : i32
    %c0_i32_0 = arith.constant 0 : i32
    %c0_i32_1 = arith.constant 0 : i32
    return %c0_i32, %c0_i32_0 : i32, i32
  }
  func.func @transform_7(%arg0: i32, %arg1: i32) -> (i32, i32, i32, i32) {
    %c0_i32 = arith.constant 0 : i32
    %c0_i32_0 = arith.constant 0 : i32
    %c0_i32_1 = arith.constant 0 : i32
    %c0_i32_2 = arith.constant 0 : i32
    return %arg0, %c0_i32, %c0_i32_0, %c0_i32_1 : i32, i32, i32, i32
  }
  func.func @transform_8(%arg0: i32, %arg1: i32) -> (i32, i32) {
    %c0_i32 = arith.constant 0 : i32
    %c0_i32_0 = arith.constant 0 : i32
    %c0_i32_1 = arith.constant 0 : i32
    return %c0_i32, %c0_i32_0 : i32, i32
  }
  func.func @transform_9(%arg0: i32, %arg1: i32) -> (i32, i32) {
    %c0_i32 = arith.constant 0 : i32
    %c0_i32_0 = arith.constant 0 : i32
    %c0_i32_1 = arith.constant 0 : i32
    return %c0_i32, %c0_i32_0 : i32, i32
  }
  func.func @transform_10(%arg0: i32, %arg1: i32) -> (i32, i32, i32, i32) {
    %c0_i32 = arith.constant 0 : i32
    %c0_i32_0 = arith.constant 0 : i32
    %c0_i32_1 = arith.constant 0 : i32
    return %arg1, %arg0, %c0_i32, %c0_i32_0 : i32, i32, i32, i32
  }
}

</mosaic_0001>

<llo_original>
// kernel: tpu_custom_call.1
$region0: #{tpu_custom_call.1}
  #allocation0 [shape = 'u32[]', space=smem, size = 0x4, offset = 0x4, fixed_abs, tag = 'smem constant byte address 0x4 - core index']
  #allocation1 [shape = 'u32[144,128]{1,0:T(1,128)}', space=vmem, size = 0x12000, scoped, tag = 'internal scratch']
  #allocation13 [shape = 's32[]', space=sflag, size = 0x4, offset = 0, fixed_abs, tag = 'sflag constant byte address 0x0 - dummy sync flag']
  #allocation15 [shape = 's32[]', space=sflag, size = 0x4, offset = 0, fixed_abs, tag = 'sflag constant byte address 0x0 - dummy sync flag']
  %s0 = inlined_call_operand.hbm [shape: bf16[2,4,64,128], index: 0, kind: input, shape index: {}]
  %s1 = inlined_call_operand.hbm [shape: bf16[128,128], index: 1, kind: input, shape index: {}]
  %s2 = inlined_call_operand.hbm [shape: bf16[128,128], index: 2, kind: input, shape index: {}]
  %s3 = inlined_call_operand.hbm [shape: bf16[128,128], index: 3, kind: input, shape index: {}]
  %s4 = inlined_call_operand.vmem [shape: bf16[1,128], index: 4, kind: input, shape index: {}]
  %s5 = inlined_call_operand.vmem [shape: bf16[1,128], index: 5, kind: input, shape index: {}]
  %s6 = inlined_call_operand.vmem [shape: bf16[1,128], index: 6, kind: input, shape index: {}]
  %s7 = inlined_call_operand.hbm [shape: f32[4,4,64,64], index: 7, kind: input, shape index: {}]
  %s8 = inlined_call_operand.hbm [shape: bf16[128,128], index: 8, kind: input, shape index: {}]
  %s9 = inlined_call_operand.vmem [shape: bf16[1,128], index: 9, kind: input, shape index: {}]
  %s10 = inlined_call_operand.hbm [shape: f32[2,4,64,128], index: 10, kind: output, shape index: {}]
  %s11 = sld [smem:[#allocation0]]
  $region97: #{tpu_custom_call.1} parent=0
    _
  %s13 = ssub.s32 1, %s11
  %s14 = scalar_select 0, %s13, %s11
  $region1: #{tpu_custom_call.1} parent=0
    #allocation2 [shape = 'u8[65536]{0}', space=vmem, size = 0x10000, scoped, tag = 'input window, operand 0']
    #allocation3 [shape = 's32[2]{0}', space=sflag, size = 0x8, scoped, tag = 'scoped memory for tpu_custom_call.1']
    #allocation4 [shape = 's32[2]{0}', space=sflag, size = 0x8, scoped, tag = 'scoped memory for tpu_custom_call.1']
    #allocation5 [shape = 'u8[32768]{0}', space=vmem, size = 0x8000, scoped, tag = 'input window, operand 1, single buffered']
    #allocation6 [shape = 's32[1]{0}', space=sflag, size = 0x4, scoped, tag = 'scoped memory for tpu_custom_call.1']
    #allocation7 [shape = 'u8[32768]{0}', space=vmem, size = 0x8000, scoped, tag = 'input window, operand 2, single buffered']
    #allocation8 [shape = 'u8[32768]{0}', space=vmem, size = 0x8000, scoped, tag = 'input window, operand 3, single buffered']
    #allocation9 [shape = 's32[1]{0}', space=sflag, size = 0x4, scoped, tag = 'scoped memory for tpu_custom_call.1']
    #allocation10 [shape = 'u8[262144]{0}', space=vmem, size = 0x40000, scoped, tag = 'input window, operand 7']
    #allocation11 [shape = 'u8[32768]{0}', space=vmem, size = 0x8000, scoped, tag = 'input window, operand 8, single buffered']
    #allocation12 [shape = 'u8[131072]{0}', space=vmem, size = 0x20000, scoped, tag = 'output window, operand 0']
    %15 = vsyncpa [#allocation3], 0
    %s16 = scalar_lea.sflag [#allocation3], 1
    %17 = vsyncpa %s16, 0
    %18 = vsyncpa [#allocation6], 0
    %19 = vsyncpa [#allocation9], 0
    %20 = vsyncpa [#allocation4], 0
    %s21 = scalar_lea.sflag [#allocation4], 1
    %22 = vsyncpa %s21, 0
    loop: start=0, step=1, limit=6
    $region2: #{tpu_custom_call.1} parent=1 // loop_pre_header
      _
    $region3: #{tpu_custom_call.1} parent=1 // loop_header
      %s24 = sphi 0, %s28
      %p25 = scmp.ge.s32.totalorder %s24, 6
      %s31 = sphi 0, %s43
      %s32 = sphi 0, %s39
      %s33 = sphi 0, %s31
      %s34 = sphi 0, %s32
      %s35 = sphi 0, %s33
      %s36 = sphi 0, %s34
      %s48 = sphi 0, %s50
      %s51 = sphi 0, %s48
      %s52 = sphi 0, %s51
      %s68 = sphi 0, %s52
      %s72 = sphi 0, %s72
      %s74 = sphi 0, %s72
      %s75 = sphi 0, %s74
      %s89 = sphi 0, %s75
      %s93 = sphi 0, %s93
      %s95 = sphi 0, %s93
      %s96 = sphi 0, %s95
      %s110 = sphi 0, %s96
      %s114 = sphi 0, %s114
      %s116 = sphi 0, %s114
      %s117 = sphi 0, %s116
      %s131 = sphi 0, %s117
      %s135 = sphi 0, %s135
      %s137 = sphi 0, %s135
      %s138 = sphi 0, %s137
      %s152 = sphi 0, %s138
      %s156 = sphi 0, %s156
      %s158 = sphi 0, %s156
      %s159 = sphi 0, %s158
      %s173 = sphi 0, %s159
      %s177 = sphi 0, %s177
      %s179 = sphi 0, %s177
      %s180 = sphi 0, %s179
      %s194 = sphi 0, %s180
      %s200 = sphi 0, %s202
      %s203 = sphi 0, %s200
      %s204 = sphi 0, %s203
      %s220 = sphi 0, %s204
      %s224 = sphi 0, %s224
      %s226 = sphi 0, %s224
      %s227 = sphi 0, %s226
      %s241 = sphi 0, %s227
      %s245 = sphi 0, %s245
      %s247 = sphi 0, %s245
      %s248 = sphi 0, %s247
      %s262 = sphi 0, %s248
      %s270 = sphi 0, %s272
      %s273 = sphi 0, %s270
      %s274 = sphi 0, %s273
      %s290 = sphi 0, %s274
    $region4: #{tpu_custom_call.1} parent=1 // loop_header_branch
      %27 = sbr.rel (%p25) target = $region8
    $region5: #{tpu_custom_call.1} parent=1 // loop_body
      %s29 = ssub.s32 %s24, 1
      %s30 = ssub.s32 %s24, 2
      %s37 = sadd.s32 1, %s32
      %p38 = scmp.ge.s32.totalorder %s37, 1
      %s39 = scalar_select %p38, 0, %s37
      %s40 = sadd.s32 1, %s31
      %s41 = scalar_select %p38, %s40, %s31
      %p42 = scmp.ge.s32.totalorder %s41, 4
      %s43 = scalar_select %p42, 0, %s41
      %s44 = ssub.s32 %s32, %s39
      %s45 = ssub.s32 %s31, %s43
      %s46 = sor.u32 %s44, %s45
      %p47 = scmp.eq.s32.totalorder %s46, 0
      %s49 = sadd.s32 %s48, 1
      %s50 = scalar_select %p47, %s48, %s49
      %p53 = pneg %p47
      %p54 = scmp.eq.s32.totalorder %s24, 3
      %p55 = por %p53, %p54
      %p56 = scmp.ne.s32.totalorder %s48, %s51
      %p57 = scmp.eq.s32.totalorder %s24, 0
      %p58 = por %p56, %p57
      %p59 = scmp.ne.s32.totalorder %s48, %s51
      %p60 = scmp.eq.s32.totalorder %s29, 3
      %p61 = por %p59, %p60
      %p62 = scmp.ne.s32.totalorder %s51, %s52
      %p63 = scmp.eq.s32.totalorder %s29, 0
      %p64 = por %p62, %p63
      %p65 = scmp.ne.s32.totalorder %s51, %s52
      %p66 = scmp.eq.s32.totalorder %s30, 3
      %p67 = por %p65, %p66
      %p69 = scmp.ne.s32.totalorder %s52, %s68
      %p70 = scmp.eq.s32.totalorder %s30, 0
      %p71 = por %p69, %p70
      %s73 = sadd.s32 %s72, 1
      %p76 = scmp.eq.s32.totalorder %s24, 3
      %p77 = scmp.ne.s32.totalorder %s72, %s74
      %p78 = scmp.eq.s32.totalorder %s24, 0
      %p79 = por %p77, %p78
      %p80 = scmp.ne.s32.totalorder %s72, %s74
      %p81 = scmp.eq.s32.totalorder %s29, 3
      %p82 = por %p80, %p81
      %p83 = scmp.ne.s32.totalorder %s74, %s75
      %p84 = scmp.eq.s32.totalorder %s29, 0
      %p85 = por %p83, %p84
      %p86 = scmp.ne.s32.totalorder %s74, %s75
      %p87 = scmp.eq.s32.totalorder %s30, 3
      %p88 = por %p86, %p87
      %p90 = scmp.ne.s32.totalorder %s75, %s89
      %p91 = scmp.eq.s32.totalorder %s30, 0
      %p92 = por %p90, %p91
      %s94 = sadd.s32 %s93, 1
      %p97 = scmp.eq.s32.totalorder %s24, 3
      %p98 = scmp.ne.s32.totalorder %s93, %s95
      %p99 = scmp.eq.s32.totalorder %s24, 0
      %p100 = por %p98, %p99
      %p101 = scmp.ne.s32.totalorder %s93, %s95
      %p102 = scmp.eq.s32.totalorder %s29, 3
      %p103 = por %p101, %p102
      %p104 = scmp.ne.s32.totalorder %s95, %s96
      %p105 = scmp.eq.s32.totalorder %s29, 0
      %p106 = por %p104, %p105
      %p107 = scmp.ne.s32.totalorder %s95, %s96
      %p108 = scmp.eq.s32.totalorder %s30, 3
      %p109 = por %p107, %p108
      %p111 = scmp.ne.s32.totalorder %s96, %s110
      %p112 = scmp.eq.s32.totalorder %s30, 0
      %p113 = por %p111, %p112
      %s115 = sadd.s32 %s114, 1
      %p118 = scmp.eq.s32.totalorder %s24, 3
      %p119 = scmp.ne.s32.totalorder %s114, %s116
      %p120 = scmp.eq.s32.totalorder %s24, 0
      %p121 = por %p119, %p120
      %p122 = scmp.ne.s32.totalorder %s114, %s116
      %p123 = scmp.eq.s32.totalorder %s29, 3
      %p124 = por %p122, %p123
      %p125 = scmp.ne.s32.totalorder %s116, %s117
      %p126 = scmp.eq.s32.totalorder %s29, 0
      %p127 = por %p125, %p126
      %p128 = scmp.ne.s32.totalorder %s116, %s117
      %p129 = scmp.eq.s32.totalorder %s30, 3
      %p130 = por %p128, %p129
      %p132 = scmp.ne.s32.totalorder %s117, %s131
      %p133 = scmp.eq.s32.totalorder %s30, 0
      %p134 = por %p132, %p133
      %s136 = sadd.s32 %s135, 1
      %p139 = scmp.eq.s32.totalorder %s24, 3
      %p140 = scmp.ne.s32.totalorder %s135, %s137
      %p141 = scmp.eq.s32.totalorder %s24, 0
      %p142 = por %p140, %p141
      %p143 = scmp.ne.s32.totalorder %s135, %s137
      %p144 = scmp.eq.s32.totalorder %s29, 3
      %p145 = por %p143, %p144
      %p146 = scmp.ne.s32.totalorder %s137, %s138
      %p147 = scmp.eq.s32.totalorder %s29, 0
      %p148 = por %p146, %p147
      %p149 = scmp.ne.s32.totalorder %s137, %s138
      %p150 = scmp.eq.s32.totalorder %s30, 3
      %p151 = por %p149, %p150
      %p153 = scmp.ne.s32.totalorder %s138, %s152
      %p154 = scmp.eq.s32.totalorder %s30, 0
      %p155 = por %p153, %p154
      %s157 = sadd.s32 %s156, 1
      %p160 = scmp.eq.s32.totalorder %s24, 3
      %p161 = scmp.ne.s32.totalorder %s156, %s158
      %p162 = scmp.eq.s32.totalorder %s24, 0
      %p163 = por %p161, %p162
      %p164 = scmp.ne.s32.totalorder %s156, %s158
      %p165 = scmp.eq.s32.totalorder %s29, 3
      %p166 = por %p164, %p165
      %p167 = scmp.ne.s32.totalorder %s158, %s159
      %p168 = scmp.eq.s32.totalorder %s29, 0
      %p169 = por %p167, %p168
      %p170 = scmp.ne.s32.totalorder %s158, %s159
      %p171 = scmp.eq.s32.totalorder %s30, 3
      %p172 = por %p170, %p171
      %p174 = scmp.ne.s32.totalorder %s159, %s173
      %p175 = scmp.eq.s32.totalorder %s30, 0
      %p176 = por %p174, %p175
      %s178 = sadd.s32 %s177, 1
      %p181 = scmp.eq.s32.totalorder %s24, 3
      %p182 = scmp.ne.s32.totalorder %s177, %s179
      %p183 = scmp.eq.s32.totalorder %s24, 0
      %p184 = por %p182, %p183
      %p185 = scmp.ne.s32.totalorder %s177, %s179
      %p186 = scmp.eq.s32.totalorder %s29, 3
      %p187 = por %p185, %p186
      %p188 = scmp.ne.s32.totalorder %s179, %s180
      %p189 = scmp.eq.s32.totalorder %s29, 0
      %p190 = por %p188, %p189
      %p191 = scmp.ne.s32.totalorder %s179, %s180
      %p192 = scmp.eq.s32.totalorder %s30, 3
      %p193 = por %p191, %p192
      %p195 = scmp.ne.s32.totalorder %s180, %s194
      %p196 = scmp.eq.s32.totalorder %s30, 0
      %p197 = por %p195, %p196
      %s198 = ssub.s32 %s31, %s43
      %p199 = scmp.eq.s32.totalorder %s198, 0
      %s201 = sadd.s32 %s200, 1
      %s202 = scalar_select %p199, %s200, %s201
      %p205 = pneg %p199
      %p206 = scmp.eq.s32.totalorder %s24, 3
      %p207 = por %p205, %p206
      %p208 = scmp.ne.s32.totalorder %s200, %s203
      %p209 = scmp.eq.s32.totalorder %s24, 0
      %p210 = por %p208, %p209
      %p211 = scmp.ne.s32.totalorder %s200, %s203
      %p212 = scmp.eq.s32.totalorder %s29, 3
      %p213 = por %p211, %p212
      %p214 = scmp.ne.s32.totalorder %s203, %s204
      %p215 = scmp.eq.s32.totalorder %s29, 0
      %p216 = por %p214, %p215
      %p217 = scmp.ne.s32.totalorder %s203, %s204
      %p218 = scmp.eq.s32.totalorder %s30, 3
      %p219 = por %p217, %p218
      %p221 = scmp.ne.s32.totalorder %s204, %s220
      %p222 = scmp.eq.s32.totalorder %s30, 0
      %p223 = por %p221, %p222
      %s225 = sadd.s32 %s224, 1
      %p228 = scmp.eq.s32.totalorder %s24, 3
      %p229 = scmp.ne.s32.totalorder %s224, %s226
      %p230 = scmp.eq.s32.totalorder %s24, 0
      %p231 = por %p229, %p230
      %p232 = scmp.ne.s32.totalorder %s224, %s226
      %p233 = scmp.eq.s32.totalorder %s29, 3
      %p234 = por %p232, %p233
      %p235 = scmp.ne.s32.totalorder %s226, %s227
      %p236 = scmp.eq.s32.totalorder %s29, 0
      %p237 = por %p235, %p236
      %p238 = scmp.ne.s32.totalorder %s226, %s227
      %p239 = scmp.eq.s32.totalorder %s30, 3
      %p240 = por %p238, %p239
      %p242 = scmp.ne.s32.totalorder %s227, %s241
      %p243 = scmp.eq.s32.totalorder %s30, 0
      %p244 = por %p242, %p243
      %s246 = sadd.s32 %s245, 1
      %p249 = scmp.eq.s32.totalorder %s24, 3
      %p250 = scmp.ne.s32.totalorder %s245, %s247
      %p251 = scmp.eq.s32.totalorder %s24, 0
      %p252 = por %p250, %p251
      %p253 = scmp.ne.s32.totalorder %s245, %s247
      %p254 = scmp.eq.s32.totalorder %s29, 3
      %p255 = por %p253, %p254
      %p256 = scmp.ne.s32.totalorder %s247, %s248
      %p257 = scmp.eq.s32.totalorder %s29, 0
      %p258 = por %p256, %p257
      %p259 = scmp.ne.s32.totalorder %s247, %s248
      %p260 = scmp.eq.s32.totalorder %s30, 3
      %p261 = por %p259, %p260
      %p263 = scmp.ne.s32.totalorder %s248, %s262
      %p264 = scmp.eq.s32.totalorder %s30, 0
      %p265 = por %p263, %p264
      %s266 = ssub.s32 %s32, %s39
      %s267 = ssub.s32 %s31, %s43
      %s268 = sor.u32 %s266, %s267
      %p269 = scmp.eq.s32.totalorder %s268, 0
      %s271 = sadd.s32 %s270, 1
      %s272 = scalar_select %p269, %s270, %s271
      %p275 = pneg %p269
      %p276 = scmp.eq.s32.totalorder %s24, 3
      %p277 = por %p275, %p276
      %p278 = scmp.ne.s32.totalorder %s270, %s273
      %p279 = scmp.eq.s32.totalorder %s24, 0
      %p280 = por %p278, %p279
      %p281 = scmp.ne.s32.totalorder %s270, %s273
      %p282 = scmp.eq.s32.totalorder %s29, 3
      %p283 = por %p281, %p282
      %p284 = scmp.ne.s32.totalorder %s273, %s274
      %p285 = scmp.eq.s32.totalorder %s29, 0
      %p286 = por %p284, %p285
      %p287 = scmp.ne.s32.totalorder %s273, %s274
      %p288 = scmp.eq.s32.totalorder %s30, 3
      %p289 = por %p287, %p288
      %p291 = scmp.ne.s32.totalorder %s274, %s290
      %p292 = scmp.eq.s32.totalorder %s30, 0
      %p293 = por %p291, %p292
      %p294 = scmp.le.s32.totalorder 1, %s24
      %p295 = scmp.lt.s32.totalorder %s24, 5
      %p296 = pnand %p294, %p295
      %p297 = pneg %p296
      // Predicated region
      $region9: #{tpu_custom_call.1} parent=5 // pred_check
        _
      $region10: #{tpu_custom_call.1} parent=5 // pred_check_branch
        %299 = sbr.rel (%p296) target = $region12
      $region11: #{tpu_custom_call.1} parent=5 // pred_region
        %s300 = ssub.s32 %s24, 1
        // Predicated region
        $region13: #{tpu_custom_call.1} parent=11 // pred_check
          %p301 = pneg %p85
        $region14: #{tpu_custom_call.1} parent=11 // pred_check_branch
          %303 = sbr.rel (%p301) target = $region16
        $region15: #{tpu_custom_call.1} parent=11 // pred_region
          %s305 = ssub.s32 1024, 1024
          %306 = vsyncadd [#allocation6], %s305
          %s307 = sshll.u32 [#allocation5], 4
          %s308 = int_to_ptr.vmem [resolvable:$true] %s307
          %313 = dma.hbm_to_vmem [thread:$0]  %s1, 1024, %s308, [#allocation6], 64, 64, 4
        $region16: #{tpu_custom_call.1} parent=11 // pred_fallthru
          _
        // Predicated region
        $region17: #{tpu_custom_call.1} parent=11 // pred_check
          %p314 = pneg %p106
        $region18: #{tpu_custom_call.1} parent=11 // pred_check_branch
          %316 = sbr.rel (%p314) target = $region20
        $region19: #{tpu_custom_call.1} parent=11 // pred_region
          %s318 = ssub.s32 1024, 1024
          %319 = vsyncadd [#allocation6], %s318
          %s320 = sshll.u32 [#allocation7], 4
          %s321 = int_to_ptr.vmem [resolvable:$true] %s320
          %326 = dma.hbm_to_vmem [thread:$0]  %s2, 1024, %s321, [#allocation6], 64, 64, 4
        $region20: #{tpu_custom_call.1} parent=11 // pred_fallthru
          _
        // Predicated region
        $region21: #{tpu_custom_call.1} parent=11 // pred_check
          %p327 = pneg %p127
        $region22: #{tpu_custom_call.1} parent=11 // pred_check_branch
          %329 = sbr.rel (%p327) target = $region24
        $region23: #{tpu_custom_call.1} parent=11 // pred_region
          %s331 = ssub.s32 1024, 1024
          %332 = vsyncadd [#allocation9], %s331
          %s333 = sshll.u32 [#allocation8], 4
          %s334 = int_to_ptr.vmem [resolvable:$true] %s333
          %339 = dma.hbm_to_vmem [thread:$0]  %s3, 1024, %s334, [#allocation9], 64, 64, 4
        $region24: #{tpu_custom_call.1} parent=11 // pred_fallthru
          _
        // Predicated region
        $region25: #{tpu_custom_call.1} parent=11 // pred_check
          %p340 = pneg %p148
        $region26: #{tpu_custom_call.1} parent=11 // pred_check_branch
          %342 = sbr.rel (%p340) target = $region28
        $region27: #{tpu_custom_call.1} parent=11 // pred_region
          _
        $region28: #{tpu_custom_call.1} parent=11 // pred_fallthru
          _
        // Predicated region
        $region29: #{tpu_custom_call.1} parent=11 // pred_check
          %p343 = pneg %p169
        $region30: #{tpu_custom_call.1} parent=11 // pred_check_branch
          %345 = sbr.rel (%p343) target = $region32
        $region31: #{tpu_custom_call.1} parent=11 // pred_region
          _
        $region32: #{tpu_custom_call.1} parent=11 // pred_fallthru
          _
        // Predicated region
        $region33: #{tpu_custom_call.1} parent=11 // pred_check
          %p346 = pneg %p190
        $region34: #{tpu_custom_call.1} parent=11 // pred_check_branch
          %348 = sbr.rel (%p346) target = $region36
        $region35: #{tpu_custom_call.1} parent=11 // pred_region
          _
        $region36: #{tpu_custom_call.1} parent=11 // pred_fallthru
          _
        // Predicated region
        $region37: #{tpu_custom_call.1} parent=11 // pred_check
          %p349 = pneg %p237
        $region38: #{tpu_custom_call.1} parent=11 // pred_check_branch
          %351 = sbr.rel (%p349) target = $region40
        $region39: #{tpu_custom_call.1} parent=11 // pred_region
          %s353 = ssub.s32 1024, 1024
          %354 = vsyncadd [#allocation6], %s353
          %s355 = sshll.u32 [#allocation11], 4
          %s356 = int_to_ptr.vmem [resolvable:$true] %s355
          %361 = dma.hbm_to_vmem [thread:$0]  %s8, 1024, %s356, [#allocation6], 64, 64, 4
        $region40: #{tpu_custom_call.1} parent=11 // pred_fallthru
          _
        // Predicated region
        $region41: #{tpu_custom_call.1} parent=11 // pred_check
          %p362 = pneg %p258
        $region42: #{tpu_custom_call.1} parent=11 // pred_check_branch
          %364 = sbr.rel (%p362) target = $region44
        $region43: #{tpu_custom_call.1} parent=11 // pred_region
          _
        $region44: #{tpu_custom_call.1} parent=11 // pred_fallthru
          _
      $region12: #{tpu_custom_call.1} parent=5 // pred_fallthru
        _
      %p365 = scmp.lt.s32.totalorder %s24, 4
      // Predicated region
      $region45: #{tpu_custom_call.1} parent=5 // pred_check
        %p366 = pneg %p365
      $region46: #{tpu_custom_call.1} parent=5 // pred_check_branch
        %368 = sbr.rel (%p366) target = $region48
      $region47: #{tpu_custom_call.1} parent=5 // pred_region
        // Predicated region
        $region49: #{tpu_custom_call.1} parent=47 // pred_check
          %p369 = pneg %p58
        $region50: #{tpu_custom_call.1} parent=47 // pred_check_branch
          %371 = sbr.rel (%p369) target = $region52
        $region51: #{tpu_custom_call.1} parent=47 // pred_region
          #allocation14 [shape = 'u32[6]{0}', space=smem, size = 0x18, scoped, tag = 'DMA stride descriptor']
          %s372 = sand.u32 %s24, 1
          %s373 = scalar_lea.sflag [#allocation3], %s372
          %s374 = sand.u32 %s48, 1
          %s375 = smul.addr %s374, 64
          %s376 = scalar_lea.vmem [#allocation2], %s375
          %s377 = smul.u32 2, %s32
          %s379 = ssub.s32 1024, 1024
          %380 = vsyncadd %s373, %s379
          %s381 = smul.addr %s31, 8
          %s382 = smul.addr %s377, 32
          %s383 = sadd.s32 %s381, %s382
          %s384 = smul.addr %s383, 64
          %s385 = scalar_lea.hbm %s0, %s384
          %s387 = sshll.u32 1, 14
          %s388 = sxor.u32 4294967295, %s387
          %s390 = sld [smem:[#allocation0]]
          %s391 = sadd.s32 2, %s390
          %s393 = sshll.u32 7, 26
          %s394 = sxor.u32 4294967295, %s393
          %s395 = sand.u32 0, %s394
          %s396 = sshll.u32 %s391, 26
          %s397 = sor.u32 %s395, %s396
          %s398 = sshll.u32 %s376, 4
          %s399 = int_to_ptr.vmem [resolvable:$true] %s398
          %405 = sst [smem:[#allocation14]] 2048
          %s406 = scalar_lea.smem [#allocation14], 1
          %407 = sst [smem:[%s406]] 512
          %s408 = scalar_lea.smem [#allocation14], 2
          %409 = sst [smem:[%s408]] 8
          %s410 = scalar_lea.smem [#allocation14], 3
          %411 = sst [smem:[%s410]] 64
          %s412 = scalar_lea.smem [#allocation14], 4
          %413 = sst [smem:[%s412]] 64
          %s414 = scalar_lea.smem [#allocation14], 5
          %415 = sst [smem:[%s414]] 4
          %417 = dma.general %s385, 1024, %s399, %s373, 131072, [#allocation14], %s397, 0
        $region52: #{tpu_custom_call.1} parent=47 // pred_fallthru
          _
        // Predicated region
        $region53: #{tpu_custom_call.1} parent=47 // pred_check
          %p418 = pneg %p210
        $region54: #{tpu_custom_call.1} parent=47 // pred_check_branch
          %420 = sbr.rel (%p418) target = $region56
        $region55: #{tpu_custom_call.1} parent=47 // pred_region
          %s421 = sand.u32 %s24, 1
          %s422 = scalar_lea.sflag [#allocation3], %s421
          %s423 = sand.u32 %s200, 1
          %s424 = smul.addr %s423, 256
          %s425 = scalar_lea.vmem [#allocation10], %s424
          %s427 = ssub.s32 4096, 4096
          %428 = vsyncadd %s422, %s427
          %s429 = smul.addr %s31, 32
          %s430 = smul.addr %s429, 128
          %s431 = scalar_lea.hbm %s7, %s430
          %s432 = sshll.u32 %s425, 4
          %s433 = int_to_ptr.vmem [resolvable:$true] %s432
          %438 = dma.hbm_to_vmem [thread:$0]  %s431, 4096, %s433, %s422, 128, 128, 8
        $region56: #{tpu_custom_call.1} parent=47 // pred_fallthru
          _
      $region48: #{tpu_custom_call.1} parent=5 // pred_fallthru
        _
      %p439 = scmp.le.s32.totalorder 1, %s24
      %p440 = scmp.lt.s32.totalorder %s24, 5
      %p441 = pnand %p439, %p440
      %p442 = pneg %p441
      // Predicated region
      $region57: #{tpu_custom_call.1} parent=5 // pred_check
        _
      $region58: #{tpu_custom_call.1} parent=5 // pred_check_branch
        %444 = sbr.rel (%p441) target = $region60
      $region59: #{tpu_custom_call.1} parent=5 // pred_region
        %s445 = ssub.s32 %s24, 1
        %s446 = sand.u32 %s29, 1
        %s447 = scalar_lea.sflag [#allocation3], %s446
        %s448 = sand.u32 %s51, 1
        %s449 = smul.addr %s448, 64
        %s450 = scalar_lea.vmem [#allocation2], %s449
        // Predicated region
        $region61: #{tpu_custom_call.1} parent=59 // pred_check
          %p451 = pneg %p64
        $region62: #{tpu_custom_call.1} parent=59 // pred_check_branch
          %453 = sbr.rel (%p451) target = $region64
        $region63: #{tpu_custom_call.1} parent=59 // pred_region
          %454 = dma.done %s447, 1024
        $region64: #{tpu_custom_call.1} parent=59 // pred_fallthru
          _
        // Predicated region
        $region65: #{tpu_custom_call.1} parent=59 // pred_check
          %p455 = pneg %p85
        $region66: #{tpu_custom_call.1} parent=59 // pred_check_branch
          %457 = sbr.rel (%p455) target = $region68
        $region67: #{tpu_custom_call.1} parent=59 // pred_region
          %458 = dma.done [#allocation6], 1024
        $region68: #{tpu_custom_call.1} parent=59 // pred_fallthru
          _
        // Predicated region
        $region69: #{tpu_custom_call.1} parent=59 // pred_check
          %p459 = pneg %p106
        $region70: #{tpu_custom_call.1} parent=59 // pred_check_branch
          %461 = sbr.rel (%p459) target = $region72
        $region71: #{tpu_custom_call.1} parent=59 // pred_region
          %462 = dma.done [#allocation6], 1024
        $region72: #{tpu_custom_call.1} parent=59 // pred_fallthru
          _
        // Predicated region
        $region73: #{tpu_custom_call.1} parent=59 // pred_check
          %p463 = pneg %p127
        $region74: #{tpu_custom_call.1} parent=59 // pred_check_branch
          %465 = sbr.rel (%p463) target = $region76
        $region75: #{tpu_custom_call.1} parent=59 // pred_region
          %466 = dma.done [#allocation9], 1024
        $region76: #{tpu_custom_call.1} parent=59 // pred_fallthru
          _
        %s467 = sand.u32 %s29, 1
        %s468 = scalar_lea.sflag [#allocation3], %s467
        %s469 = sand.u32 %s203, 1
        %s470 = smul.addr %s469, 256
        %s471 = scalar_lea.vmem [#allocation10], %s470
        // Predicated region
        $region77: #{tpu_custom_call.1} parent=59 // pred_check
          %p472 = pneg %p216
        $region78: #{tpu_custom_call.1} parent=59 // pred_check_branch
          %474 = sbr.rel (%p472) target = $region80
        $region79: #{tpu_custom_call.1} parent=59 // pred_region
          %475 = dma.done %s468, 4096
        $region80: #{tpu_custom_call.1} parent=59 // pred_fallthru
          _
        // Predicated region
        $region81: #{tpu_custom_call.1} parent=59 // pred_check
          %p476 = pneg %p237
        $region82: #{tpu_custom_call.1} parent=59 // pred_check_branch
          %478 = sbr.rel (%p476) target = $region84
        $region83: #{tpu_custom_call.1} parent=59 // pred_region
          %479 = dma.done [#allocation6], 1024
        $region84: #{tpu_custom_call.1} parent=59 // pred_fallthru
          _
        %s480 = sand.u32 %s29, 1
        %s481 = scalar_lea.sflag [#allocation3], %s480
        %s482 = sand.u32 %s51, 1
        %s483 = smul.addr %s482, 64
        %s484 = scalar_lea.vmem [#allocation2], %s483
        %p485 = pneg %p64
        %p486 = pneg %p61
        %p487 = pneg %p85
        %p488 = pneg %p82
        %p489 = pneg %p106
        %p490 = pneg %p103
        %p491 = pneg %p127
        %p492 = pneg %p124
        %p493 = pneg %p148
        %p494 = pneg %p145
        %p495 = pneg %p169
        %p496 = pneg %p166
        %p497 = pneg %p190
        %p498 = pneg %p187
        %s499 = sand.u32 %s29, 1
        %s500 = scalar_lea.sflag [#allocation3], %s499
        %s501 = sand.u32 %s203, 1
        %s502 = smul.addr %s501, 256
        %s503 = scalar_lea.vmem [#allocation10], %s502
        %p504 = pneg %p216
        %p505 = pneg %p213
        %p506 = pneg %p237
        %p507 = pneg %p234
        %p508 = pneg %p258
        %p509 = pneg %p255
        %p510 = pneg %p286
        %p511 = pneg %p283
        %s512 = sand.u32 %s273, 1
        %s513 = scalar_lea.sflag [#allocation4], %s512
        %s514 = sand.u32 %s273, 1
        %s515 = smul.addr %s514, 128
        %s516 = scalar_lea.vmem [#allocation12], %s515
        %s517 = smul.u32 2, %s34
        %s518 = smul.u32 2, %s34
        %v520 = vld [vmem:[%s450] sm:$0xf]
        %v521 = vld [vmem:[%s450 + $0x4] sm:$0xf]
        %v522 = vld [vmem:[%s450 + $0x8] sm:$0xf]
        %v523 = vld [vmem:[%s450 + $0xc] sm:$0xf]
        %v524 = vld [vmem:[%s450 + $0x10] sm:$0xf]
        %v525 = vld [vmem:[%s450 + $0x14] sm:$0xf]
        %v526 = vld [vmem:[%s450 + $0x18] sm:$0xf]
        %v527 = vld [vmem:[%s450 + $0x1c] sm:$0xf]
        %v528 = vld [vmem:[%s450 + $0x20] sm:$0xf]
        %v529 = vld [vmem:[%s450 + $0x24] sm:$0xf]
        %v530 = vld [vmem:[%s450 + $0x28] sm:$0xf]
        %v531 = vld [vmem:[%s450 + $0x2c] sm:$0xf]
        %v532 = vld [vmem:[%s450 + $0x30] sm:$0xf]
        %v533 = vld [vmem:[%s450 + $0x34] sm:$0xf]
        %v534 = vld [vmem:[%s450 + $0x38] sm:$0xf]
        %v535 = vld [vmem:[%s450 + $0x3c] sm:$0xf]
        %v536 = vld [vmem:[#allocation5] sm:$0xf]
        %v537 = vld [vmem:[#allocation5 + $0x4] sm:$0xf]
        %v538 = vld [vmem:[#allocation5 + $0x8] sm:$0xf]
        %v539 = vld [vmem:[#allocation5 + $0xc] sm:$0xf]
        %v540 = vld [vmem:[#allocation5 + $0x10] sm:$0xf]
        %v541 = vld [vmem:[#allocation5 + $0x14] sm:$0xf]
        %v542 = vld [vmem:[#allocation5 + $0x18] sm:$0xf]
        %v543 = vld [vmem:[#allocation5 + $0x1c] sm:$0xf]
        %v544 = vld [vmem:[#allocation5 + $0x20] sm:$0xf]
        %v545 = vld [vmem:[#allocation5 + $0x24] sm:$0xf]
        %v546 = vld [vmem:[#allocation5 + $0x28] sm:$0xf]
        %v547 = vld [vmem:[#allocation5 + $0x2c] sm:$0xf]
        %v548 = vld [vmem:[#allocation5 + $0x30] sm:$0xf]
        %v549 = vld [vmem:[#allocation5 + $0x34] sm:$0xf]
        %v550 = vld [vmem:[#allocation5 + $0x38] sm:$0xf]
        %v551 = vld [vmem:[#allocation5 + $0x3c] sm:$0xf]
        %v552 = vld [vmem:[%s4] sm:$0x1]
        %v553 = vunpack.c.l.bf16 %v552
        %v554 = vlaneseq
        %v555 = vshrl.u32 %v554, 7
        %v556 = vsub.s32 0, %v555
        %v557 = vrot.slane %v553, %v556
        %v574 = vunpack.c.l.b16 %v520
        %v575 = vunpack.c.l.b16 %v521
        %v576 = vunpack.c.l.b16 %v522
        %v577 = vunpack.c.l.b16 %v523
        %v578 = vunpack.c.l.b16 %v524
        %v579 = vunpack.c.l.b16 %v525
        %v580 = vunpack.c.l.b16 %v526
        %v581 = vunpack.c.l.b16 %v527
        %v582 = vunpack.c.l.b16 %v528
        %v583 = vunpack.c.l.b16 %v529
        %v584 = vunpack.c.l.b16 %v530
        %v585 = vunpack.c.l.b16 %v531
        %v586 = vunpack.c.l.b16 %v532
        %v587 = vunpack.c.l.b16 %v533
        %v588 = vunpack.c.l.b16 %v534
        %v589 = vunpack.c.l.b16 %v535
        %v590 = vpack.c.b16 %v575, %v574
        %v591 = vpack.c.b16 %v577, %v576
        %v592 = vpack.c.b16 %v579, %v578
        %v593 = vpack.c.b16 %v581, %v580
        %v594 = vpack.c.b16 %v583, %v582
        %v595 = vpack.c.b16 %v585, %v584
        %v596 = vpack.c.b16 %v587, %v586
        %v597 = vpack.c.b16 %v589, %v588
        %v622 = vunpack.c.l.b16 %v536
        %v623 = vunpack.c.l.b16 %v537
        %v624 = vunpack.c.l.b16 %v538
        %v625 = vunpack.c.l.b16 %v539
        %v626 = vunpack.c.l.b16 %v540
        %v627 = vunpack.c.l.b16 %v541
        %v628 = vunpack.c.l.b16 %v542
        %v629 = vunpack.c.l.b16 %v543
        %v630 = vunpack.c.l.b16 %v544
        %v631 = vunpack.c.l.b16 %v545
        %v632 = vunpack.c.l.b16 %v546
        %v633 = vunpack.c.l.b16 %v547
        %v634 = vunpack.c.l.b16 %v548
        %v635 = vunpack.c.l.b16 %v549
        %v636 = vunpack.c.l.b16 %v550
        %v637 = vunpack.c.l.b16 %v551
        %v638 = vpack.c.b16 %v623, %v622
        %v639 = vpack.c.b16 %v625, %v624
        %v640 = vpack.c.b16 %v627, %v626
        %v641 = vpack.c.b16 %v629, %v628
        %v642 = vpack.c.b16 %v631, %v630
        %v643 = vpack.c.b16 %v633, %v632
        %v644 = vpack.c.b16 %v635, %v634
        %v645 = vpack.c.b16 %v637, %v636
        %654 = vmatprep.subr.bf16.mxu0 0
        %655 = vmatpush1.bf16.msra.mxu0 %v645
        %656 = vmatprep.subr.bf16.mxu0 0
        %657 = vmatpush1.bf16.msra.mxu0 %v644
        %658 = vmatprep.subr.bf16.mxu0 0
        %659 = vmatpush1.bf16.msra.mxu0 %v643
        %660 = vmatprep.subr.bf16.mxu0 0
        %661 = vmatpush1.bf16.msra.mxu0 %v642
        %662 = vmatprep.subr.bf16.mxu0 0
        %663 = vmatpush1.bf16.msra.mxu0 %v641
        %664 = vmatprep.subr.bf16.mxu0 0
        %665 = vmatpush1.bf16.msra.mxu0 %v640
        %666 = vmatprep.subr.bf16.mxu0 0
        %667 = vmatpush1.bf16.msra.mxu0 %v639
        %668 = vmatprep.subr.bf16.mxu0 0
        %669 = vmatpush1.bf16.msra.mxu0 %v638
        %670 = vmatprep.subr.bf16.mxu0 0
        %671 = vmatpush2.bf16.msra.mxu0 0
        %672 = vmatprep.subr.bf16.mxu0 0
        %673 = vmatpush2.bf16.msra.mxu0 0
        %674 = vmatprep.subr.bf16.mxu0 0
        %675 = vmatpush2.bf16.msra.mxu0 0
        %676 = vmatprep.subr.bf16.mxu0 0
        %677 = vmatpush2.bf16.msra.mxu0 0
        %678 = vmatprep.subr.bf16.mxu0 0
        %679 = vmatpush2.bf16.msra.mxu0 0
        %680 = vmatprep.subr.bf16.mxu0 0
        %681 = vmatpush2.bf16.msra.mxu0 0
        %682 = vmatprep.subr.bf16.mxu0 0
        %683 = vmatpush2.bf16.msra.mxu0 0
        %684 = vmatprep.subr.bf16.mxu0 0
        %685 = vmatpush2.bf16.msra.mxu0 0
        %686 = vmatprep.mubr.bf16.mxu0 0
        %687 = vmatmul.mubr.bf16.gmra.mxu0 %v590
        %v688 = vpop.f32.mrf.mxu0
        %v689 = vadd.f32 %v557, %v688
        %v690 = vpop.f32.mrf.mxu0
        %v691 = vpop.f32.mrf.mxu0
        %v692 = vadd.f32 %v557, %v691
        %v693 = vpop.f32.mrf.mxu0
        %694 = vmatprep.mubr.bf16.mxu0 0
        %695 = vmatmul.mubr.bf16.gmra.mxu0 %v591
        %v696 = vpop.f32.mrf.mxu0
        %v697 = vadd.f32 %v557, %v696
        %v698 = vpop.f32.mrf.mxu0
        %v699 = vpop.f32.mrf.mxu0
        %v700 = vadd.f32 %v557, %v699
        %v701 = vpop.f32.mrf.mxu0
        %702 = vmatprep.mubr.bf16.mxu0 0
        %703 = vmatmul.mubr.bf16.gmra.mxu0 %v592
        %v704 = vpop.f32.mrf.mxu0
        %v705 = vadd.f32 %v557, %v704
        %v706 = vpop.f32.mrf.mxu0
        %v707 = vpop.f32.mrf.mxu0
        %v708 = vadd.f32 %v557, %v707
        %v709 = vpop.f32.mrf.mxu0
        %710 = vmatprep.mubr.bf16.mxu0 0
        %711 = vmatmul.mubr.bf16.gmra.mxu0 %v593
        %v712 = vpop.f32.mrf.mxu0
        %v713 = vadd.f32 %v557, %v712
        %v714 = vpop.f32.mrf.mxu0
        %v715 = vpop.f32.mrf.mxu0
        %v716 = vadd.f32 %v557, %v715
        %v717 = vpop.f32.mrf.mxu0
        %718 = vmatprep.mubr.bf16.mxu0 0
        %719 = vmatmul.mubr.bf16.gmra.mxu0 %v594
        %v720 = vpop.f32.mrf.mxu0
        %v721 = vadd.f32 %v557, %v720
        %v722 = vpop.f32.mrf.mxu0
        %v723 = vpop.f32.mrf.mxu0
        %v724 = vadd.f32 %v557, %v723
        %v725 = vpop.f32.mrf.mxu0
        %726 = vmatprep.mubr.bf16.mxu0 0
        %727 = vmatmul.mubr.bf16.gmra.mxu0 %v595
        %v728 = vpop.f32.mrf.mxu0
        %v729 = vadd.f32 %v557, %v728
        %v730 = vpop.f32.mrf.mxu0
        %v731 = vpop.f32.mrf.mxu0
        %v732 = vadd.f32 %v557, %v731
        %v733 = vpop.f32.mrf.mxu0
        %734 = vmatprep.mubr.bf16.mxu0 0
        %735 = vmatmul.mubr.bf16.gmra.mxu0 %v596
        %v736 = vpop.f32.mrf.mxu0
        %v737 = vadd.f32 %v557, %v736
        %v738 = vpop.f32.mrf.mxu0
        %v739 = vpop.f32.mrf.mxu0
        %v740 = vadd.f32 %v557, %v739
        %v741 = vpop.f32.mrf.mxu0
        %742 = vmatprep.mubr.bf16.mxu0 0
        %743 = vmatmul.mubr.bf16.gmra.mxu0 %v597
        %v744 = vpop.f32.mrf.mxu0
        %v745 = vadd.f32 %v557, %v744
        %v746 = vpop.f32.mrf.mxu0
        %v747 = vpop.f32.mrf.mxu0
        %v748 = vadd.f32 %v557, %v747
        %v749 = vpop.f32.mrf.mxu0
        %750 = vdwg.mxu0
        %v751 = vld [vmem:[#allocation7] sm:$0xf]
        %v752 = vld [vmem:[#allocation7 + $0x4] sm:$0xf]
        %v753 = vld [vmem:[#allocation7 + $0x8] sm:$0xf]
        %v754 = vld [vmem:[#allocation7 + $0xc] sm:$0xf]
        %v755 = vld [vmem:[#allocation7 + $0x10] sm:$0xf]
        %v756 = vld [vmem:[#allocation7 + $0x14] sm:$0xf]
        %v757 = vld [vmem:[#allocation7 + $0x18] sm:$0xf]
        %v758 = vld [vmem:[#allocation7 + $0x1c] sm:$0xf]
        %v759 = vld [vmem:[#allocation7 + $0x20] sm:$0xf]
        %v760 = vld [vmem:[#allocation7 + $0x24] sm:$0xf]
        %v761 = vld [vmem:[#allocation7 + $0x28] sm:$0xf]
        %v762 = vld [vmem:[#allocation7 + $0x2c] sm:$0xf]
        %v763 = vld [vmem:[#allocation7 + $0x30] sm:$0xf]
        %v764 = vld [vmem:[#allocation7 + $0x34] sm:$0xf]
        %v765 = vld [vmem:[#allocation7 + $0x38] sm:$0xf]
        %v766 = vld [vmem:[#allocation7 + $0x3c] sm:$0xf]
        %v767 = vld [vmem:[%s5] sm:$0x1]
        %v768 = vunpack.c.l.bf16 %v767
        %v769 = vlaneseq
        %v770 = vshrl.u32 %v769, 7
        %v771 = vsub.s32 0, %v770
        %v772 = vrot.slane %v768, %v771
        %v789 = vunpack.c.l.b16 %v751
        %v790 = vunpack.c.l.b16 %v752
        %v791 = vunpack.c.l.b16 %v753
        %v792 = vunpack.c.l.b16 %v754
        %v793 = vunpack.c.l.b16 %v755
        %v794 = vunpack.c.l.b16 %v756
        %v795 = vunpack.c.l.b16 %v757
        %v796 = vunpack.c.l.b16 %v758
        %v797 = vunpack.c.l.b16 %v759
        %v798 = vunpack.c.l.b16 %v760
        %v799 = vunpack.c.l.b16 %v761
        %v800 = vunpack.c.l.b16 %v762
        %v801 = vunpack.c.l.b16 %v763
        %v802 = vunpack.c.l.b16 %v764
        %v803 = vunpack.c.l.b16 %v765
        %v804 = vunpack.c.l.b16 %v766
        %v805 = vpack.c.b16 %v790, %v789
        %v806 = vpack.c.b16 %v792, %v791
        %v807 = vpack.c.b16 %v794, %v793
        %v808 = vpack.c.b16 %v796, %v795
        %v809 = vpack.c.b16 %v798, %v797
        %v810 = vpack.c.b16 %v800, %v799
        %v811 = vpack.c.b16 %v802, %v801
        %v812 = vpack.c.b16 %v804, %v803
        %821 = vmatprep.subr.bf16.mxu0 0
        %822 = vmatpush1.bf16.msra.mxu0 %v812
        %823 = vmatprep.subr.bf16.mxu0 0
        %824 = vmatpush1.bf16.msra.mxu0 %v811
        %825 = vmatprep.subr.bf16.mxu0 0
        %826 = vmatpush1.bf16.msra.mxu0 %v810
        %827 = vmatprep.subr.bf16.mxu0 0
        %828 = vmatpush1.bf16.msra.mxu0 %v809
        %829 = vmatprep.subr.bf16.mxu0 0
        %830 = vmatpush1.bf16.msra.mxu0 %v808
        %831 = vmatprep.subr.bf16.mxu0 0
        %832 = vmatpush1.bf16.msra.mxu0 %v807
        %833 = vmatprep.subr.bf16.mxu0 0
        %834 = vmatpush1.bf16.msra.mxu0 %v806
        %835 = vmatprep.subr.bf16.mxu0 0
        %836 = vmatpush1.bf16.msra.mxu0 %v805
        %837 = vmatprep.subr.bf16.mxu0 0
        %838 = vmatpush2.bf16.msra.mxu0 0
        %839 = vmatprep.subr.bf16.mxu0 0
        %840 = vmatpush2.bf16.msra.mxu0 0
        %841 = vmatprep.subr.bf16.mxu0 0
        %842 = vmatpush2.bf16.msra.mxu0 0
        %843 = vmatprep.subr.bf16.mxu0 0
        %844 = vmatpush2.bf16.msra.mxu0 0
        %845 = vmatprep.subr.bf16.mxu0 0
        %846 = vmatpush2.bf16.msra.mxu0 0
        %847 = vmatprep.subr.bf16.mxu0 0
        %848 = vmatpush2.bf16.msra.mxu0 0
        %849 = vmatprep.subr.bf16.mxu0 0
        %850 = vmatpush2.bf16.msra.mxu0 0
        %851 = vmatprep.subr.bf16.mxu0 0
        %852 = vmatpush2.bf16.msra.mxu0 0
        %853 = vmatprep.mubr.bf16.mxu0 0
        %854 = vmatmul.mubr.bf16.gmra.mxu0 %v590
        %v855 = vpop.f32.mrf.mxu0
        %v856 = vadd.f32 %v772, %v855
        %v857 = vpop.f32.mrf.mxu0
        %v858 = vpop.f32.mrf.mxu0
        %v859 = vadd.f32 %v772, %v858
        %v860 = vpop.f32.mrf.mxu0
        %861 = vmatprep.mubr.bf16.mxu0 0
        %862 = vmatmul.mubr.bf16.gmra.mxu0 %v591
        %v863 = vpop.f32.mrf.mxu0
        %v864 = vadd.f32 %v772, %v863
        %v865 = vpop.f32.mrf.mxu0
        %v866 = vpop.f32.mrf.mxu0
        %v867 = vadd.f32 %v772, %v866
        %v868 = vpop.f32.mrf.mxu0
        %869 = vmatprep.mubr.bf16.mxu0 0
        %870 = vmatmul.mubr.bf16.gmra.mxu0 %v592
        %v871 = vpop.f32.mrf.mxu0
        %v872 = vadd.f32 %v772, %v871
        %v873 = vpop.f32.mrf.mxu0
        %v874 = vpop.f32.mrf.mxu0
        %v875 = vadd.f32 %v772, %v874
        %v876 = vpop.f32.mrf.mxu0
        %877 = vmatprep.mubr.bf16.mxu0 0
        %878 = vmatmul.mubr.bf16.gmra.mxu0 %v593
        %v879 = vpop.f32.mrf.mxu0
        %v880 = vadd.f32 %v772, %v879
        %v881 = vpop.f32.mrf.mxu0
        %v882 = vpop.f32.mrf.mxu0
        %v883 = vadd.f32 %v772, %v882
        %v884 = vpop.f32.mrf.mxu0
        %885 = vmatprep.mubr.bf16.mxu0 0
        %886 = vmatmul.mubr.bf16.gmra.mxu0 %v594
        %v887 = vpop.f32.mrf.mxu0
        %v888 = vadd.f32 %v772, %v887
        %v889 = vpop.f32.mrf.mxu0
        %v890 = vpop.f32.mrf.mxu0
        %v891 = vadd.f32 %v772, %v890
        %v892 = vpop.f32.mrf.mxu0
        %893 = vmatprep.mubr.bf16.mxu0 0
        %894 = vmatmul.mubr.bf16.gmra.mxu0 %v595
        %v895 = vpop.f32.mrf.mxu0
        %v896 = vadd.f32 %v772, %v895
        %v897 = vpop.f32.mrf.mxu0
        %v898 = vpop.f32.mrf.mxu0
        %v899 = vadd.f32 %v772, %v898
        %v900 = vpop.f32.mrf.mxu0
        %901 = vmatprep.mubr.bf16.mxu0 0
        %902 = vmatmul.mubr.bf16.gmra.mxu0 %v596
        %v903 = vpop.f32.mrf.mxu0
        %v904 = vadd.f32 %v772, %v903
        %v905 = vpop.f32.mrf.mxu0
        %v906 = vpop.f32.mrf.mxu0
        %v907 = vadd.f32 %v772, %v906
        %v908 = vpop.f32.mrf.mxu0
        %909 = vmatprep.mubr.bf16.mxu0 0
        %910 = vmatmul.mubr.bf16.gmra.mxu0 %v597
        %v911 = vpop.f32.mrf.mxu0
        %v912 = vadd.f32 %v772, %v911
        %v913 = vpop.f32.mrf.mxu0
        %v914 = vpop.f32.mrf.mxu0
        %v915 = vadd.f32 %v772, %v914
        %v916 = vpop.f32.mrf.mxu0
        %917 = vdwg.mxu0
        %v918 = vld [vmem:[#allocation8] sm:$0xf]
        %v919 = vld [vmem:[#allocation8 + $0x4] sm:$0xf]
        %v920 = vld [vmem:[#allocation8 + $0x8] sm:$0xf]
        %v921 = vld [vmem:[#allocation8 + $0xc] sm:$0xf]
        %v922 = vld [vmem:[#allocation8 + $0x10] sm:$0xf]
        %v923 = vld [vmem:[#allocation8 + $0x14] sm:$0xf]
        %v924 = vld [vmem:[#allocation8 + $0x18] sm:$0xf]
        %v925 = vld [vmem:[#allocation8 + $0x1c] sm:$0xf]
        %v926 = vld [vmem:[#allocation8 + $0x20] sm:$0xf]
        %v927 = vld [vmem:[#allocation8 + $0x24] sm:$0xf]
        %v928 = vld [vmem:[#allocation8 + $0x28] sm:$0xf]
        %v929 = vld [vmem:[#allocation8 + $0x2c] sm:$0xf]
        %v930 = vld [vmem:[#allocation8 + $0x30] sm:$0xf]
        %v931 = vld [vmem:[#allocation8 + $0x34] sm:$0xf]
        %v932 = vld [vmem:[#allocation8 + $0x38] sm:$0xf]
        %v933 = vld [vmem:[#allocation8 + $0x3c] sm:$0xf]
        %v934 = vld [vmem:[%s6] sm:$0x1]
        %v935 = vunpack.c.l.bf16 %v934
        %v936 = vlaneseq
        %v937 = vshrl.u32 %v936, 7
        %v938 = vsub.s32 0, %v937
        %v939 = vrot.slane %v935, %v938
        %v956 = vunpack.c.l.b16 %v918
        %v957 = vunpack.c.l.b16 %v919
        %v958 = vunpack.c.l.b16 %v920
        %v959 = vunpack.c.l.b16 %v921
        %v960 = vunpack.c.l.b16 %v922
        %v961 = vunpack.c.l.b16 %v923
        %v962 = vunpack.c.l.b16 %v924
        %v963 = vunpack.c.l.b16 %v925
        %v964 = vunpack.c.l.b16 %v926
        %v965 = vunpack.c.l.b16 %v927
        %v966 = vunpack.c.l.b16 %v928
        %v967 = vunpack.c.l.b16 %v929
        %v968 = vunpack.c.l.b16 %v930
        %v969 = vunpack.c.l.b16 %v931
        %v970 = vunpack.c.l.b16 %v932
        %v971 = vunpack.c.l.b16 %v933
        %v972 = vpack.c.b16 %v957, %v956
        %v973 = vpack.c.b16 %v959, %v958
        %v974 = vpack.c.b16 %v961, %v960
        %v975 = vpack.c.b16 %v963, %v962
        %v976 = vpack.c.b16 %v965, %v964
        %v977 = vpack.c.b16 %v967, %v966
        %v978 = vpack.c.b16 %v969, %v968
        %v979 = vpack.c.b16 %v971, %v970
        %988 = vmatprep.subr.bf16.mxu0 0
        %989 = vmatpush1.bf16.msra.mxu0 %v979
        %990 = vmatprep.subr.bf16.mxu0 0
        %991 = vmatpush1.bf16.msra.mxu0 %v978
        %992 = vmatprep.subr.bf16.mxu0 0
        %993 = vmatpush1.bf16.msra.mxu0 %v977
        %994 = vmatprep.subr.bf16.mxu0 0
        %995 = vmatpush1.bf16.msra.mxu0 %v976
        %996 = vmatprep.subr.bf16.mxu0 0
        %997 = vmatpush1.bf16.msra.mxu0 %v975
        %998 = vmatprep.subr.bf16.mxu0 0
        %999 = vmatpush1.bf16.msra.mxu0 %v974
        %1000 = vmatprep.subr.bf16.mxu0 0
        %1001 = vmatpush1.bf16.msra.mxu0 %v973
        %1002 = vmatprep.subr.bf16.mxu0 0
        %1003 = vmatpush1.bf16.msra.mxu0 %v972
        %1004 = vmatprep.subr.bf16.mxu0 0
        %1005 = vmatpush2.bf16.msra.mxu0 0
        %1006 = vmatprep.subr.bf16.mxu0 0
        %1007 = vmatpush2.bf16.msra.mxu0 0
        %1008 = vmatprep.subr.bf16.mxu0 0
        %1009 = vmatpush2.bf16.msra.mxu0 0
        %1010 = vmatprep.subr.bf16.mxu0 0
        %1011 = vmatpush2.bf16.msra.mxu0 0
        %1012 = vmatprep.subr.bf16.mxu0 0
        %1013 = vmatpush2.bf16.msra.mxu0 0
        %1014 = vmatprep.subr.bf16.mxu0 0
        %1015 = vmatpush2.bf16.msra.mxu0 0
        %1016 = vmatprep.subr.bf16.mxu0 0
        %1017 = vmatpush2.bf16.msra.mxu0 0
        %1018 = vmatprep.subr.bf16.mxu0 0
        %1019 = vmatpush2.bf16.msra.mxu0 0
        %1020 = vmatprep.mubr.bf16.mxu0 0
        %1021 = vmatmul.mubr.bf16.gmra.mxu0 %v590
        %v1022 = vpop.f32.mrf.mxu0
        %v1023 = vadd.f32 %v939, %v1022
        %v1024 = vpop.f32.mrf.mxu0
        %v1025 = vpop.f32.mrf.mxu0
        %v1026 = vadd.f32 %v939, %v1025
        %v1027 = vpop.f32.mrf.mxu0
        %1028 = vmatprep.mubr.bf16.mxu0 0
        %1029 = vmatmul.mubr.bf16.gmra.mxu0 %v591
        %v1030 = vpop.f32.mrf.mxu0
        %v1031 = vadd.f32 %v939, %v1030
        %v1032 = vpop.f32.mrf.mxu0
        %v1033 = vpop.f32.mrf.mxu0
        %v1034 = vadd.f32 %v939, %v1033
        %v1035 = vpop.f32.mrf.mxu0
        %1036 = vmatprep.mubr.bf16.mxu0 0
        %1037 = vmatmul.mubr.bf16.gmra.mxu0 %v592
        %v1038 = vpop.f32.mrf.mxu0
        %v1039 = vadd.f32 %v939, %v1038
        %v1040 = vpop.f32.mrf.mxu0
        %v1041 = vpop.f32.mrf.mxu0
        %v1042 = vadd.f32 %v939, %v1041
        %v1043 = vpop.f32.mrf.mxu0
        %1044 = vmatprep.mubr.bf16.mxu0 0
        %1045 = vmatmul.mubr.bf16.gmra.mxu0 %v593
        %v1046 = vpop.f32.mrf.mxu0
        %v1047 = vadd.f32 %v939, %v1046
        %v1048 = vpop.f32.mrf.mxu0
        %v1049 = vpop.f32.mrf.mxu0
        %v1050 = vadd.f32 %v939, %v1049
        %v1051 = vpop.f32.mrf.mxu0
        %1052 = vmatprep.mubr.bf16.mxu0 0
        %1053 = vmatmul.mubr.bf16.gmra.mxu0 %v594
        %v1054 = vpop.f32.mrf.mxu0
        %v1055 = vadd.f32 %v939, %v1054
        %v1056 = vpop.f32.mrf.mxu0
        %v1057 = vpop.f32.mrf.mxu0
        %v1058 = vadd.f32 %v939, %v1057
        %v1059 = vpop.f32.mrf.mxu0
        %1060 = vmatprep.mubr.bf16.mxu0 0
        %1061 = vmatmul.mubr.bf16.gmra.mxu0 %v595
        %v1062 = vpop.f32.mrf.mxu0
        %v1063 = vadd.f32 %v939, %v1062
        %v1064 = vpop.f32.mrf.mxu0
        %v1065 = vpop.f32.mrf.mxu0
        %v1066 = vadd.f32 %v939, %v1065
        %v1067 = vpop.f32.mrf.mxu0
        %1068 = vmatprep.mubr.bf16.mxu0 0
        %1069 = vmatmul.mubr.bf16.gmra.mxu0 %v596
        %v1070 = vpop.f32.mrf.mxu0
        %v1071 = vadd.f32 %v939, %v1070
        %v1072 = vpop.f32.mrf.mxu0
        %v1073 = vpop.f32.mrf.mxu0
        %v1074 = vadd.f32 %v939, %v1073
        %v1075 = vpop.f32.mrf.mxu0
        %1076 = vmatprep.mubr.bf16.mxu0 0
        %1077 = vmatmul.mubr.bf16.gmra.mxu0 %v597
        %v1078 = vpop.f32.mrf.mxu0
        %v1079 = vadd.f32 %v939, %v1078
        %v1080 = vpop.f32.mrf.mxu0
        %v1081 = vpop.f32.mrf.mxu0
        %v1082 = vadd.f32 %v939, %v1081
        %v1083 = vpop.f32.mrf.mxu0
        %1084 = vdwg.mxu0
        %v1085 = vpack.c.bf16 %v692, %v689
        %v1086 = vpack.c.bf16 %v700, %v697
        %v1087 = vpack.c.bf16 %v708, %v705
        %v1088 = vpack.c.bf16 %v716, %v713
        %v1089 = vpack.c.bf16 %v724, %v721
        %v1090 = vpack.c.bf16 %v732, %v729
        %v1091 = vpack.c.bf16 %v740, %v737
        %v1092 = vpack.c.bf16 %v748, %v745
        %v1093 = vpack.c.bf16 %v859, %v856
        %v1094 = vpack.c.bf16 %v867, %v864
        %v1095 = vpack.c.bf16 %v875, %v872
        %v1096 = vpack.c.bf16 %v883, %v880
        %v1097 = vpack.c.bf16 %v891, %v888
        %v1098 = vpack.c.bf16 %v899, %v896
        %v1099 = vpack.c.bf16 %v907, %v904
        %v1100 = vpack.c.bf16 %v915, %v912
        %v1101 = vpack.c.bf16 %v1026, %v1023
        %v1102 = vpack.c.bf16 %v1034, %v1031
        %v1103 = vpack.c.bf16 %v1042, %v1039
        %v1104 = vpack.c.bf16 %v1050, %v1047
        %v1105 = vpack.c.bf16 %v1058, %v1055
        %v1106 = vpack.c.bf16 %v1066, %v1063
        %v1107 = vpack.c.bf16 %v1074, %v1071
        %v1108 = vpack.c.bf16 %v1082, %v1079
        %1117 = vrot.lane.b32.xlu0 %v1085, 96
        %v1118 = vpop.permute.xlu0 %1117
        %1119 = vrot.lane.b32.xlu0 %v1086, 96
        %v1120 = vpop.permute.xlu0 %1119
        %1121 = vrot.lane.b32.xlu0 %v1087, 96
        %v1122 = vpop.permute.xlu0 %1121
        %1123 = vrot.lane.b32.xlu0 %v1088, 96
        %v1124 = vpop.permute.xlu0 %1123
        %1125 = vrot.lane.b32.xlu0 %v1089, 96
        %v1126 = vpop.permute.xlu0 %1125
        %1127 = vrot.lane.b32.xlu0 %v1090, 96
        %v1128 = vpop.permute.xlu0 %1127
        %1129 = vrot.lane.b32.xlu0 %v1091, 96
        %v1130 = vpop.permute.xlu0 %1129
        %1131 = vrot.lane.b32.xlu0 %v1092, 96
        %v1132 = vpop.permute.xlu0 %1131
        %1133 = vrot.lane.b32.xlu0 %v1085, 64
        %v1134 = vpop.permute.xlu0 %1133
        %1135 = vrot.lane.b32.xlu0 %v1086, 64
        %v1136 = vpop.permute.xlu0 %1135
        %1137 = vrot.lane.b32.xlu0 %v1087, 64
        %v1138 = vpop.permute.xlu0 %1137
        %1139 = vrot.lane.b32.xlu0 %v1088, 64
        %v1140 = vpop.permute.xlu0 %1139
        %1141 = vrot.lane.b32.xlu0 %v1089, 64
        %v1142 = vpop.permute.xlu0 %1141
        %1143 = vrot.lane.b32.xlu0 %v1090, 64
        %v1144 = vpop.permute.xlu0 %1143
        %1145 = vrot.lane.b32.xlu0 %v1091, 64
        %v1146 = vpop.permute.xlu0 %1145
        %1147 = vrot.lane.b32.xlu0 %v1092, 64
        %v1148 = vpop.permute.xlu0 %1147
        %1149 = vrot.lane.b32.xlu0 %v1085, 32
        %v1150 = vpop.permute.xlu0 %1149
        %1151 = vrot.lane.b32.xlu0 %v1086, 32
        %v1152 = vpop.permute.xlu0 %1151
        %1153 = vrot.lane.b32.xlu0 %v1087, 32
        %v1154 = vpop.permute.xlu0 %1153
        %1155 = vrot.lane.b32.xlu0 %v1088, 32
        %v1156 = vpop.permute.xlu0 %1155
        %1157 = vrot.lane.b32.xlu0 %v1089, 32
        %v1158 = vpop.permute.xlu0 %1157
        %1159 = vrot.lane.b32.xlu0 %v1090, 32
        %v1160 = vpop.permute.xlu0 %1159
        %1161 = vrot.lane.b32.xlu0 %v1091, 32
        %v1162 = vpop.permute.xlu0 %1161
        %1163 = vrot.lane.b32.xlu0 %v1092, 32
        %v1164 = vpop.permute.xlu0 %1163
        %1173 = vrot.lane.b32.xlu0 %v1093, 96
        %v1174 = vpop.permute.xlu0 %1173
        %1175 = vrot.lane.b32.xlu0 %v1094, 96
        %v1176 = vpop.permute.xlu0 %1175
        %1177 = vrot.lane.b32.xlu0 %v1095, 96
        %v1178 = vpop.permute.xlu0 %1177
        %1179 = vrot.lane.b32.xlu0 %v1096, 96
        %v1180 = vpop.permute.xlu0 %1179
        %1181 = vrot.lane.b32.xlu0 %v1097, 96
        %v1182 = vpop.permute.xlu0 %1181
        %1183 = vrot.lane.b32.xlu0 %v1098, 96
        %v1184 = vpop.permute.xlu0 %1183
        %1185 = vrot.lane.b32.xlu0 %v1099, 96
        %v1186 = vpop.permute.xlu0 %1185
        %1187 = vrot.lane.b32.xlu0 %v1100, 96
        %v1188 = vpop.permute.xlu0 %1187
        %1189 = vrot.lane.b32.xlu0 %v1093, 64
        %v1190 = vpop.permute.xlu0 %1189
        %1191 = vrot.lane.b32.xlu0 %v1094, 64
        %v1192 = vpop.permute.xlu0 %1191
        %1193 = vrot.lane.b32.xlu0 %v1095, 64
        %v1194 = vpop.permute.xlu0 %1193
        %1195 = vrot.lane.b32.xlu0 %v1096, 64
        %v1196 = vpop.permute.xlu0 %1195
        %1197 = vrot.lane.b32.xlu0 %v1097, 64
        %v1198 = vpop.permute.xlu0 %1197
        %1199 = vrot.lane.b32.xlu0 %v1098, 64
        %v1200 = vpop.permute.xlu0 %1199
        %1201 = vrot.lane.b32.xlu0 %v1099, 64
        %v1202 = vpop.permute.xlu0 %1201
        %1203 = vrot.lane.b32.xlu0 %v1100, 64
        %v1204 = vpop.permute.xlu0 %1203
        %1205 = vrot.lane.b32.xlu0 %v1093, 32
        %v1206 = vpop.permute.xlu0 %1205
        %1207 = vrot.lane.b32.xlu0 %v1094, 32
        %v1208 = vpop.permute.xlu0 %1207
        %1209 = vrot.lane.b32.xlu0 %v1095, 32
        %v1210 = vpop.permute.xlu0 %1209
        %1211 = vrot.lane.b32.xlu0 %v1096, 32
        %v1212 = vpop.permute.xlu0 %1211
        %1213 = vrot.lane.b32.xlu0 %v1097, 32
        %v1214 = vpop.permute.xlu0 %1213
        %1215 = vrot.lane.b32.xlu0 %v1098, 32
        %v1216 = vpop.permute.xlu0 %1215
        %1217 = vrot.lane.b32.xlu0 %v1099, 32
        %v1218 = vpop.permute.xlu0 %1217
        %1219 = vrot.lane.b32.xlu0 %v1100, 32
        %v1220 = vpop.permute.xlu0 %1219
        %1229 = vrot.lane.b32.xlu0 %v1101, 96
        %v1230 = vpop.permute.xlu0 %1229
        %1231 = vrot.lane.b32.xlu0 %v1102, 96
        %v1232 = vpop.permute.xlu0 %1231
        %1233 = vrot.lane.b32.xlu0 %v1103, 96
        %v1234 = vpop.permute.xlu0 %1233
        %1235 = vrot.lane.b32.xlu0 %v1104, 96
        %v1236 = vpop.permute.xlu0 %1235
        %1237 = vrot.lane.b32.xlu0 %v1105, 96
        %v1238 = vpop.permute.xlu0 %1237
        %1239 = vrot.lane.b32.xlu0 %v1106, 96
        %v1240 = vpop.permute.xlu0 %1239
        %1241 = vrot.lane.b32.xlu0 %v1107, 96
        %v1242 = vpop.permute.xlu0 %1241
        %1243 = vrot.lane.b32.xlu0 %v1108, 96
        %v1244 = vpop.permute.xlu0 %1243
        %1253 = vrot.lane.b32.xlu0 %v1101, 64
        %v1254 = vpop.permute.xlu0 %1253
        %1255 = vrot.lane.b32.xlu0 %v1102, 64
        %v1256 = vpop.permute.xlu0 %1255
        %1257 = vrot.lane.b32.xlu0 %v1103, 64
        %v1258 = vpop.permute.xlu0 %1257
        %1259 = vrot.lane.b32.xlu0 %v1104, 64
        %v1260 = vpop.permute.xlu0 %1259
        %1261 = vrot.lane.b32.xlu0 %v1105, 64
        %v1262 = vpop.permute.xlu0 %1261
        %1263 = vrot.lane.b32.xlu0 %v1106, 64
        %v1264 = vpop.permute.xlu0 %1263
        %1265 = vrot.lane.b32.xlu0 %v1107, 64
        %v1266 = vpop.permute.xlu0 %1265
        %1267 = vrot.lane.b32.xlu0 %v1108, 64
        %v1268 = vpop.permute.xlu0 %1267
        %1277 = vrot.lane.b32.xlu0 %v1101, 32
        %v1278 = vpop.permute.xlu0 %1277
        %1279 = vrot.lane.b32.xlu0 %v1102, 32
        %v1280 = vpop.permute.xlu0 %1279
        %1281 = vrot.lane.b32.xlu0 %v1103, 32
        %v1282 = vpop.permute.xlu0 %1281
        %1283 = vrot.lane.b32.xlu0 %v1104, 32
        %v1284 = vpop.permute.xlu0 %1283
        %1285 = vrot.lane.b32.xlu0 %v1105, 32
        %v1286 = vpop.permute.xlu0 %1285
        %1287 = vrot.lane.b32.xlu0 %v1106, 32
        %v1288 = vpop.permute.xlu0 %1287
        %1289 = vrot.lane.b32.xlu0 %v1107, 32
        %v1290 = vpop.permute.xlu0 %1289
        %1291 = vrot.lane.b32.xlu0 %v1108, 32
        %v1292 = vpop.permute.xlu0 %1291
        %vm1301 = vcmask 261120
        %v1303 = vsel %vm1301, %v1085, 0
        %v1306 = vsel %vm1301, %v1086, 0
        %v1309 = vsel %vm1301, %v1087, 0
        %v1312 = vsel %vm1301, %v1088, 0
        %v1315 = vsel %vm1301, %v1093, 0
        %v1318 = vsel %vm1301, %v1094, 0
        %v1321 = vsel %vm1301, %v1095, 0
        %v1324 = vsel %vm1301, %v1096, 0
        %1326 = vmatprep.subr.bf16.mxu0 0
        %1327 = vmatpush1.bf16.xpose.msra.mxu0 0
        %1328 = vmatprep.subr.bf16.mxu0 0
        %1329 = vmatpush1.bf16.xpose.msra.mxu0 0
        %1330 = vmatprep.subr.bf16.mxu0 0
        %1331 = vmatpush1.bf16.xpose.msra.mxu0 0
        %1332 = vmatprep.subr.bf16.mxu0 0
        %1333 = vmatpush1.bf16.xpose.msra.mxu0 0
        %1334 = vmatprep.subr.bf16.mxu0 0
        %1335 = vmatpush1.bf16.xpose.msra.mxu0 %v1324
        %1336 = vmatprep.subr.bf16.mxu0 0
        %1337 = vmatpush1.bf16.xpose.msra.mxu0 %v1321
        %1338 = vmatprep.subr.bf16.mxu0 0
        %1339 = vmatpush1.bf16.xpose.msra.mxu0 %v1318
        %1340 = vmatprep.subr.bf16.mxu0 0
        %1341 = vmatpush1.bf16.xpose.msra.mxu0 %v1315
        %1342 = vmatprep.subr.bf16.mxu0 0
        %1343 = vmatpush2.bf16.xpose.msra.mxu0 0
        %1344 = vmatprep.subr.bf16.mxu0 0
        %1345 = vmatpush2.bf16.xpose.msra.mxu0 0
        %1346 = vmatprep.subr.bf16.mxu0 0
        %1347 = vmatpush2.bf16.xpose.msra.mxu0 0
        %1348 = vmatprep.subr.bf16.mxu0 0
        %1349 = vmatpush2.bf16.xpose.msra.mxu0 0
        %1350 = vmatprep.subr.bf16.mxu0 0
        %1351 = vmatpush2.bf16.xpose.msra.mxu0 0
        %1352 = vmatprep.subr.bf16.mxu0 0
        %1353 = vmatpush2.bf16.xpose.msra.mxu0 0
        %1354 = vmatprep.subr.bf16.mxu0 0
        %1355 = vmatpush2.bf16.xpose.msra.mxu0 0
        %1356 = vmatprep.subr.bf16.mxu0 0
        %1357 = vmatpush2.bf16.xpose.msra.mxu0 0
        %1358 = vmatprep.mubr.bf16.mxu0 0
        %1359 = vmatmul.mubr.bf16.gmra.mxu0 %v1303
        %v1360 = vpop.f32.mrf.mxu0
        %v1361 = vadd.f32 0.0, %v1360
        %v1362 = vpop.f32.mrf.mxu0
        %v1363 = vpop.f32.mrf.mxu0
        %v1364 = vadd.f32 0.0, %v1363
        %v1365 = vpop.f32.mrf.mxu0
        %1366 = vmatprep.mubr.bf16.mxu0 0
        %1367 = vmatmul.mubr.bf16.gmra.mxu0 %v1306
        %v1368 = vpop.f32.mrf.mxu0
        %v1369 = vadd.f32 0.0, %v1368
        %v1370 = vpop.f32.mrf.mxu0
        %v1371 = vpop.f32.mrf.mxu0
        %v1372 = vadd.f32 0.0, %v1371
        %v1373 = vpop.f32.mrf.mxu0
        %1374 = vmatprep.mubr.bf16.mxu0 0
        %1375 = vmatmul.mubr.bf16.gmra.mxu0 %v1309
        %v1376 = vpop.f32.mrf.mxu0
        %v1377 = vadd.f32 0.0, %v1376
        %v1378 = vpop.f32.mrf.mxu0
        %v1379 = vpop.f32.mrf.mxu0
        %v1380 = vadd.f32 0.0, %v1379
        %v1381 = vpop.f32.mrf.mxu0
        %1382 = vmatprep.mubr.bf16.mxu0 0
        %1383 = vmatmul.mubr.bf16.gmra.mxu0 %v1312
        %v1384 = vpop.f32.mrf.mxu0
        %v1385 = vadd.f32 0.0, %v1384
        %v1386 = vpop.f32.mrf.mxu0
        %v1387 = vpop.f32.mrf.mxu0
        %v1388 = vadd.f32 0.0, %v1387
        %v1389 = vpop.f32.mrf.mxu0
        %1390 = vdwg.mxu0
        %v1392 = vsel %vm1301, %v1089, 0
        %v1395 = vsel %vm1301, %v1090, 0
        %v1398 = vsel %vm1301, %v1091, 0
        %v1401 = vsel %vm1301, %v1092, 0
        %v1404 = vsel %vm1301, %v1097, 0
        %v1407 = vsel %vm1301, %v1098, 0
        %v1410 = vsel %vm1301, %v1099, 0
        %v1413 = vsel %vm1301, %v1100, 0
        %1415 = vmatprep.subr.bf16.mxu0 0
        %1416 = vmatpush1.bf16.xpose.msra.mxu0 0
        %1417 = vmatprep.subr.bf16.mxu0 0
        %1418 = vmatpush1.bf16.xpose.msra.mxu0 0
        %1419 = vmatprep.subr.bf16.mxu0 0
        %1420 = vmatpush1.bf16.xpose.msra.mxu0 0
        %1421 = vmatprep.subr.bf16.mxu0 0
        %1422 = vmatpush1.bf16.xpose.msra.mxu0 0
        %1423 = vmatprep.subr.bf16.mxu0 0
        %1424 = vmatpush1.bf16.xpose.msra.mxu0 %v1413
        %1425 = vmatprep.subr.bf16.mxu0 0
        %1426 = vmatpush1.bf16.xpose.msra.mxu0 %v1410
        %1427 = vmatprep.subr.bf16.mxu0 0
        %1428 = vmatpush1.bf16.xpose.msra.mxu0 %v1407
        %1429 = vmatprep.subr.bf16.mxu0 0
        %1430 = vmatpush1.bf16.xpose.msra.mxu0 %v1404
        %1431 = vmatprep.subr.bf16.mxu0 0
        %1432 = vmatpush2.bf16.xpose.msra.mxu0 0
        %1433 = vmatprep.subr.bf16.mxu0 0
        %1434 = vmatpush2.bf16.xpose.msra.mxu0 0
        %1435 = vmatprep.subr.bf16.mxu0 0
        %1436 = vmatpush2.bf16.xpose.msra.mxu0 0
        %1437 = vmatprep.subr.bf16.mxu0 0
        %1438 = vmatpush2.bf16.xpose.msra.mxu0 0
        %1439 = vmatprep.subr.bf16.mxu0 0
        %1440 = vmatpush2.bf16.xpose.msra.mxu0 0
        %1441 = vmatprep.subr.bf16.mxu0 0
        %1442 = vmatpush2.bf16.xpose.msra.mxu0 0
        %1443 = vmatprep.subr.bf16.mxu0 0
        %1444 = vmatpush2.bf16.xpose.msra.mxu0 0
        %1445 = vmatprep.subr.bf16.mxu0 0
        %1446 = vmatpush2.bf16.xpose.msra.mxu0 0
        %1447 = vmatprep.mubr.bf16.mxu0 0
        %1448 = vmatmul.mubr.bf16.gmra.mxu0 %v1392
        %v1449 = vpop.f32.mrf.mxu0
        %v1450 = vadd.f32 0.0, %v1449
        %v1451 = vpop.f32.mrf.mxu0
        %v1452 = vpop.f32.mrf.mxu0
        %v1453 = vadd.f32 0.0, %v1452
        %v1454 = vpop.f32.mrf.mxu0
        %1455 = vmatprep.mubr.bf16.mxu0 0
        %1456 = vmatmul.mubr.bf16.gmra.mxu0 %v1395
        %v1457 = vpop.f32.mrf.mxu0
        %v1458 = vadd.f32 0.0, %v1457
        %v1459 = vpop.f32.mrf.mxu0
        %v1460 = vpop.f32.mrf.mxu0
        %v1461 = vadd.f32 0.0, %v1460
        %v1462 = vpop.f32.mrf.mxu0
        %1463 = vmatprep.mubr.bf16.mxu0 0
        %1464 = vmatmul.mubr.bf16.gmra.mxu0 %v1398
        %v1465 = vpop.f32.mrf.mxu0
        %v1466 = vadd.f32 0.0, %v1465
        %v1467 = vpop.f32.mrf.mxu0
        %v1468 = vpop.f32.mrf.mxu0
        %v1469 = vadd.f32 0.0, %v1468
        %v1470 = vpop.f32.mrf.mxu0
        %1471 = vmatprep.mubr.bf16.mxu0 0
        %1472 = vmatmul.mubr.bf16.gmra.mxu0 %v1401
        %v1473 = vpop.f32.mrf.mxu0
        %v1474 = vadd.f32 0.0, %v1473
        %v1475 = vpop.f32.mrf.mxu0
        %v1476 = vpop.f32.mrf.mxu0
        %v1477 = vadd.f32 0.0, %v1476
        %v1478 = vpop.f32.mrf.mxu0
        %1479 = vdwg.mxu0
        %v1481 = vsel %vm1301, %v1118, 0
        %v1484 = vsel %vm1301, %v1120, 0
        %v1487 = vsel %vm1301, %v1122, 0
        %v1490 = vsel %vm1301, %v1124, 0
        %v1493 = vsel %vm1301, %v1174, 0
        %v1496 = vsel %vm1301, %v1176, 0
        %v1499 = vsel %vm1301, %v1178, 0
        %v1502 = vsel %vm1301, %v1180, 0
        %1504 = vmatprep.subr.bf16.mxu0 0
        %1505 = vmatpush1.bf16.xpose.msra.mxu0 0
        %1506 = vmatprep.subr.bf16.mxu0 0
        %1507 = vmatpush1.bf16.xpose.msra.mxu0 0
        %1508 = vmatprep.subr.bf16.mxu0 0
        %1509 = vmatpush1.bf16.xpose.msra.mxu0 0
        %1510 = vmatprep.subr.bf16.mxu0 0
        %1511 = vmatpush1.bf16.xpose.msra.mxu0 0
        %1512 = vmatprep.subr.bf16.mxu0 0
        %1513 = vmatpush1.bf16.xpose.msra.mxu0 %v1502
        %1514 = vmatprep.subr.bf16.mxu0 0
        %1515 = vmatpush1.bf16.xpose.msra.mxu0 %v1499
        %1516 = vmatprep.subr.bf16.mxu0 0
        %1517 = vmatpush1.bf16.xpose.msra.mxu0 %v1496
        %1518 = vmatprep.subr.bf16.mxu0 0
        %1519 = vmatpush1.bf16.xpose.msra.mxu0 %v1493
        %1520 = vmatprep.subr.bf16.mxu0 0
        %1521 = vmatpush2.bf16.xpose.msra.mxu0 0
        %1522 = vmatprep.subr.bf16.mxu0 0
        %1523 = vmatpush2.bf16.xpose.msra.mxu0 0
        %1524 = vmatprep.subr.bf16.mxu0 0
        %1525 = vmatpush2.bf16.xpose.msra.mxu0 0
        %1526 = vmatprep.subr.bf16.mxu0 0
        %1527 = vmatpush2.bf16.xpose.msra.mxu0 0
        %1528 = vmatprep.subr.bf16.mxu0 0
        %1529 = vmatpush2.bf16.xpose.msra.mxu0 0
        %1530 = vmatprep.subr.bf16.mxu0 0
        %1531 = vmatpush2.bf16.xpose.msra.mxu0 0
        %1532 = vmatprep.subr.bf16.mxu0 0
        %1533 = vmatpush2.bf16.xpose.msra.mxu0 0
        %1534 = vmatprep.subr.bf16.mxu0 0
        %1535 = vmatpush2.bf16.xpose.msra.mxu0 0
        %1536 = vmatprep.mubr.bf16.mxu0 0
        %1537 = vmatmul.mubr.bf16.gmra.mxu0 %v1481
        %v1538 = vpop.f32.mrf.mxu0
        %v1539 = vadd.f32 0.0, %v1538
        %v1540 = vpop.f32.mrf.mxu0
        %v1541 = vpop.f32.mrf.mxu0
        %v1542 = vadd.f32 0.0, %v1541
        %v1543 = vpop.f32.mrf.mxu0
        %1544 = vmatprep.mubr.bf16.mxu0 0
        %1545 = vmatmul.mubr.bf16.gmra.mxu0 %v1484
        %v1546 = vpop.f32.mrf.mxu0
        %v1547 = vadd.f32 0.0, %v1546
        %v1548 = vpop.f32.mrf.mxu0
        %v1549 = vpop.f32.mrf.mxu0
        %v1550 = vadd.f32 0.0, %v1549
        %v1551 = vpop.f32.mrf.mxu0
        %1552 = vmatprep.mubr.bf16.mxu0 0
        %1553 = vmatmul.mubr.bf16.gmra.mxu0 %v1487
        %v1554 = vpop.f32.mrf.mxu0
        %v1555 = vadd.f32 0.0, %v1554
        %v1556 = vpop.f32.mrf.mxu0
        %v1557 = vpop.f32.mrf.mxu0
        %v1558 = vadd.f32 0.0, %v1557
        %v1559 = vpop.f32.mrf.mxu0
        %1560 = vmatprep.mubr.bf16.mxu0 0
        %1561 = vmatmul.mubr.bf16.gmra.mxu0 %v1490
        %v1562 = vpop.f32.mrf.mxu0
        %v1563 = vadd.f32 0.0, %v1562
        %v1564 = vpop.f32.mrf.mxu0
        %v1565 = vpop.f32.mrf.mxu0
        %v1566 = vadd.f32 0.0, %v1565
        %v1567 = vpop.f32.mrf.mxu0
        %1568 = vdwg.mxu0
        %v1570 = vsel %vm1301, %v1126, 0
        %v1573 = vsel %vm1301, %v1128, 0
        %v1576 = vsel %vm1301, %v1130, 0
        %v1579 = vsel %vm1301, %v1132, 0
        %v1582 = vsel %vm1301, %v1182, 0
        %v1585 = vsel %vm1301, %v1184, 0
        %v1588 = vsel %vm1301, %v1186, 0
        %v1591 = vsel %vm1301, %v1188, 0
        %1593 = vmatprep.subr.bf16.mxu0 0
        %1594 = vmatpush1.bf16.xpose.msra.mxu0 0
        %1595 = vmatprep.subr.bf16.mxu0 0
        %1596 = vmatpush1.bf16.xpose.msra.mxu0 0
        %1597 = vmatprep.subr.bf16.mxu0 0
        %1598 = vmatpush1.bf16.xpose.msra.mxu0 0
        %1599 = vmatprep.subr.bf16.mxu0 0
        %1600 = vmatpush1.bf16.xpose.msra.mxu0 0
        %1601 = vmatprep.subr.bf16.mxu0 0
        %1602 = vmatpush1.bf16.xpose.msra.mxu0 %v1591
        %1603 = vmatprep.subr.bf16.mxu0 0
        %1604 = vmatpush1.bf16.xpose.msra.mxu0 %v1588
        %1605 = vmatprep.subr.bf16.mxu0 0
        %1606 = vmatpush1.bf16.xpose.msra.mxu0 %v1585
        %1607 = vmatprep.subr.bf16.mxu0 0
        %1608 = vmatpush1.bf16.xpose.msra.mxu0 %v1582
        %1609 = vmatprep.subr.bf16.mxu0 0
        %1610 = vmatpush2.bf16.xpose.msra.mxu0 0
        %1611 = vmatprep.subr.bf16.mxu0 0
        %1612 = vmatpush2.bf16.xpose.msra.mxu0 0
        %1613 = vmatprep.subr.bf16.mxu0 0
        %1614 = vmatpush2.bf16.xpose.msra.mxu0 0
        %1615 = vmatprep.subr.bf16.mxu0 0
        %1616 = vmatpush2.bf16.xpose.msra.mxu0 0
        %1617 = vmatprep.subr.bf16.mxu0 0
        %1618 = vmatpush2.bf16.xpose.msra.mxu0 0
        %1619 = vmatprep.subr.bf16.mxu0 0
        %1620 = vmatpush2.bf16.xpose.msra.mxu0 0
        %1621 = vmatprep.subr.bf16.mxu0 0
        %1622 = vmatpush2.bf16.xpose.msra.mxu0 0
        %1623 = vmatprep.subr.bf16.mxu0 0
        %1624 = vmatpush2.bf16.xpose.msra.mxu0 0
        %1625 = vmatprep.mubr.bf16.mxu0 0
        %1626 = vmatmul.mubr.bf16.gmra.mxu0 %v1570
        %v1627 = vpop.f32.mrf.mxu0
        %v1628 = vadd.f32 0.0, %v1627
        %v1629 = vpop.f32.mrf.mxu0
        %v1630 = vpop.f32.mrf.mxu0
        %v1631 = vadd.f32 0.0, %v1630
        %v1632 = vpop.f32.mrf.mxu0
        %1633 = vmatprep.mubr.bf16.mxu0 0
        %1634 = vmatmul.mubr.bf16.gmra.mxu0 %v1573
        %v1635 = vpop.f32.mrf.mxu0
        %v1636 = vadd.f32 0.0, %v1635
        %v1637 = vpop.f32.mrf.mxu0
        %v1638 = vpop.f32.mrf.mxu0
        %v1639 = vadd.f32 0.0, %v1638
        %v1640 = vpop.f32.mrf.mxu0
        %1641 = vmatprep.mubr.bf16.mxu0 0
        %1642 = vmatmul.mubr.bf16.gmra.mxu0 %v1576
        %v1643 = vpop.f32.mrf.mxu0
        %v1644 = vadd.f32 0.0, %v1643
        %v1645 = vpop.f32.mrf.mxu0
        %v1646 = vpop.f32.mrf.mxu0
        %v1647 = vadd.f32 0.0, %v1646
        %v1648 = vpop.f32.mrf.mxu0
        %1649 = vmatprep.mubr.bf16.mxu0 0
        %1650 = vmatmul.mubr.bf16.gmra.mxu0 %v1579
        %v1651 = vpop.f32.mrf.mxu0
        %v1652 = vadd.f32 0.0, %v1651
        %v1653 = vpop.f32.mrf.mxu0
        %v1654 = vpop.f32.mrf.mxu0
        %v1655 = vadd.f32 0.0, %v1654
        %v1656 = vpop.f32.mrf.mxu0
        %1657 = vdwg.mxu0
        %v1659 = vsel %vm1301, %v1134, 0
        %v1662 = vsel %vm1301, %v1136, 0
        %v1665 = vsel %vm1301, %v1138, 0
        %v1668 = vsel %vm1301, %v1140, 0
        %v1671 = vsel %vm1301, %v1190, 0
        %v1674 = vsel %vm1301, %v1192, 0
        %v1677 = vsel %vm1301, %v1194, 0
        %v1680 = vsel %vm1301, %v1196, 0
        %1682 = vmatprep.subr.bf16.mxu0 0
        %1683 = vmatpush1.bf16.xpose.msra.mxu0 0
        %1684 = vmatprep.subr.bf16.mxu0 0
        %1685 = vmatpush1.bf16.xpose.msra.mxu0 0
        %1686 = vmatprep.subr.bf16.mxu0 0
        %1687 = vmatpush1.bf16.xpose.msra.mxu0 0
        %1688 = vmatprep.subr.bf16.mxu0 0
        %1689 = vmatpush1.bf16.xpose.msra.mxu0 0
        %1690 = vmatprep.subr.bf16.mxu0 0
        %1691 = vmatpush1.bf16.xpose.msra.mxu0 %v1680
        %1692 = vmatprep.subr.bf16.mxu0 0
        %1693 = vmatpush1.bf16.xpose.msra.mxu0 %v1677
        %1694 = vmatprep.subr.bf16.mxu0 0
        %1695 = vmatpush1.bf16.xpose.msra.mxu0 %v1674
        %1696 = vmatprep.subr.bf16.mxu0 0
        %1697 = vmatpush1.bf16.xpose.msra.mxu0 %v1671
        %1698 = vmatprep.subr.bf16.mxu0 0
        %1699 = vmatpush2.bf16.xpose.msra.mxu0 0
        %1700 = vmatprep.subr.bf16.mxu0 0
        %1701 = vmatpush2.bf16.xpose.msra.mxu0 0
        %1702 = vmatprep.subr.bf16.mxu0 0
        %1703 = vmatpush2.bf16.xpose.msra.mxu0 0
        %1704 = vmatprep.subr.bf16.mxu0 0
        %1705 = vmatpush2.bf16.xpose.msra.mxu0 0
        %1706 = vmatprep.subr.bf16.mxu0 0
        %1707 = vmatpush2.bf16.xpose.msra.mxu0 0
        %1708 = vmatprep.subr.bf16.mxu0 0
        %1709 = vmatpush2.bf16.xpose.msra.mxu0 0
        %1710 = vmatprep.subr.bf16.mxu0 0
        %1711 = vmatpush2.bf16.xpose.msra.mxu0 0
        %1712 = vmatprep.subr.bf16.mxu0 0
        %1713 = vmatpush2.bf16.xpose.msra.mxu0 0
        %1714 = vmatprep.mubr.bf16.mxu0 0
        %1715 = vmatmul.mubr.bf16.gmra.mxu0 %v1659
        %v1716 = vpop.f32.mrf.mxu0
        %v1717 = vadd.f32 0.0, %v1716
        %v1718 = vpop.f32.mrf.mxu0
        %v1719 = vpop.f32.mrf.mxu0
        %v1720 = vadd.f32 0.0, %v1719
        %v1721 = vpop.f32.mrf.mxu0
        %1722 = vmatprep.mubr.bf16.mxu0 0
        %1723 = vmatmul.mubr.bf16.gmra.mxu0 %v1662
        %v1724 = vpop.f32.mrf.mxu0
        %v1725 = vadd.f32 0.0, %v1724
        %v1726 = vpop.f32.mrf.mxu0
        %v1727 = vpop.f32.mrf.mxu0
        %v1728 = vadd.f32 0.0, %v1727
        %v1729 = vpop.f32.mrf.mxu0
        %1730 = vmatprep.mubr.bf16.mxu0 0
        %1731 = vmatmul.mubr.bf16.gmra.mxu0 %v1665
        %v1732 = vpop.f32.mrf.mxu0
        %v1733 = vadd.f32 0.0, %v1732
        %v1734 = vpop.f32.mrf.mxu0
        %v1735 = vpop.f32.mrf.mxu0
        %v1736 = vadd.f32 0.0, %v1735
        %v1737 = vpop.f32.mrf.mxu0
        %1738 = vmatprep.mubr.bf16.mxu0 0
        %1739 = vmatmul.mubr.bf16.gmra.mxu0 %v1668
        %v1740 = vpop.f32.mrf.mxu0
        %v1741 = vadd.f32 0.0, %v1740
        %v1742 = vpop.f32.mrf.mxu0
        %v1743 = vpop.f32.mrf.mxu0
        %v1744 = vadd.f32 0.0, %v1743
        %v1745 = vpop.f32.mrf.mxu0
        %1746 = vdwg.mxu0
        %v1748 = vsel %vm1301, %v1142, 0
        %v1751 = vsel %vm1301, %v1144, 0
        %v1754 = vsel %vm1301, %v1146, 0
        %v1757 = vsel %vm1301, %v1148, 0
        %v1760 = vsel %vm1301, %v1198, 0
        %v1763 = vsel %vm1301, %v1200, 0
        %v1766 = vsel %vm1301, %v1202, 0
        %v1769 = vsel %vm1301, %v1204, 0
        %1771 = vmatprep.subr.bf16.mxu0 0
        %1772 = vmatpush1.bf16.xpose.msra.mxu0 0
        %1773 = vmatprep.subr.bf16.mxu0 0
        %1774 = vmatpush1.bf16.xpose.msra.mxu0 0
        %1775 = vmatprep.subr.bf16.mxu0 0
        %1776 = vmatpush1.bf16.xpose.msra.mxu0 0
        %1777 = vmatprep.subr.bf16.mxu0 0
        %1778 = vmatpush1.bf16.xpose.msra.mxu0 0
        %1779 = vmatprep.subr.bf16.mxu0 0
        %1780 = vmatpush1.bf16.xpose.msra.mxu0 %v1769
        %1781 = vmatprep.subr.bf16.mxu0 0
        %1782 = vmatpush1.bf16.xpose.msra.mxu0 %v1766
        %1783 = vmatprep.subr.bf16.mxu0 0
        %1784 = vmatpush1.bf16.xpose.msra.mxu0 %v1763
        %1785 = vmatprep.subr.bf16.mxu0 0
        %1786 = vmatpush1.bf16.xpose.msra.mxu0 %v1760
        %1787 = vmatprep.subr.bf16.mxu0 0
        %1788 = vmatpush2.bf16.xpose.msra.mxu0 0
        %1789 = vmatprep.subr.bf16.mxu0 0
        %1790 = vmatpush2.bf16.xpose.msra.mxu0 0
        %1791 = vmatprep.subr.bf16.mxu0 0
        %1792 = vmatpush2.bf16.xpose.msra.mxu0 0
        %1793 = vmatprep.subr.bf16.mxu0 0
        %1794 = vmatpush2.bf16.xpose.msra.mxu0 0
        %1795 = vmatprep.subr.bf16.mxu0 0
        %1796 = vmatpush2.bf16.xpose.msra.mxu0 0
        %1797 = vmatprep.subr.bf16.mxu0 0
        %1798 = vmatpush2.bf16.xpose.msra.mxu0 0
        %1799 = vmatprep.subr.bf16.mxu0 0
        %1800 = vmatpush2.bf16.xpose.msra.mxu0 0
        %1801 = vmatprep.subr.bf16.mxu0 0
        %1802 = vmatpush2.bf16.xpose.msra.mxu0 0
        %1803 = vmatprep.mubr.bf16.mxu0 0
        %1804 = vmatmul.mubr.bf16.gmra.mxu0 %v1748
        %v1805 = vpop.f32.mrf.mxu0
        %v1806 = vadd.f32 0.0, %v1805
        %v1807 = vpop.f32.mrf.mxu0
        %v1808 = vpop.f32.mrf.mxu0
        %v1809 = vadd.f32 0.0, %v1808
        %v1810 = vpop.f32.mrf.mxu0
        %1811 = vmatprep.mubr.bf16.mxu0 0
        %1812 = vmatmul.mubr.bf16.gmra.mxu0 %v1751
        %v1813 = vpop.f32.mrf.mxu0
        %v1814 = vadd.f32 0.0, %v1813
        %v1815 = vpop.f32.mrf.mxu0
        %v1816 = vpop.f32.mrf.mxu0
        %v1817 = vadd.f32 0.0, %v1816
        %v1818 = vpop.f32.mrf.mxu0
        %1819 = vmatprep.mubr.bf16.mxu0 0
        %1820 = vmatmul.mubr.bf16.gmra.mxu0 %v1754
        %v1821 = vpop.f32.mrf.mxu0
        %v1822 = vadd.f32 0.0, %v1821
        %v1823 = vpop.f32.mrf.mxu0
        %v1824 = vpop.f32.mrf.mxu0
        %v1825 = vadd.f32 0.0, %v1824
        %v1826 = vpop.f32.mrf.mxu0
        %1827 = vmatprep.mubr.bf16.mxu0 0
        %1828 = vmatmul.mubr.bf16.gmra.mxu0 %v1757
        %v1829 = vpop.f32.mrf.mxu0
        %v1830 = vadd.f32 0.0, %v1829
        %v1831 = vpop.f32.mrf.mxu0
        %v1832 = vpop.f32.mrf.mxu0
        %v1833 = vadd.f32 0.0, %v1832
        %v1834 = vpop.f32.mrf.mxu0
        %1835 = vdwg.mxu0
        %v1837 = vsel %vm1301, %v1150, 0
        %v1840 = vsel %vm1301, %v1152, 0
        %v1843 = vsel %vm1301, %v1154, 0
        %v1846 = vsel %vm1301, %v1156, 0
        %v1849 = vsel %vm1301, %v1206, 0
        %v1852 = vsel %vm1301, %v1208, 0
        %v1855 = vsel %vm1301, %v1210, 0
        %v1858 = vsel %vm1301, %v1212, 0
        %1860 = vmatprep.subr.bf16.mxu0 0
        %1861 = vmatpush1.bf16.xpose.msra.mxu0 0
        %1862 = vmatprep.subr.bf16.mxu0 0
        %1863 = vmatpush1.bf16.xpose.msra.mxu0 0
        %1864 = vmatprep.subr.bf16.mxu0 0
        %1865 = vmatpush1.bf16.xpose.msra.mxu0 0
        %1866 = vmatprep.subr.bf16.mxu0 0
        %1867 = vmatpush1.bf16.xpose.msra.mxu0 0
        %1868 = vmatprep.subr.bf16.mxu0 0
        %1869 = vmatpush1.bf16.xpose.msra.mxu0 %v1858
        %1870 = vmatprep.subr.bf16.mxu0 0
        %1871 = vmatpush1.bf16.xpose.msra.mxu0 %v1855
        %1872 = vmatprep.subr.bf16.mxu0 0
        %1873 = vmatpush1.bf16.xpose.msra.mxu0 %v1852
        %1874 = vmatprep.subr.bf16.mxu0 0
        %1875 = vmatpush1.bf16.xpose.msra.mxu0 %v1849
        %1876 = vmatprep.subr.bf16.mxu0 0
        %1877 = vmatpush2.bf16.xpose.msra.mxu0 0
        %1878 = vmatprep.subr.bf16.mxu0 0
        %1879 = vmatpush2.bf16.xpose.msra.mxu0 0
        %1880 = vmatprep.subr.bf16.mxu0 0
        %1881 = vmatpush2.bf16.xpose.msra.mxu0 0
        %1882 = vmatprep.subr.bf16.mxu0 0
        %1883 = vmatpush2.bf16.xpose.msra.mxu0 0
        %1884 = vmatprep.subr.bf16.mxu0 0
        %1885 = vmatpush2.bf16.xpose.msra.mxu0 0
        %1886 = vmatprep.subr.bf16.mxu0 0
        %1887 = vmatpush2.bf16.xpose.msra.mxu0 0
        %1888 = vmatprep.subr.bf16.mxu0 0
        %1889 = vmatpush2.bf16.xpose.msra.mxu0 0
        %1890 = vmatprep.subr.bf16.mxu0 0
        %1891 = vmatpush2.bf16.xpose.msra.mxu0 0
        %1892 = vmatprep.mubr.bf16.mxu0 0
        %1893 = vmatmul.mubr.bf16.gmra.mxu0 %v1837
        %v1894 = vpop.f32.mrf.mxu0
        %v1895 = vadd.f32 0.0, %v1894
        %v1896 = vpop.f32.mrf.mxu0
        %v1897 = vpop.f32.mrf.mxu0
        %v1898 = vadd.f32 0.0, %v1897
        %v1899 = vpop.f32.mrf.mxu0
        %1900 = vmatprep.mubr.bf16.mxu0 0
        %1901 = vmatmul.mubr.bf16.gmra.mxu0 %v1840
        %v1902 = vpop.f32.mrf.mxu0
        %v1903 = vadd.f32 0.0, %v1902
        %v1904 = vpop.f32.mrf.mxu0
        %v1905 = vpop.f32.mrf.mxu0
        %v1906 = vadd.f32 0.0, %v1905
        %v1907 = vpop.f32.mrf.mxu0
        %1908 = vmatprep.mubr.bf16.mxu0 0
        %1909 = vmatmul.mubr.bf16.gmra.mxu0 %v1843
        %v1910 = vpop.f32.mrf.mxu0
        %v1911 = vadd.f32 0.0, %v1910
        %v1912 = vpop.f32.mrf.mxu0
        %v1913 = vpop.f32.mrf.mxu0
        %v1914 = vadd.f32 0.0, %v1913
        %v1915 = vpop.f32.mrf.mxu0
        %1916 = vmatprep.mubr.bf16.mxu0 0
        %1917 = vmatmul.mubr.bf16.gmra.mxu0 %v1846
        %v1918 = vpop.f32.mrf.mxu0
        %v1919 = vadd.f32 0.0, %v1918
        %v1920 = vpop.f32.mrf.mxu0
        %v1921 = vpop.f32.mrf.mxu0
        %v1922 = vadd.f32 0.0, %v1921
        %v1923 = vpop.f32.mrf.mxu0
        %1924 = vdwg.mxu0
        %v1926 = vsel %vm1301, %v1158, 0
        %v1929 = vsel %vm1301, %v1160, 0
        %v1932 = vsel %vm1301, %v1162, 0
        %v1935 = vsel %vm1301, %v1164, 0
        %v1938 = vsel %vm1301, %v1214, 0
        %v1941 = vsel %vm1301, %v1216, 0
        %v1944 = vsel %vm1301, %v1218, 0
        %v1947 = vsel %vm1301, %v1220, 0
        %1949 = vmatprep.subr.bf16.mxu0 0
        %1950 = vmatpush1.bf16.xpose.msra.mxu0 0
        %1951 = vmatprep.subr.bf16.mxu0 0
        %1952 = vmatpush1.bf16.xpose.msra.mxu0 0
        %1953 = vmatprep.subr.bf16.mxu0 0
        %1954 = vmatpush1.bf16.xpose.msra.mxu0 0
        %1955 = vmatprep.subr.bf16.mxu0 0
        %1956 = vmatpush1.bf16.xpose.msra.mxu0 0
        %1957 = vmatprep.subr.bf16.mxu0 0
        %1958 = vmatpush1.bf16.xpose.msra.mxu0 %v1947
        %1959 = vmatprep.subr.bf16.mxu0 0
        %1960 = vmatpush1.bf16.xpose.msra.mxu0 %v1944
        %1961 = vmatprep.subr.bf16.mxu0 0
        %1962 = vmatpush1.bf16.xpose.msra.mxu0 %v1941
        %1963 = vmatprep.subr.bf16.mxu0 0
        %1964 = vmatpush1.bf16.xpose.msra.mxu0 %v1938
        %1965 = vmatprep.subr.bf16.mxu0 0
        %1966 = vmatpush2.bf16.xpose.msra.mxu0 0
        %1967 = vmatprep.subr.bf16.mxu0 0
        %1968 = vmatpush2.bf16.xpose.msra.mxu0 0
        %1969 = vmatprep.subr.bf16.mxu0 0
        %1970 = vmatpush2.bf16.xpose.msra.mxu0 0
        %1971 = vmatprep.subr.bf16.mxu0 0
        %1972 = vmatpush2.bf16.xpose.msra.mxu0 0
        %1973 = vmatprep.subr.bf16.mxu0 0
        %1974 = vmatpush2.bf16.xpose.msra.mxu0 0
        %1975 = vmatprep.subr.bf16.mxu0 0
        %1976 = vmatpush2.bf16.xpose.msra.mxu0 0
        %1977 = vmatprep.subr.bf16.mxu0 0
        %1978 = vmatpush2.bf16.xpose.msra.mxu0 0
        %1979 = vmatprep.subr.bf16.mxu0 0
        %1980 = vmatpush2.bf16.xpose.msra.mxu0 0
        %1981 = vmatprep.mubr.bf16.mxu0 0
        %1982 = vmatmul.mubr.bf16.gmra.mxu0 %v1926
        %v1983 = vpop.f32.mrf.mxu0
        %v1984 = vadd.f32 0.0, %v1983
        %v1985 = vpop.f32.mrf.mxu0
        %v1986 = vpop.f32.mrf.mxu0
        %v1987 = vadd.f32 0.0, %v1986
        %v1988 = vpop.f32.mrf.mxu0
        %1989 = vmatprep.mubr.bf16.mxu0 0
        %1990 = vmatmul.mubr.bf16.gmra.mxu0 %v1929
        %v1991 = vpop.f32.mrf.mxu0
        %v1992 = vadd.f32 0.0, %v1991
        %v1993 = vpop.f32.mrf.mxu0
        %v1994 = vpop.f32.mrf.mxu0
        %v1995 = vadd.f32 0.0, %v1994
        %v1996 = vpop.f32.mrf.mxu0
        %1997 = vmatprep.mubr.bf16.mxu0 0
        %1998 = vmatmul.mubr.bf16.gmra.mxu0 %v1932
        %v1999 = vpop.f32.mrf.mxu0
        %v2000 = vadd.f32 0.0, %v1999
        %v2001 = vpop.f32.mrf.mxu0
        %v2002 = vpop.f32.mrf.mxu0
        %v2003 = vadd.f32 0.0, %v2002
        %v2004 = vpop.f32.mrf.mxu0
        %2005 = vmatprep.mubr.bf16.mxu0 0
        %2006 = vmatmul.mubr.bf16.gmra.mxu0 %v1935
        %v2007 = vpop.f32.mrf.mxu0
        %v2008 = vadd.f32 0.0, %v2007
        %v2009 = vpop.f32.mrf.mxu0
        %v2010 = vpop.f32.mrf.mxu0
        %v2011 = vadd.f32 0.0, %v2010
        %v2012 = vpop.f32.mrf.mxu0
        %2013 = vdwg.mxu0
        %v2014 = vld [vmem:[%s471] sm:$0xff]
        %v2015 = vld [vmem:[%s471 + $0x8] sm:$0xff]
        %v2016 = vld [vmem:[%s471 + $0x10] sm:$0xff]
        %v2017 = vld [vmem:[%s471 + $0x18] sm:$0xff]
        %v2018 = vld [vmem:[%s471 + $0x20] sm:$0xff]
        %v2019 = vld [vmem:[%s471 + $0x28] sm:$0xff]
        %v2020 = vld [vmem:[%s471 + $0x30] sm:$0xff]
        %v2021 = vld [vmem:[%s471 + $0x38] sm:$0xff]
        %v2022 = vld [vmem:[%s471 + $0x40] sm:$0xff]
        %v2023 = vld [vmem:[%s471 + $0x48] sm:$0xff]
        %v2024 = vld [vmem:[%s471 + $0x50] sm:$0xff]
        %v2025 = vld [vmem:[%s471 + $0x58] sm:$0xff]
        %v2026 = vld [vmem:[%s471 + $0x60] sm:$0xff]
        %v2027 = vld [vmem:[%s471 + $0x68] sm:$0xff]
        %v2028 = vld [vmem:[%s471 + $0x70] sm:$0xff]
        %v2029 = vld [vmem:[%s471 + $0x78] sm:$0xff]
        %v2030 = vld [vmem:[%s471 + $0x80] sm:$0xff]
        %v2031 = vld [vmem:[%s471 + $0x88] sm:$0xff]
        %v2032 = vld [vmem:[%s471 + $0x90] sm:$0xff]
        %v2033 = vld [vmem:[%s471 + $0x98] sm:$0xff]
        %v2034 = vld [vmem:[%s471 + $0xa0] sm:$0xff]
        %v2035 = vld [vmem:[%s471 + $0xa8] sm:$0xff]
        %v2036 = vld [vmem:[%s471 + $0xb0] sm:$0xff]
        %v2037 = vld [vmem:[%s471 + $0xb8] sm:$0xff]
        %v2038 = vld [vmem:[%s471 + $0xc0] sm:$0xff]
        %v2039 = vld [vmem:[%s471 + $0xc8] sm:$0xff]
        %v2040 = vld [vmem:[%s471 + $0xd0] sm:$0xff]
        %v2041 = vld [vmem:[%s471 + $0xd8] sm:$0xff]
        %v2042 = vld [vmem:[%s471 + $0xe0] sm:$0xff]
        %v2043 = vld [vmem:[%s471 + $0xe8] sm:$0xff]
        %v2044 = vld [vmem:[%s471 + $0xf0] sm:$0xff]
        %v2045 = vld [vmem:[%s471 + $0xf8] sm:$0xff]
        %v2046 = vadd.f32 %v1361, %v2014
        %v2047 = vadd.f32 %v1364, %v2015
        %v2048 = vadd.f32 %v1369, %v2016
        %v2049 = vadd.f32 %v1372, %v2017
        %v2050 = vadd.f32 %v1377, %v2018
        %v2051 = vadd.f32 %v1380, %v2019
        %v2052 = vadd.f32 %v1385, %v2020
        %v2053 = vadd.f32 %v1388, %v2021
        %v2054 = vadd.f32 %v1450, %v2014
        %v2055 = vadd.f32 %v1453, %v2015
        %v2056 = vadd.f32 %v1458, %v2016
        %v2057 = vadd.f32 %v1461, %v2017
        %v2058 = vadd.f32 %v1466, %v2018
        %v2059 = vadd.f32 %v1469, %v2019
        %v2060 = vadd.f32 %v1474, %v2020
        %v2061 = vadd.f32 %v1477, %v2021
        %v2062 = vadd.f32 %v1539, %v2022
        %v2063 = vadd.f32 %v1542, %v2023
        %v2064 = vadd.f32 %v1547, %v2024
        %v2065 = vadd.f32 %v1550, %v2025
        %v2066 = vadd.f32 %v1555, %v2026
        %v2067 = vadd.f32 %v1558, %v2027
        %v2068 = vadd.f32 %v1563, %v2028
        %v2069 = vadd.f32 %v1566, %v2029
        %v2070 = vadd.f32 %v1628, %v2022
        %v2071 = vadd.f32 %v1631, %v2023
        %v2072 = vadd.f32 %v1636, %v2024
        %v2073 = vadd.f32 %v1639, %v2025
        %v2074 = vadd.f32 %v1644, %v2026
        %v2075 = vadd.f32 %v1647, %v2027
        %v2076 = vadd.f32 %v1652, %v2028
        %v2077 = vadd.f32 %v1655, %v2029
        %v2078 = vadd.f32 %v1717, %v2030
        %v2079 = vadd.f32 %v1720, %v2031
        %v2080 = vadd.f32 %v1725, %v2032
        %v2081 = vadd.f32 %v1728, %v2033
        %v2082 = vadd.f32 %v1733, %v2034
        %v2083 = vadd.f32 %v1736, %v2035
        %v2084 = vadd.f32 %v1741, %v2036
        %v2085 = vadd.f32 %v1744, %v2037
        %v2086 = vadd.f32 %v1806, %v2030
        %v2087 = vadd.f32 %v1809, %v2031
        %v2088 = vadd.f32 %v1814, %v2032
        %v2089 = vadd.f32 %v1817, %v2033
        %v2090 = vadd.f32 %v1822, %v2034
        %v2091 = vadd.f32 %v1825, %v2035
        %v2092 = vadd.f32 %v1830, %v2036
        %v2093 = vadd.f32 %v1833, %v2037
        %v2094 = vadd.f32 %v1895, %v2038
        %v2095 = vadd.f32 %v1898, %v2039
        %v2096 = vadd.f32 %v1903, %v2040
        %v2097 = vadd.f32 %v1906, %v2041
        %v2098 = vadd.f32 %v1911, %v2042
        %v2099 = vadd.f32 %v1914, %v2043
        %v2100 = vadd.f32 %v1919, %v2044
        %v2101 = vadd.f32 %v1922, %v2045
        %v2102 = vadd.f32 %v1984, %v2038
        %v2103 = vadd.f32 %v1987, %v2039
        %v2104 = vadd.f32 %v1992, %v2040
        %v2105 = vadd.f32 %v1995, %v2041
        %v2106 = vadd.f32 %v2000, %v2042
        %v2107 = vadd.f32 %v2003, %v2043
        %v2108 = vadd.f32 %v2008, %v2044
        %v2109 = vadd.f32 %v2011, %v2045
        %vm2110 = vcmask 523264
        %v2111 = vsel %vm2110, %v2046, -inf
        %2112 = vmax.xlane.f32.xlu0 %v2111
        %v2113 = vpop.xlane.xlu0 %2112
        %v2114 = vsel %vm2110, %v2047, -inf
        %2115 = vmax.xlane.f32.xlu0 %v2114
        %v2116 = vpop.xlane.xlu0 %2115
        %v2117 = vsel %vm2110, %v2048, -inf
        %2118 = vmax.xlane.f32.xlu0 %v2117
        %v2119 = vpop.xlane.xlu0 %2118
        %v2120 = vsel %vm2110, %v2049, -inf
        %2121 = vmax.xlane.f32.xlu0 %v2120
        %v2122 = vpop.xlane.xlu0 %2121
        %v2123 = vsel %vm2110, %v2050, -inf
        %2124 = vmax.xlane.f32.xlu0 %v2123
        %v2125 = vpop.xlane.xlu0 %2124
        %v2126 = vsel %vm2110, %v2051, -inf
        %2127 = vmax.xlane.f32.xlu0 %v2126
        %v2128 = vpop.xlane.xlu0 %2127
        %v2129 = vsel %vm2110, %v2052, -inf
        %2130 = vmax.xlane.f32.xlu0 %v2129
        %v2131 = vpop.xlane.xlu0 %2130
        %v2132 = vsel %vm2110, %v2053, -inf
        %2133 = vmax.xlane.f32.xlu0 %v2132
        %v2134 = vpop.xlane.xlu0 %2133
        %v2135 = vsel %vm2110, %v2054, -inf
        %2136 = vmax.xlane.f32.xlu0 %v2135
        %v2137 = vpop.xlane.xlu0 %2136
        %v2138 = vsel %vm2110, %v2055, -inf
        %2139 = vmax.xlane.f32.xlu0 %v2138
        %v2140 = vpop.xlane.xlu0 %2139
        %v2141 = vsel %vm2110, %v2056, -inf
        %2142 = vmax.xlane.f32.xlu0 %v2141
        %v2143 = vpop.xlane.xlu0 %2142
        %v2144 = vsel %vm2110, %v2057, -inf
        %2145 = vmax.xlane.f32.xlu0 %v2144
        %v2146 = vpop.xlane.xlu0 %2145
        %v2147 = vsel %vm2110, %v2058, -inf
        %2148 = vmax.xlane.f32.xlu0 %v2147
        %v2149 = vpop.xlane.xlu0 %2148
        %v2150 = vsel %vm2110, %v2059, -inf
        %2151 = vmax.xlane.f32.xlu0 %v2150
        %v2152 = vpop.xlane.xlu0 %2151
        %v2153 = vsel %vm2110, %v2060, -inf
        %2154 = vmax.xlane.f32.xlu0 %v2153
        %v2155 = vpop.xlane.xlu0 %2154
        %v2156 = vsel %vm2110, %v2061, -inf
        %2157 = vmax.xlane.f32.xlu0 %v2156
        %v2158 = vpop.xlane.xlu0 %2157
        %v2159 = vsel %vm2110, %v2062, -inf
        %2160 = vmax.xlane.f32.xlu0 %v2159
        %v2161 = vpop.xlane.xlu0 %2160
        %v2162 = vsel %vm2110, %v2063, -inf
        %2163 = vmax.xlane.f32.xlu0 %v2162
        %v2164 = vpop.xlane.xlu0 %2163
        %v2165 = vsel %vm2110, %v2064, -inf
        %2166 = vmax.xlane.f32.xlu0 %v2165
        %v2167 = vpop.xlane.xlu0 %2166
        %v2168 = vsel %vm2110, %v2065, -inf
        %2169 = vmax.xlane.f32.xlu0 %v2168
        %v2170 = vpop.xlane.xlu0 %2169
        %v2171 = vsel %vm2110, %v2066, -inf
        %2172 = vmax.xlane.f32.xlu0 %v2171
        %v2173 = vpop.xlane.xlu0 %2172
        %v2174 = vsel %vm2110, %v2067, -inf
        %2175 = vmax.xlane.f32.xlu0 %v2174
        %v2176 = vpop.xlane.xlu0 %2175
        %v2177 = vsel %vm2110, %v2068, -inf
        %2178 = vmax.xlane.f32.xlu0 %v2177
        %v2179 = vpop.xlane.xlu0 %2178
        %v2180 = vsel %vm2110, %v2069, -inf
        %2181 = vmax.xlane.f32.xlu0 %v2180
        %v2182 = vpop.xlane.xlu0 %2181
        %v2183 = vsel %vm2110, %v2070, -inf
        %2184 = vmax.xlane.f32.xlu0 %v2183
        %v2185 = vpop.xlane.xlu0 %2184
        %v2186 = vsel %vm2110, %v2071, -inf
        %2187 = vmax.xlane.f32.xlu0 %v2186
        %v2188 = vpop.xlane.xlu0 %2187
        %v2189 = vsel %vm2110, %v2072, -inf
        %2190 = vmax.xlane.f32.xlu0 %v2189
        %v2191 = vpop.xlane.xlu0 %2190
        %v2192 = vsel %vm2110, %v2073, -inf
        %2193 = vmax.xlane.f32.xlu0 %v2192
        %v2194 = vpop.xlane.xlu0 %2193
        %v2195 = vsel %vm2110, %v2074, -inf
        %2196 = vmax.xlane.f32.xlu0 %v2195
        %v2197 = vpop.xlane.xlu0 %2196
        %v2198 = vsel %vm2110, %v2075, -inf
        %2199 = vmax.xlane.f32.xlu0 %v2198
        %v2200 = vpop.xlane.xlu0 %2199
        %v2201 = vsel %vm2110, %v2076, -inf
        %2202 = vmax.xlane.f32.xlu0 %v2201
        %v2203 = vpop.xlane.xlu0 %2202
        %v2204 = vsel %vm2110, %v2077, -inf
        %2205 = vmax.xlane.f32.xlu0 %v2204
        %v2206 = vpop.xlane.xlu0 %2205
        %v2207 = vsel %vm2110, %v2078, -inf
        %2208 = vmax.xlane.f32.xlu0 %v2207
        %v2209 = vpop.xlane.xlu0 %2208
        %v2210 = vsel %vm2110, %v2079, -inf
        %2211 = vmax.xlane.f32.xlu0 %v2210
        %v2212 = vpop.xlane.xlu0 %2211
        %v2213 = vsel %vm2110, %v2080, -inf
        %2214 = vmax.xlane.f32.xlu0 %v2213
        %v2215 = vpop.xlane.xlu0 %2214
        %v2216 = vsel %vm2110, %v2081, -inf
        %2217 = vmax.xlane.f32.xlu0 %v2216
        %v2218 = vpop.xlane.xlu0 %2217
        %v2219 = vsel %vm2110, %v2082, -inf
        %2220 = vmax.xlane.f32.xlu0 %v2219
        %v2221 = vpop.xlane.xlu0 %2220
        %v2222 = vsel %vm2110, %v2083, -inf
        %2223 = vmax.xlane.f32.xlu0 %v2222
        %v2224 = vpop.xlane.xlu0 %2223
        %v2225 = vsel %vm2110, %v2084, -inf
        %2226 = vmax.xlane.f32.xlu0 %v2225
        %v2227 = vpop.xlane.xlu0 %2226
        %v2228 = vsel %vm2110, %v2085, -inf
        %2229 = vmax.xlane.f32.xlu0 %v2228
        %v2230 = vpop.xlane.xlu0 %2229
        %v2231 = vsel %vm2110, %v2086, -inf
        %2232 = vmax.xlane.f32.xlu0 %v2231
        %v2233 = vpop.xlane.xlu0 %2232
        %v2234 = vsel %vm2110, %v2087, -inf
        %2235 = vmax.xlane.f32.xlu0 %v2234
        %v2236 = vpop.xlane.xlu0 %2235
        %v2237 = vsel %vm2110, %v2088, -inf
        %2238 = vmax.xlane.f32.xlu0 %v2237
        %v2239 = vpop.xlane.xlu0 %2238
        %v2240 = vsel %vm2110, %v2089, -inf
        %2241 = vmax.xlane.f32.xlu0 %v2240
        %v2242 = vpop.xlane.xlu0 %2241
        %v2243 = vsel %vm2110, %v2090, -inf
        %2244 = vmax.xlane.f32.xlu0 %v2243
        %v2245 = vpop.xlane.xlu0 %2244
        %v2246 = vsel %vm2110, %v2091, -inf
        %2247 = vmax.xlane.f32.xlu0 %v2246
        %v2248 = vpop.xlane.xlu0 %2247
        %v2249 = vsel %vm2110, %v2092, -inf
        %2250 = vmax.xlane.f32.xlu0 %v2249
        %v2251 = vpop.xlane.xlu0 %2250
        %v2252 = vsel %vm2110, %v2093, -inf
        %2253 = vmax.xlane.f32.xlu0 %v2252
        %v2254 = vpop.xlane.xlu0 %2253
        %v2255 = vsel %vm2110, %v2094, -inf
        %2256 = vmax.xlane.f32.xlu0 %v2255
        %v2257 = vpop.xlane.xlu0 %2256
        %v2258 = vsel %vm2110, %v2095, -inf
        %2259 = vmax.xlane.f32.xlu0 %v2258
        %v2260 = vpop.xlane.xlu0 %2259
        %v2261 = vsel %vm2110, %v2096, -inf
        %2262 = vmax.xlane.f32.xlu0 %v2261
        %v2263 = vpop.xlane.xlu0 %2262
        %v2264 = vsel %vm2110, %v2097, -inf
        %2265 = vmax.xlane.f32.xlu0 %v2264
        %v2266 = vpop.xlane.xlu0 %2265
        %v2267 = vsel %vm2110, %v2098, -inf
        %2268 = vmax.xlane.f32.xlu0 %v2267
        %v2269 = vpop.xlane.xlu0 %2268
        %v2270 = vsel %vm2110, %v2099, -inf
        %2271 = vmax.xlane.f32.xlu0 %v2270
        %v2272 = vpop.xlane.xlu0 %2271
        %v2273 = vsel %vm2110, %v2100, -inf
        %2274 = vmax.xlane.f32.xlu0 %v2273
        %v2275 = vpop.xlane.xlu0 %2274
        %v2276 = vsel %vm2110, %v2101, -inf
        %2277 = vmax.xlane.f32.xlu0 %v2276
        %v2278 = vpop.xlane.xlu0 %2277
        %v2279 = vsel %vm2110, %v2102, -inf
        %2280 = vmax.xlane.f32.xlu0 %v2279
        %v2281 = vpop.xlane.xlu0 %2280
        %v2282 = vsel %vm2110, %v2103, -inf
        %2283 = vmax.xlane.f32.xlu0 %v2282
        %v2284 = vpop.xlane.xlu0 %2283
        %v2285 = vsel %vm2110, %v2104, -inf
        %2286 = vmax.xlane.f32.xlu0 %v2285
        %v2287 = vpop.xlane.xlu0 %2286
        %v2288 = vsel %vm2110, %v2105, -inf
        %2289 = vmax.xlane.f32.xlu0 %v2288
        %v2290 = vpop.xlane.xlu0 %2289
        %v2291 = vsel %vm2110, %v2106, -inf
        %2292 = vmax.xlane.f32.xlu0 %v2291
        %v2293 = vpop.xlane.xlu0 %2292
        %v2294 = vsel %vm2110, %v2107, -inf
        %2295 = vmax.xlane.f32.xlu0 %v2294
        %v2296 = vpop.xlane.xlu0 %2295
        %v2297 = vsel %vm2110, %v2108, -inf
        %2298 = vmax.xlane.f32.xlu0 %v2297
        %v2299 = vpop.xlane.xlu0 %2298
        %v2300 = vsel %vm2110, %v2109, -inf
        %2301 = vmax.xlane.f32.xlu0 %v2300
        %v2302 = vpop.xlane.xlu0 %2301
        %v2303 = vsub.f32 %v2046, %v2113
        %v2304 = vsub.f32 %v2047, %v2116
        %v2305 = vsub.f32 %v2048, %v2119
        %v2306 = vsub.f32 %v2049, %v2122
        %v2307 = vsub.f32 %v2050, %v2125
        %v2308 = vsub.f32 %v2051, %v2128
        %v2309 = vsub.f32 %v2052, %v2131
        %v2310 = vsub.f32 %v2053, %v2134
        %v2311 = vsub.f32 %v2054, %v2137
        %v2312 = vsub.f32 %v2055, %v2140
        %v2313 = vsub.f32 %v2056, %v2143
        %v2314 = vsub.f32 %v2057, %v2146
        %v2315 = vsub.f32 %v2058, %v2149
        %v2316 = vsub.f32 %v2059, %v2152
        %v2317 = vsub.f32 %v2060, %v2155
        %v2318 = vsub.f32 %v2061, %v2158
        %v2319 = vsub.f32 %v2062, %v2161
        %v2320 = vsub.f32 %v2063, %v2164
        %v2321 = vsub.f32 %v2064, %v2167
        %v2322 = vsub.f32 %v2065, %v2170
        %v2323 = vsub.f32 %v2066, %v2173
        %v2324 = vsub.f32 %v2067, %v2176
        %v2325 = vsub.f32 %v2068, %v2179
        %v2326 = vsub.f32 %v2069, %v2182
        %v2327 = vsub.f32 %v2070, %v2185
        %v2328 = vsub.f32 %v2071, %v2188
        %v2329 = vsub.f32 %v2072, %v2191
        %v2330 = vsub.f32 %v2073, %v2194
        %v2331 = vsub.f32 %v2074, %v2197
        %v2332 = vsub.f32 %v2075, %v2200
        %v2333 = vsub.f32 %v2076, %v2203
        %v2334 = vsub.f32 %v2077, %v2206
        %v2335 = vsub.f32 %v2078, %v2209
        %v2336 = vsub.f32 %v2079, %v2212
        %v2337 = vsub.f32 %v2080, %v2215
        %v2338 = vsub.f32 %v2081, %v2218
        %v2339 = vsub.f32 %v2082, %v2221
        %v2340 = vsub.f32 %v2083, %v2224
        %v2341 = vsub.f32 %v2084, %v2227
        %v2342 = vsub.f32 %v2085, %v2230
        %v2343 = vsub.f32 %v2086, %v2233
        %v2344 = vsub.f32 %v2087, %v2236
        %v2345 = vsub.f32 %v2088, %v2239
        %v2346 = vsub.f32 %v2089, %v2242
        %v2347 = vsub.f32 %v2090, %v2245
        %v2348 = vsub.f32 %v2091, %v2248
        %v2349 = vsub.f32 %v2092, %v2251
        %v2350 = vsub.f32 %v2093, %v2254
        %v2351 = vsub.f32 %v2094, %v2257
        %v2352 = vsub.f32 %v2095, %v2260
        %v2353 = vsub.f32 %v2096, %v2263
        %v2354 = vsub.f32 %v2097, %v2266
        %v2355 = vsub.f32 %v2098, %v2269
        %v2356 = vsub.f32 %v2099, %v2272
        %v2357 = vsub.f32 %v2100, %v2275
        %v2358 = vsub.f32 %v2101, %v2278
        %v2359 = vsub.f32 %v2102, %v2281
        %v2360 = vsub.f32 %v2103, %v2284
        %v2361 = vsub.f32 %v2104, %v2287
        %v2362 = vsub.f32 %v2105, %v2290
        %v2363 = vsub.f32 %v2106, %v2293
        %v2364 = vsub.f32 %v2107, %v2296
        %v2365 = vsub.f32 %v2108, %v2299
        %v2366 = vsub.f32 %v2109, %v2302
        %v2367 = vmul.f32 %v2303, 1.442695
        %v2368 = vpow.pop %v2367
        %v2369 = vmul.f32 %v2304, 1.442695
        %v2370 = vpow.pop %v2369
        %v2371 = vmul.f32 %v2305, 1.442695
        %v2372 = vpow.pop %v2371
        %v2373 = vmul.f32 %v2306, 1.442695
        %v2374 = vpow.pop %v2373
        %v2375 = vmul.f32 %v2307, 1.442695
        %v2376 = vpow.pop %v2375
        %v2377 = vmul.f32 %v2308, 1.442695
        %v2378 = vpow.pop %v2377
        %v2379 = vmul.f32 %v2309, 1.442695
        %v2380 = vpow.pop %v2379
        %v2381 = vmul.f32 %v2310, 1.442695
        %v2382 = vpow.pop %v2381
        %v2383 = vmul.f32 %v2311, 1.442695
        %v2384 = vpow.pop %v2383
        %v2385 = vmul.f32 %v2312, 1.442695
        %v2386 = vpow.pop %v2385
        %v2387 = vmul.f32 %v2313, 1.442695
        %v2388 = vpow.pop %v2387
        %v2389 = vmul.f32 %v2314, 1.442695
        %v2390 = vpow.pop %v2389
        %v2391 = vmul.f32 %v2315, 1.442695
        %v2392 = vpow.pop %v2391
        %v2393 = vmul.f32 %v2316, 1.442695
        %v2394 = vpow.pop %v2393
        %v2395 = vmul.f32 %v2317, 1.442695
        %v2396 = vpow.pop %v2395
        %v2397 = vmul.f32 %v2318, 1.442695
        %v2398 = vpow.pop %v2397
        %v2399 = vmul.f32 %v2319, 1.442695
        %v2400 = vpow.pop %v2399
        %v2401 = vmul.f32 %v2320, 1.442695
        %v2402 = vpow.pop %v2401
        %v2403 = vmul.f32 %v2321, 1.442695
        %v2404 = vpow.pop %v2403
        %v2405 = vmul.f32 %v2322, 1.442695
        %v2406 = vpow.pop %v2405
        %v2407 = vmul.f32 %v2323, 1.442695
        %v2408 = vpow.pop %v2407
        %v2409 = vmul.f32 %v2324, 1.442695
        %v2410 = vpow.pop %v2409
        %v2411 = vmul.f32 %v2325, 1.442695
        %v2412 = vpow.pop %v2411
        %v2413 = vmul.f32 %v2326, 1.442695
        %v2414 = vpow.pop %v2413
        %v2415 = vmul.f32 %v2327, 1.442695
        %v2416 = vpow.pop %v2415
        %v2417 = vmul.f32 %v2328, 1.442695
        %v2418 = vpow.pop %v2417
        %v2419 = vmul.f32 %v2329, 1.442695
        %v2420 = vpow.pop %v2419
        %v2421 = vmul.f32 %v2330, 1.442695
        %v2422 = vpow.pop %v2421
        %v2423 = vmul.f32 %v2331, 1.442695
        %v2424 = vpow.pop %v2423
        %v2425 = vmul.f32 %v2332, 1.442695
        %v2426 = vpow.pop %v2425
        %v2427 = vmul.f32 %v2333, 1.442695
        %v2428 = vpow.pop %v2427
        %v2429 = vmul.f32 %v2334, 1.442695
        %v2430 = vpow.pop %v2429
        %v2431 = vmul.f32 %v2335, 1.442695
        %v2432 = vpow.pop %v2431
        %v2433 = vmul.f32 %v2336, 1.442695
        %v2434 = vpow.pop %v2433
        %v2435 = vmul.f32 %v2337, 1.442695
        %v2436 = vpow.pop %v2435
        %v2437 = vmul.f32 %v2338, 1.442695
        %v2438 = vpow.pop %v2437
        %v2439 = vmul.f32 %v2339, 1.442695
        %v2440 = vpow.pop %v2439
        %v2441 = vmul.f32 %v2340, 1.442695
        %v2442 = vpow.pop %v2441
        %v2443 = vmul.f32 %v2341, 1.442695
        %v2444 = vpow.pop %v2443
        %v2445 = vmul.f32 %v2342, 1.442695
        %v2446 = vpow.pop %v2445
        %v2447 = vmul.f32 %v2343, 1.442695
        %v2448 = vpow.pop %v2447
        %v2449 = vmul.f32 %v2344, 1.442695
        %v2450 = vpow.pop %v2449
        %v2451 = vmul.f32 %v2345, 1.442695
        %v2452 = vpow.pop %v2451
        %v2453 = vmul.f32 %v2346, 1.442695
        %v2454 = vpow.pop %v2453
        %v2455 = vmul.f32 %v2347, 1.442695
        %v2456 = vpow.pop %v2455
        %v2457 = vmul.f32 %v2348, 1.442695
        %v2458 = vpow.pop %v2457
        %v2459 = vmul.f32 %v2349, 1.442695
        %v2460 = vpow.pop %v2459
        %v2461 = vmul.f32 %v2350, 1.442695
        %v2462 = vpow.pop %v2461
        %v2463 = vmul.f32 %v2351, 1.442695
        %v2464 = vpow.pop %v2463
        %v2465 = vmul.f32 %v2352, 1.442695
        %v2466 = vpow.pop %v2465
        %v2467 = vmul.f32 %v2353, 1.442695
        %v2468 = vpow.pop %v2467
        %v2469 = vmul.f32 %v2354, 1.442695
        %v2470 = vpow.pop %v2469
        %v2471 = vmul.f32 %v2355, 1.442695
        %v2472 = vpow.pop %v2471
        %v2473 = vmul.f32 %v2356, 1.442695
        %v2474 = vpow.pop %v2473
        %v2475 = vmul.f32 %v2357, 1.442695
        %v2476 = vpow.pop %v2475
        %v2477 = vmul.f32 %v2358, 1.442695
        %v2478 = vpow.pop %v2477
        %v2479 = vmul.f32 %v2359, 1.442695
        %v2480 = vpow.pop %v2479
        %v2481 = vmul.f32 %v2360, 1.442695
        %v2482 = vpow.pop %v2481
        %v2483 = vmul.f32 %v2361, 1.442695
        %v2484 = vpow.pop %v2483
        %v2485 = vmul.f32 %v2362, 1.442695
        %v2486 = vpow.pop %v2485
        %v2487 = vmul.f32 %v2363, 1.442695
        %v2488 = vpow.pop %v2487
        %v2489 = vmul.f32 %v2364, 1.442695
        %v2490 = vpow.pop %v2489
        %v2491 = vmul.f32 %v2365, 1.442695
        %v2492 = vpow.pop %v2491
        %v2493 = vmul.f32 %v2366, 1.442695
        %v2494 = vpow.pop %v2493
        %v2495 = vsel %vm2110, %v2368, 0.0
        %2496 = vadd.xlane.f32.xlu0 %v2495
        %v2497 = vpop.xlane.xlu0 %2496
        %v2498 = vsel %vm2110, %v2370, 0.0
        %2499 = vadd.xlane.f32.xlu0 %v2498
        %v2500 = vpop.xlane.xlu0 %2499
        %v2501 = vsel %vm2110, %v2372, 0.0
        %2502 = vadd.xlane.f32.xlu0 %v2501
        %v2503 = vpop.xlane.xlu0 %2502
        %v2504 = vsel %vm2110, %v2374, 0.0
        %2505 = vadd.xlane.f32.xlu0 %v2504
        %v2506 = vpop.xlane.xlu0 %2505
        %v2507 = vsel %vm2110, %v2376, 0.0
        %2508 = vadd.xlane.f32.xlu0 %v2507
        %v2509 = vpop.xlane.xlu0 %2508
        %v2510 = vsel %vm2110, %v2378, 0.0
        %2511 = vadd.xlane.f32.xlu0 %v2510
        %v2512 = vpop.xlane.xlu0 %2511
        %v2513 = vsel %vm2110, %v2380, 0.0
        %2514 = vadd.xlane.f32.xlu0 %v2513
        %v2515 = vpop.xlane.xlu0 %2514
        %v2516 = vsel %vm2110, %v2382, 0.0
        %2517 = vadd.xlane.f32.xlu0 %v2516
        %v2518 = vpop.xlane.xlu0 %2517
        %v2519 = vsel %vm2110, %v2384, 0.0
        %2520 = vadd.xlane.f32.xlu0 %v2519
        %v2521 = vpop.xlane.xlu0 %2520
        %v2522 = vsel %vm2110, %v2386, 0.0
        %2523 = vadd.xlane.f32.xlu0 %v2522
        %v2524 = vpop.xlane.xlu0 %2523
        %v2525 = vsel %vm2110, %v2388, 0.0
        %2526 = vadd.xlane.f32.xlu0 %v2525
        %v2527 = vpop.xlane.xlu0 %2526
        %v2528 = vsel %vm2110, %v2390, 0.0
        %2529 = vadd.xlane.f32.xlu0 %v2528
        %v2530 = vpop.xlane.xlu0 %2529
        %v2531 = vsel %vm2110, %v2392, 0.0
        %2532 = vadd.xlane.f32.xlu0 %v2531
        %v2533 = vpop.xlane.xlu0 %2532
        %v2534 = vsel %vm2110, %v2394, 0.0
        %2535 = vadd.xlane.f32.xlu0 %v2534
        %v2536 = vpop.xlane.xlu0 %2535
        %v2537 = vsel %vm2110, %v2396, 0.0
        %2538 = vadd.xlane.f32.xlu0 %v2537
        %v2539 = vpop.xlane.xlu0 %2538
        %v2540 = vsel %vm2110, %v2398, 0.0
        %2541 = vadd.xlane.f32.xlu0 %v2540
        %v2542 = vpop.xlane.xlu0 %2541
        %v2543 = vsel %vm2110, %v2400, 0.0
        %2544 = vadd.xlane.f32.xlu0 %v2543
        %v2545 = vpop.xlane.xlu0 %2544
        %v2546 = vsel %vm2110, %v2402, 0.0
        %2547 = vadd.xlane.f32.xlu0 %v2546
        %v2548 = vpop.xlane.xlu0 %2547
        %v2549 = vsel %vm2110, %v2404, 0.0
        %2550 = vadd.xlane.f32.xlu0 %v2549
        %v2551 = vpop.xlane.xlu0 %2550
        %v2552 = vsel %vm2110, %v2406, 0.0
        %2553 = vadd.xlane.f32.xlu0 %v2552
        %v2554 = vpop.xlane.xlu0 %2553
        %v2555 = vsel %vm2110, %v2408, 0.0
        %2556 = vadd.xlane.f32.xlu0 %v2555
        %v2557 = vpop.xlane.xlu0 %2556
        %v2558 = vsel %vm2110, %v2410, 0.0
        %2559 = vadd.xlane.f32.xlu0 %v2558
        %v2560 = vpop.xlane.xlu0 %2559
        %v2561 = vsel %vm2110, %v2412, 0.0
        %2562 = vadd.xlane.f32.xlu0 %v2561
        %v2563 = vpop.xlane.xlu0 %2562
        %v2564 = vsel %vm2110, %v2414, 0.0
        %2565 = vadd.xlane.f32.xlu0 %v2564
        %v2566 = vpop.xlane.xlu0 %2565
        %v2567 = vsel %vm2110, %v2416, 0.0
        %2568 = vadd.xlane.f32.xlu0 %v2567
        %v2569 = vpop.xlane.xlu0 %2568
        %v2570 = vsel %vm2110, %v2418, 0.0
        %2571 = vadd.xlane.f32.xlu0 %v2570
        %v2572 = vpop.xlane.xlu0 %2571
        %v2573 = vsel %vm2110, %v2420, 0.0
        %2574 = vadd.xlane.f32.xlu0 %v2573
        %v2575 = vpop.xlane.xlu0 %2574
        %v2576 = vsel %vm2110, %v2422, 0.0
        %2577 = vadd.xlane.f32.xlu0 %v2576
        %v2578 = vpop.xlane.xlu0 %2577
        %v2579 = vsel %vm2110, %v2424, 0.0
        %2580 = vadd.xlane.f32.xlu0 %v2579
        %v2581 = vpop.xlane.xlu0 %2580
        %v2582 = vsel %vm2110, %v2426, 0.0
        %2583 = vadd.xlane.f32.xlu0 %v2582
        %v2584 = vpop.xlane.xlu0 %2583
        %v2585 = vsel %vm2110, %v2428, 0.0
        %2586 = vadd.xlane.f32.xlu0 %v2585
        %v2587 = vpop.xlane.xlu0 %2586
        %v2588 = vsel %vm2110, %v2430, 0.0
        %2589 = vadd.xlane.f32.xlu0 %v2588
        %v2590 = vpop.xlane.xlu0 %2589
        %v2591 = vsel %vm2110, %v2432, 0.0
        %2592 = vadd.xlane.f32.xlu0 %v2591
        %v2593 = vpop.xlane.xlu0 %2592
        %v2594 = vsel %vm2110, %v2434, 0.0
        %2595 = vadd.xlane.f32.xlu0 %v2594
        %v2596 = vpop.xlane.xlu0 %2595
        %v2597 = vsel %vm2110, %v2436, 0.0
        %2598 = vadd.xlane.f32.xlu0 %v2597
        %v2599 = vpop.xlane.xlu0 %2598
        %v2600 = vsel %vm2110, %v2438, 0.0
        %2601 = vadd.xlane.f32.xlu0 %v2600
        %v2602 = vpop.xlane.xlu0 %2601
        %v2603 = vsel %vm2110, %v2440, 0.0
        %2604 = vadd.xlane.f32.xlu0 %v2603
        %v2605 = vpop.xlane.xlu0 %2604
        %v2606 = vsel %vm2110, %v2442, 0.0
        %2607 = vadd.xlane.f32.xlu0 %v2606
        %v2608 = vpop.xlane.xlu0 %2607
        %v2609 = vsel %vm2110, %v2444, 0.0
        %2610 = vadd.xlane.f32.xlu0 %v2609
        %v2611 = vpop.xlane.xlu0 %2610
        %v2612 = vsel %vm2110, %v2446, 0.0
        %2613 = vadd.xlane.f32.xlu0 %v2612
        %v2614 = vpop.xlane.xlu0 %2613
        %v2615 = vsel %vm2110, %v2448, 0.0
        %2616 = vadd.xlane.f32.xlu0 %v2615
        %v2617 = vpop.xlane.xlu0 %2616
        %v2618 = vsel %vm2110, %v2450, 0.0
        %2619 = vadd.xlane.f32.xlu0 %v2618
        %v2620 = vpop.xlane.xlu0 %2619
        %v2621 = vsel %vm2110, %v2452, 0.0
        %2622 = vadd.xlane.f32.xlu0 %v2621
        %v2623 = vpop.xlane.xlu0 %2622
        %v2624 = vsel %vm2110, %v2454, 0.0
        %2625 = vadd.xlane.f32.xlu0 %v2624
        %v2626 = vpop.xlane.xlu0 %2625
        %v2627 = vsel %vm2110, %v2456, 0.0
        %2628 = vadd.xlane.f32.xlu0 %v2627
        %v2629 = vpop.xlane.xlu0 %2628
        %v2630 = vsel %vm2110, %v2458, 0.0
        %2631 = vadd.xlane.f32.xlu0 %v2630
        %v2632 = vpop.xlane.xlu0 %2631
        %v2633 = vsel %vm2110, %v2460, 0.0
        %2634 = vadd.xlane.f32.xlu0 %v2633
        %v2635 = vpop.xlane.xlu0 %2634
        %v2636 = vsel %vm2110, %v2462, 0.0
        %2637 = vadd.xlane.f32.xlu0 %v2636
        %v2638 = vpop.xlane.xlu0 %2637
        %v2639 = vsel %vm2110, %v2464, 0.0
        %2640 = vadd.xlane.f32.xlu0 %v2639
        %v2641 = vpop.xlane.xlu0 %2640
        %v2642 = vsel %vm2110, %v2466, 0.0
        %2643 = vadd.xlane.f32.xlu0 %v2642
        %v2644 = vpop.xlane.xlu0 %2643
        %v2645 = vsel %vm2110, %v2468, 0.0
        %2646 = vadd.xlane.f32.xlu0 %v2645
        %v2647 = vpop.xlane.xlu0 %2646
        %v2648 = vsel %vm2110, %v2470, 0.0
        %2649 = vadd.xlane.f32.xlu0 %v2648
        %v2650 = vpop.xlane.xlu0 %2649
        %v2651 = vsel %vm2110, %v2472, 0.0
        %2652 = vadd.xlane.f32.xlu0 %v2651
        %v2653 = vpop.xlane.xlu0 %2652
        %v2654 = vsel %vm2110, %v2474, 0.0
        %2655 = vadd.xlane.f32.xlu0 %v2654
        %v2656 = vpop.xlane.xlu0 %2655
        %v2657 = vsel %vm2110, %v2476, 0.0
        %2658 = vadd.xlane.f32.xlu0 %v2657
        %v2659 = vpop.xlane.xlu0 %2658
        %v2660 = vsel %vm2110, %v2478, 0.0
        %2661 = vadd.xlane.f32.xlu0 %v2660
        %v2662 = vpop.xlane.xlu0 %2661
        %v2663 = vsel %vm2110, %v2480, 0.0
        %2664 = vadd.xlane.f32.xlu0 %v2663
        %v2665 = vpop.xlane.xlu0 %2664
        %v2666 = vsel %vm2110, %v2482, 0.0
        %2667 = vadd.xlane.f32.xlu0 %v2666
        %v2668 = vpop.xlane.xlu0 %2667
        %v2669 = vsel %vm2110, %v2484, 0.0
        %2670 = vadd.xlane.f32.xlu0 %v2669
        %v2671 = vpop.xlane.xlu0 %2670
        %v2672 = vsel %vm2110, %v2486, 0.0
        %2673 = vadd.xlane.f32.xlu0 %v2672
        %v2674 = vpop.xlane.xlu0 %2673
        %v2675 = vsel %vm2110, %v2488, 0.0
        %2676 = vadd.xlane.f32.xlu0 %v2675
        %v2677 = vpop.xlane.xlu0 %2676
        %v2678 = vsel %vm2110, %v2490, 0.0
        %2679 = vadd.xlane.f32.xlu0 %v2678
        %v2680 = vpop.xlane.xlu0 %2679
        %v2681 = vsel %vm2110, %v2492, 0.0
        %2682 = vadd.xlane.f32.xlu0 %v2681
        %v2683 = vpop.xlane.xlu0 %2682
        %v2684 = vsel %vm2110, %v2494, 0.0
        %2685 = vadd.xlane.f32.xlu0 %v2684
        %v2686 = vpop.xlane.xlu0 %2685
        %v2687 = vpack.c.bf16 %v2370, %v2368
        %v2688 = vpack.c.bf16 %v2374, %v2372
        %v2689 = vpack.c.bf16 %v2378, %v2376
        %v2690 = vpack.c.bf16 %v2382, %v2380
        %v2691 = vpack.c.bf16 %v2386, %v2384
        %v2692 = vpack.c.bf16 %v2390, %v2388
        %v2693 = vpack.c.bf16 %v2394, %v2392
        %v2694 = vpack.c.bf16 %v2398, %v2396
        %v2695 = vpack.c.bf16 %v2402, %v2400
        %v2696 = vpack.c.bf16 %v2406, %v2404
        %v2697 = vpack.c.bf16 %v2410, %v2408
        %v2698 = vpack.c.bf16 %v2414, %v2412
        %v2699 = vpack.c.bf16 %v2418, %v2416
        %v2700 = vpack.c.bf16 %v2422, %v2420
        %v2701 = vpack.c.bf16 %v2426, %v2424
        %v2702 = vpack.c.bf16 %v2430, %v2428
        %v2703 = vpack.c.bf16 %v2434, %v2432
        %v2704 = vpack.c.bf16 %v2438, %v2436
        %v2705 = vpack.c.bf16 %v2442, %v2440
        %v2706 = vpack.c.bf16 %v2446, %v2444
        %v2707 = vpack.c.bf16 %v2450, %v2448
        %v2708 = vpack.c.bf16 %v2454, %v2452
        %v2709 = vpack.c.bf16 %v2458, %v2456
        %v2710 = vpack.c.bf16 %v2462, %v2460
        %v2711 = vpack.c.bf16 %v2466, %v2464
        %v2712 = vpack.c.bf16 %v2470, %v2468
        %v2713 = vpack.c.bf16 %v2474, %v2472
        %v2714 = vpack.c.bf16 %v2478, %v2476
        %v2715 = vpack.c.bf16 %v2482, %v2480
        %v2716 = vpack.c.bf16 %v2486, %v2484
        %v2717 = vpack.c.bf16 %v2490, %v2488
        %v2718 = vpack.c.bf16 %v2494, %v2492
        %v2720 = vsel %vm2110, %v2687, 0
        %v2723 = vsel %vm2110, %v2688, 0
        %v2726 = vsel %vm2110, %v2689, 0
        %v2729 = vsel %vm2110, %v2690, 0
        %2731 = vmatprep.subr.bf16.mxu0 0
        %2732 = vmatpush1.bf16.msra.mxu0 0
        %2733 = vmatprep.subr.bf16.mxu0 0
        %2734 = vmatpush1.bf16.msra.mxu0 0
        %2735 = vmatprep.subr.bf16.mxu0 0
        %2736 = vmatpush1.bf16.msra.mxu0 0
        %2737 = vmatprep.subr.bf16.mxu0 0
        %2738 = vmatpush1.bf16.msra.mxu0 0
        %2739 = vmatprep.subr.bf16.mxu0 0
        %2740 = vmatpush1.bf16.msra.mxu0 %v1104
        %2741 = vmatprep.subr.bf16.mxu0 0
        %2742 = vmatpush1.bf16.msra.mxu0 %v1103
        %2743 = vmatprep.subr.bf16.mxu0 0
        %2744 = vmatpush1.bf16.msra.mxu0 %v1102
        %2745 = vmatprep.subr.bf16.mxu0 0
        %2746 = vmatpush1.bf16.msra.mxu0 %v1101
        %2747 = vmatprep.subr.bf16.mxu0 0
        %2748 = vmatpush2.bf16.msra.mxu0 0
        %2749 = vmatprep.subr.bf16.mxu0 0
        %2750 = vmatpush2.bf16.msra.mxu0 0
        %2751 = vmatprep.subr.bf16.mxu0 0
        %2752 = vmatpush2.bf16.msra.mxu0 0
        %2753 = vmatprep.subr.bf16.mxu0 0
        %2754 = vmatpush2.bf16.msra.mxu0 0
        %2755 = vmatprep.subr.bf16.mxu0 0
        %2756 = vmatpush2.bf16.msra.mxu0 0
        %2757 = vmatprep.subr.bf16.mxu0 0
        %2758 = vmatpush2.bf16.msra.mxu0 0
        %2759 = vmatprep.subr.bf16.mxu0 0
        %2760 = vmatpush2.bf16.msra.mxu0 0
        %2761 = vmatprep.subr.bf16.mxu0 0
        %2762 = vmatpush2.bf16.msra.mxu0 0
        %2763 = vmatprep.mubr.bf16.mxu0 0
        %2764 = vmatmul.mubr.bf16.gmra.mxu0 %v2720
        %v2765 = vpop.f32.mrf.mxu0
        %v2766 = vadd.f32 0.0, %v2765
        %v2767 = vpop.f32.mrf.mxu0
        %v2768 = vpop.f32.mrf.mxu0
        %v2769 = vadd.f32 0.0, %v2768
        %v2770 = vpop.f32.mrf.mxu0
        %2771 = vmatprep.mubr.bf16.mxu0 0
        %2772 = vmatmul.mubr.bf16.gmra.mxu0 %v2723
        %v2773 = vpop.f32.mrf.mxu0
        %v2774 = vadd.f32 0.0, %v2773
        %v2775 = vpop.f32.mrf.mxu0
        %v2776 = vpop.f32.mrf.mxu0
        %v2777 = vadd.f32 0.0, %v2776
        %v2778 = vpop.f32.mrf.mxu0
        %2779 = vmatprep.mubr.bf16.mxu0 0
        %2780 = vmatmul.mubr.bf16.gmra.mxu0 %v2726
        %v2781 = vpop.f32.mrf.mxu0
        %v2782 = vadd.f32 0.0, %v2781
        %v2783 = vpop.f32.mrf.mxu0
        %v2784 = vpop.f32.mrf.mxu0
        %v2785 = vadd.f32 0.0, %v2784
        %v2786 = vpop.f32.mrf.mxu0
        %2787 = vmatprep.mubr.bf16.mxu0 0
        %2788 = vmatmul.mubr.bf16.gmra.mxu0 %v2729
        %v2789 = vpop.f32.mrf.mxu0
        %v2790 = vadd.f32 0.0, %v2789
        %v2791 = vpop.f32.mrf.mxu0
        %v2792 = vpop.f32.mrf.mxu0
        %v2793 = vadd.f32 0.0, %v2792
        %v2794 = vpop.f32.mrf.mxu0
        %2795 = vdwg.mxu0
        %v2797 = vsel %vm2110, %v2691, 0
        %v2800 = vsel %vm2110, %v2692, 0
        %v2803 = vsel %vm2110, %v2693, 0
        %v2806 = vsel %vm2110, %v2694, 0
        %2808 = vmatprep.subr.bf16.mxu0 0
        %2809 = vmatpush1.bf16.msra.mxu0 0
        %2810 = vmatprep.subr.bf16.mxu0 0
        %2811 = vmatpush1.bf16.msra.mxu0 0
        %2812 = vmatprep.subr.bf16.mxu0 0
        %2813 = vmatpush1.bf16.msra.mxu0 0
        %2814 = vmatprep.subr.bf16.mxu0 0
        %2815 = vmatpush1.bf16.msra.mxu0 0
        %2816 = vmatprep.subr.bf16.mxu0 0
        %2817 = vmatpush1.bf16.msra.mxu0 %v1108
        %2818 = vmatprep.subr.bf16.mxu0 0
        %2819 = vmatpush1.bf16.msra.mxu0 %v1107
        %2820 = vmatprep.subr.bf16.mxu0 0
        %2821 = vmatpush1.bf16.msra.mxu0 %v1106
        %2822 = vmatprep.subr.bf16.mxu0 0
        %2823 = vmatpush1.bf16.msra.mxu0 %v1105
        %2824 = vmatprep.subr.bf16.mxu0 0
        %2825 = vmatpush2.bf16.msra.mxu0 0
        %2826 = vmatprep.subr.bf16.mxu0 0
        %2827 = vmatpush2.bf16.msra.mxu0 0
        %2828 = vmatprep.subr.bf16.mxu0 0
        %2829 = vmatpush2.bf16.msra.mxu0 0
        %2830 = vmatprep.subr.bf16.mxu0 0
        %2831 = vmatpush2.bf16.msra.mxu0 0
        %2832 = vmatprep.subr.bf16.mxu0 0
        %2833 = vmatpush2.bf16.msra.mxu0 0
        %2834 = vmatprep.subr.bf16.mxu0 0
        %2835 = vmatpush2.bf16.msra.mxu0 0
        %2836 = vmatprep.subr.bf16.mxu0 0
        %2837 = vmatpush2.bf16.msra.mxu0 0
        %2838 = vmatprep.subr.bf16.mxu0 0
        %2839 = vmatpush2.bf16.msra.mxu0 0
        %2840 = vmatprep.mubr.bf16.mxu0 0
        %2841 = vmatmul.mubr.bf16.gmra.mxu0 %v2797
        %v2842 = vpop.f32.mrf.mxu0
        %v2843 = vadd.f32 0.0, %v2842
        %v2844 = vpop.f32.mrf.mxu0
        %v2845 = vpop.f32.mrf.mxu0
        %v2846 = vadd.f32 0.0, %v2845
        %v2847 = vpop.f32.mrf.mxu0
        %2848 = vmatprep.mubr.bf16.mxu0 0
        %2849 = vmatmul.mubr.bf16.gmra.mxu0 %v2800
        %v2850 = vpop.f32.mrf.mxu0
        %v2851 = vadd.f32 0.0, %v2850
        %v2852 = vpop.f32.mrf.mxu0
        %v2853 = vpop.f32.mrf.mxu0
        %v2854 = vadd.f32 0.0, %v2853
        %v2855 = vpop.f32.mrf.mxu0
        %2856 = vmatprep.mubr.bf16.mxu0 0
        %2857 = vmatmul.mubr.bf16.gmra.mxu0 %v2803
        %v2858 = vpop.f32.mrf.mxu0
        %v2859 = vadd.f32 0.0, %v2858
        %v2860 = vpop.f32.mrf.mxu0
        %v2861 = vpop.f32.mrf.mxu0
        %v2862 = vadd.f32 0.0, %v2861
        %v2863 = vpop.f32.mrf.mxu0
        %2864 = vmatprep.mubr.bf16.mxu0 0
        %2865 = vmatmul.mubr.bf16.gmra.mxu0 %v2806
        %v2866 = vpop.f32.mrf.mxu0
        %v2867 = vadd.f32 0.0, %v2866
        %v2868 = vpop.f32.mrf.mxu0
        %v2869 = vpop.f32.mrf.mxu0
        %v2870 = vadd.f32 0.0, %v2869
        %v2871 = vpop.f32.mrf.mxu0
        %2872 = vdwg.mxu0
        %v2874 = vsel %vm2110, %v2695, 0
        %v2877 = vsel %vm2110, %v2696, 0
        %v2880 = vsel %vm2110, %v2697, 0
        %v2883 = vsel %vm2110, %v2698, 0
        %2885 = vmatprep.subr.bf16.mxu0 0
        %2886 = vmatpush1.bf16.msra.mxu0 0
        %2887 = vmatprep.subr.bf16.mxu0 0
        %2888 = vmatpush1.bf16.msra.mxu0 0
        %2889 = vmatprep.subr.bf16.mxu0 0
        %2890 = vmatpush1.bf16.msra.mxu0 0
        %2891 = vmatprep.subr.bf16.mxu0 0
        %2892 = vmatpush1.bf16.msra.mxu0 0
        %2893 = vmatprep.subr.bf16.mxu0 0
        %2894 = vmatpush1.bf16.msra.mxu0 %v1236
        %2895 = vmatprep.subr.bf16.mxu0 0
        %2896 = vmatpush1.bf16.msra.mxu0 %v1234
        %2897 = vmatprep.subr.bf16.mxu0 0
        %2898 = vmatpush1.bf16.msra.mxu0 %v1232
        %2899 = vmatprep.subr.bf16.mxu0 0
        %2900 = vmatpush1.bf16.msra.mxu0 %v1230
        %2901 = vmatprep.subr.bf16.mxu0 0
        %2902 = vmatpush2.bf16.msra.mxu0 0
        %2903 = vmatprep.subr.bf16.mxu0 0
        %2904 = vmatpush2.bf16.msra.mxu0 0
        %2905 = vmatprep.subr.bf16.mxu0 0
        %2906 = vmatpush2.bf16.msra.mxu0 0
        %2907 = vmatprep.subr.bf16.mxu0 0
        %2908 = vmatpush2.bf16.msra.mxu0 0
        %2909 = vmatprep.subr.bf16.mxu0 0
        %2910 = vmatpush2.bf16.msra.mxu0 0
        %2911 = vmatprep.subr.bf16.mxu0 0
        %2912 = vmatpush2.bf16.msra.mxu0 0
        %2913 = vmatprep.subr.bf16.mxu0 0
        %2914 = vmatpush2.bf16.msra.mxu0 0
        %2915 = vmatprep.subr.bf16.mxu0 0
        %2916 = vmatpush2.bf16.msra.mxu0 0
        %2917 = vmatprep.mubr.bf16.mxu0 0
        %2918 = vmatmul.mubr.bf16.gmra.mxu0 %v2874
        %v2919 = vpop.f32.mrf.mxu0
        %v2920 = vadd.f32 0.0, %v2919
        %v2921 = vpop.f32.mrf.mxu0
        %v2922 = vpop.f32.mrf.mxu0
        %v2923 = vadd.f32 0.0, %v2922
        %v2924 = vpop.f32.mrf.mxu0
        %2925 = vmatprep.mubr.bf16.mxu0 0
        %2926 = vmatmul.mubr.bf16.gmra.mxu0 %v2877
        %v2927 = vpop.f32.mrf.mxu0
        %v2928 = vadd.f32 0.0, %v2927
        %v2929 = vpop.f32.mrf.mxu0
        %v2930 = vpop.f32.mrf.mxu0
        %v2931 = vadd.f32 0.0, %v2930
        %v2932 = vpop.f32.mrf.mxu0
        %2933 = vmatprep.mubr.bf16.mxu0 0
        %2934 = vmatmul.mubr.bf16.gmra.mxu0 %v2880
        %v2935 = vpop.f32.mrf.mxu0
        %v2936 = vadd.f32 0.0, %v2935
        %v2937 = vpop.f32.mrf.mxu0
        %v2938 = vpop.f32.mrf.mxu0
        %v2939 = vadd.f32 0.0, %v2938
        %v2940 = vpop.f32.mrf.mxu0
        %2941 = vmatprep.mubr.bf16.mxu0 0
        %2942 = vmatmul.mubr.bf16.gmra.mxu0 %v2883
        %v2943 = vpop.f32.mrf.mxu0
        %v2944 = vadd.f32 0.0, %v2943
        %v2945 = vpop.f32.mrf.mxu0
        %v2946 = vpop.f32.mrf.mxu0
        %v2947 = vadd.f32 0.0, %v2946
        %v2948 = vpop.f32.mrf.mxu0
        %2949 = vdwg.mxu0
        %v2951 = vsel %vm2110, %v2699, 0
        %v2954 = vsel %vm2110, %v2700, 0
        %v2957 = vsel %vm2110, %v2701, 0
        %v2960 = vsel %vm2110, %v2702, 0
        %2962 = vmatprep.subr.bf16.mxu0 0
        %2963 = vmatpush1.bf16.msra.mxu0 0
        %2964 = vmatprep.subr.bf16.mxu0 0
        %2965 = vmatpush1.bf16.msra.mxu0 0
        %2966 = vmatprep.subr.bf16.mxu0 0
        %2967 = vmatpush1.bf16.msra.mxu0 0
        %2968 = vmatprep.subr.bf16.mxu0 0
        %2969 = vmatpush1.bf16.msra.mxu0 0
        %2970 = vmatprep.subr.bf16.mxu0 0
        %2971 = vmatpush1.bf16.msra.mxu0 %v1244
        %2972 = vmatprep.subr.bf16.mxu0 0
        %2973 = vmatpush1.bf16.msra.mxu0 %v1242
        %2974 = vmatprep.subr.bf16.mxu0 0
        %2975 = vmatpush1.bf16.msra.mxu0 %v1240
        %2976 = vmatprep.subr.bf16.mxu0 0
        %2977 = vmatpush1.bf16.msra.mxu0 %v1238
        %2978 = vmatprep.subr.bf16.mxu0 0
        %2979 = vmatpush2.bf16.msra.mxu0 0
        %2980 = vmatprep.subr.bf16.mxu0 0
        %2981 = vmatpush2.bf16.msra.mxu0 0
        %2982 = vmatprep.subr.bf16.mxu0 0
        %2983 = vmatpush2.bf16.msra.mxu0 0
        %2984 = vmatprep.subr.bf16.mxu0 0
        %2985 = vmatpush2.bf16.msra.mxu0 0
        %2986 = vmatprep.subr.bf16.mxu0 0
        %2987 = vmatpush2.bf16.msra.mxu0 0
        %2988 = vmatprep.subr.bf16.mxu0 0
        %2989 = vmatpush2.bf16.msra.mxu0 0
        %2990 = vmatprep.subr.bf16.mxu0 0
        %2991 = vmatpush2.bf16.msra.mxu0 0
        %2992 = vmatprep.subr.bf16.mxu0 0
        %2993 = vmatpush2.bf16.msra.mxu0 0
        %2994 = vmatprep.mubr.bf16.mxu0 0
        %2995 = vmatmul.mubr.bf16.gmra.mxu0 %v2951
        %v2996 = vpop.f32.mrf.mxu0
        %v2997 = vadd.f32 0.0, %v2996
        %v2998 = vpop.f32.mrf.mxu0
        %v2999 = vpop.f32.mrf.mxu0
        %v3000 = vadd.f32 0.0, %v2999
        %v3001 = vpop.f32.mrf.mxu0
        %3002 = vmatprep.mubr.bf16.mxu0 0
        %3003 = vmatmul.mubr.bf16.gmra.mxu0 %v2954
        %v3004 = vpop.f32.mrf.mxu0
        %v3005 = vadd.f32 0.0, %v3004
        %v3006 = vpop.f32.mrf.mxu0
        %v3007 = vpop.f32.mrf.mxu0
        %v3008 = vadd.f32 0.0, %v3007
        %v3009 = vpop.f32.mrf.mxu0
        %3010 = vmatprep.mubr.bf16.mxu0 0
        %3011 = vmatmul.mubr.bf16.gmra.mxu0 %v2957
        %v3012 = vpop.f32.mrf.mxu0
        %v3013 = vadd.f32 0.0, %v3012
        %v3014 = vpop.f32.mrf.mxu0
        %v3015 = vpop.f32.mrf.mxu0
        %v3016 = vadd.f32 0.0, %v3015
        %v3017 = vpop.f32.mrf.mxu0
        %3018 = vmatprep.mubr.bf16.mxu0 0
        %3019 = vmatmul.mubr.bf16.gmra.mxu0 %v2960
        %v3020 = vpop.f32.mrf.mxu0
        %v3021 = vadd.f32 0.0, %v3020
        %v3022 = vpop.f32.mrf.mxu0
        %v3023 = vpop.f32.mrf.mxu0
        %v3024 = vadd.f32 0.0, %v3023
        %v3025 = vpop.f32.mrf.mxu0
        %3026 = vdwg.mxu0
        %v3028 = vsel %vm2110, %v2703, 0
        %v3031 = vsel %vm2110, %v2704, 0
        %v3034 = vsel %vm2110, %v2705, 0
        %v3037 = vsel %vm2110, %v2706, 0
        %3039 = vmatprep.subr.bf16.mxu0 0
        %3040 = vmatpush1.bf16.msra.mxu0 0
        %3041 = vmatprep.subr.bf16.mxu0 0
        %3042 = vmatpush1.bf16.msra.mxu0 0
        %3043 = vmatprep.subr.bf16.mxu0 0
        %3044 = vmatpush1.bf16.msra.mxu0 0
        %3045 = vmatprep.subr.bf16.mxu0 0
        %3046 = vmatpush1.bf16.msra.mxu0 0
        %3047 = vmatprep.subr.bf16.mxu0 0
        %3048 = vmatpush1.bf16.msra.mxu0 %v1260
        %3049 = vmatprep.subr.bf16.mxu0 0
        %3050 = vmatpush1.bf16.msra.mxu0 %v1258
        %3051 = vmatprep.subr.bf16.mxu0 0
        %3052 = vmatpush1.bf16.msra.mxu0 %v1256
        %3053 = vmatprep.subr.bf16.mxu0 0
        %3054 = vmatpush1.bf16.msra.mxu0 %v1254
        %3055 = vmatprep.subr.bf16.mxu0 0
        %3056 = vmatpush2.bf16.msra.mxu0 0
        %3057 = vmatprep.subr.bf16.mxu0 0
        %3058 = vmatpush2.bf16.msra.mxu0 0
        %3059 = vmatprep.subr.bf16.mxu0 0
        %3060 = vmatpush2.bf16.msra.mxu0 0
        %3061 = vmatprep.subr.bf16.mxu0 0
        %3062 = vmatpush2.bf16.msra.mxu0 0
        %3063 = vmatprep.subr.bf16.mxu0 0
        %3064 = vmatpush2.bf16.msra.mxu0 0
        %3065 = vmatprep.subr.bf16.mxu0 0
        %3066 = vmatpush2.bf16.msra.mxu0 0
        %3067 = vmatprep.subr.bf16.mxu0 0
        %3068 = vmatpush2.bf16.msra.mxu0 0
        %3069 = vmatprep.subr.bf16.mxu0 0
        %3070 = vmatpush2.bf16.msra.mxu0 0
        %3071 = vmatprep.mubr.bf16.mxu0 0
        %3072 = vmatmul.mubr.bf16.gmra.mxu0 %v3028
        %v3073 = vpop.f32.mrf.mxu0
        %v3074 = vadd.f32 0.0, %v3073
        %v3075 = vpop.f32.mrf.mxu0
        %v3076 = vpop.f32.mrf.mxu0
        %v3077 = vadd.f32 0.0, %v3076
        %v3078 = vpop.f32.mrf.mxu0
        %3079 = vmatprep.mubr.bf16.mxu0 0
        %3080 = vmatmul.mubr.bf16.gmra.mxu0 %v3031
        %v3081 = vpop.f32.mrf.mxu0
        %v3082 = vadd.f32 0.0, %v3081
        %v3083 = vpop.f32.mrf.mxu0
        %v3084 = vpop.f32.mrf.mxu0
        %v3085 = vadd.f32 0.0, %v3084
        %v3086 = vpop.f32.mrf.mxu0
        %3087 = vmatprep.mubr.bf16.mxu0 0
        %3088 = vmatmul.mubr.bf16.gmra.mxu0 %v3034
        %v3089 = vpop.f32.mrf.mxu0
        %v3090 = vadd.f32 0.0, %v3089
        %v3091 = vpop.f32.mrf.mxu0
        %v3092 = vpop.f32.mrf.mxu0
        %v3093 = vadd.f32 0.0, %v3092
        %v3094 = vpop.f32.mrf.mxu0
        %3095 = vmatprep.mubr.bf16.mxu0 0
        %3096 = vmatmul.mubr.bf16.gmra.mxu0 %v3037
        %v3097 = vpop.f32.mrf.mxu0
        %v3098 = vadd.f32 0.0, %v3097
        %v3099 = vpop.f32.mrf.mxu0
        %v3100 = vpop.f32.mrf.mxu0
        %v3101 = vadd.f32 0.0, %v3100
        %v3102 = vpop.f32.mrf.mxu0
        %3103 = vdwg.mxu0
        %v3105 = vsel %vm2110, %v2707, 0
        %v3108 = vsel %vm2110, %v2708, 0
        %v3111 = vsel %vm2110, %v2709, 0
        %v3114 = vsel %vm2110, %v2710, 0
        %3116 = vmatprep.subr.bf16.mxu0 0
        %3117 = vmatpush1.bf16.msra.mxu0 0
        %3118 = vmatprep.subr.bf16.mxu0 0
        %3119 = vmatpush1.bf16.msra.mxu0 0
        %3120 = vmatprep.subr.bf16.mxu0 0
        %3121 = vmatpush1.bf16.msra.mxu0 0
        %3122 = vmatprep.subr.bf16.mxu0 0
        %3123 = vmatpush1.bf16.msra.mxu0 0
        %3124 = vmatprep.subr.bf16.mxu0 0
        %3125 = vmatpush1.bf16.msra.mxu0 %v1268
        %3126 = vmatprep.subr.bf16.mxu0 0
        %3127 = vmatpush1.bf16.msra.mxu0 %v1266
        %3128 = vmatprep.subr.bf16.mxu0 0
        %3129 = vmatpush1.bf16.msra.mxu0 %v1264
        %3130 = vmatprep.subr.bf16.mxu0 0
        %3131 = vmatpush1.bf16.msra.mxu0 %v1262
        %3132 = vmatprep.subr.bf16.mxu0 0
        %3133 = vmatpush2.bf16.msra.mxu0 0
        %3134 = vmatprep.subr.bf16.mxu0 0
        %3135 = vmatpush2.bf16.msra.mxu0 0
        %3136 = vmatprep.subr.bf16.mxu0 0
        %3137 = vmatpush2.bf16.msra.mxu0 0
        %3138 = vmatprep.subr.bf16.mxu0 0
        %3139 = vmatpush2.bf16.msra.mxu0 0
        %3140 = vmatprep.subr.bf16.mxu0 0
        %3141 = vmatpush2.bf16.msra.mxu0 0
        %3142 = vmatprep.subr.bf16.mxu0 0
        %3143 = vmatpush2.bf16.msra.mxu0 0
        %3144 = vmatprep.subr.bf16.mxu0 0
        %3145 = vmatpush2.bf16.msra.mxu0 0
        %3146 = vmatprep.subr.bf16.mxu0 0
        %3147 = vmatpush2.bf16.msra.mxu0 0
        %3148 = vmatprep.mubr.bf16.mxu0 0
        %3149 = vmatmul.mubr.bf16.gmra.mxu0 %v3105
        %v3150 = vpop.f32.mrf.mxu0
        %v3151 = vadd.f32 0.0, %v3150
        %v3152 = vpop.f32.mrf.mxu0
        %v3153 = vpop.f32.mrf.mxu0
        %v3154 = vadd.f32 0.0, %v3153
        %v3155 = vpop.f32.mrf.mxu0
        %3156 = vmatprep.mubr.bf16.mxu0 0
        %3157 = vmatmul.mubr.bf16.gmra.mxu0 %v3108
        %v3158 = vpop.f32.mrf.mxu0
        %v3159 = vadd.f32 0.0, %v3158
        %v3160 = vpop.f32.mrf.mxu0
        %v3161 = vpop.f32.mrf.mxu0
        %v3162 = vadd.f32 0.0, %v3161
        %v3163 = vpop.f32.mrf.mxu0
        %3164 = vmatprep.mubr.bf16.mxu0 0
        %3165 = vmatmul.mubr.bf16.gmra.mxu0 %v3111
        %v3166 = vpop.f32.mrf.mxu0
        %v3167 = vadd.f32 0.0, %v3166
        %v3168 = vpop.f32.mrf.mxu0
        %v3169 = vpop.f32.mrf.mxu0
        %v3170 = vadd.f32 0.0, %v3169
        %v3171 = vpop.f32.mrf.mxu0
        %3172 = vmatprep.mubr.bf16.mxu0 0
        %3173 = vmatmul.mubr.bf16.gmra.mxu0 %v3114
        %v3174 = vpop.f32.mrf.mxu0
        %v3175 = vadd.f32 0.0, %v3174
        %v3176 = vpop.f32.mrf.mxu0
        %v3177 = vpop.f32.mrf.mxu0
        %v3178 = vadd.f32 0.0, %v3177
        %v3179 = vpop.f32.mrf.mxu0
        %3180 = vdwg.mxu0
        %v3182 = vsel %vm2110, %v2711, 0
        %v3185 = vsel %vm2110, %v2712, 0
        %v3188 = vsel %vm2110, %v2713, 0
        %v3191 = vsel %vm2110, %v2714, 0
        %3193 = vmatprep.subr.bf16.mxu0 0
        %3194 = vmatpush1.bf16.msra.mxu0 0
        %3195 = vmatprep.subr.bf16.mxu0 0
        %3196 = vmatpush1.bf16.msra.mxu0 0
        %3197 = vmatprep.subr.bf16.mxu0 0
        %3198 = vmatpush1.bf16.msra.mxu0 0
        %3199 = vmatprep.subr.bf16.mxu0 0
        %3200 = vmatpush1.bf16.msra.mxu0 0
        %3201 = vmatprep.subr.bf16.mxu0 0
        %3202 = vmatpush1.bf16.msra.mxu0 %v1284
        %3203 = vmatprep.subr.bf16.mxu0 0
        %3204 = vmatpush1.bf16.msra.mxu0 %v1282
        %3205 = vmatprep.subr.bf16.mxu0 0
        %3206 = vmatpush1.bf16.msra.mxu0 %v1280
        %3207 = vmatprep.subr.bf16.mxu0 0
        %3208 = vmatpush1.bf16.msra.mxu0 %v1278
        %3209 = vmatprep.subr.bf16.mxu0 0
        %3210 = vmatpush2.bf16.msra.mxu0 0
        %3211 = vmatprep.subr.bf16.mxu0 0
        %3212 = vmatpush2.bf16.msra.mxu0 0
        %3213 = vmatprep.subr.bf16.mxu0 0
        %3214 = vmatpush2.bf16.msra.mxu0 0
        %3215 = vmatprep.subr.bf16.mxu0 0
        %3216 = vmatpush2.bf16.msra.mxu0 0
        %3217 = vmatprep.subr.bf16.mxu0 0
        %3218 = vmatpush2.bf16.msra.mxu0 0
        %3219 = vmatprep.subr.bf16.mxu0 0
        %3220 = vmatpush2.bf16.msra.mxu0 0
        %3221 = vmatprep.subr.bf16.mxu0 0
        %3222 = vmatpush2.bf16.msra.mxu0 0
        %3223 = vmatprep.subr.bf16.mxu0 0
        %3224 = vmatpush2.bf16.msra.mxu0 0
        %3225 = vmatprep.mubr.bf16.mxu0 0
        %3226 = vmatmul.mubr.bf16.gmra.mxu0 %v3182
        %v3227 = vpop.f32.mrf.mxu0
        %v3228 = vadd.f32 0.0, %v3227
        %v3229 = vpop.f32.mrf.mxu0
        %v3230 = vpop.f32.mrf.mxu0
        %v3231 = vadd.f32 0.0, %v3230
        %v3232 = vpop.f32.mrf.mxu0
        %3233 = vmatprep.mubr.bf16.mxu0 0
        %3234 = vmatmul.mubr.bf16.gmra.mxu0 %v3185
        %v3235 = vpop.f32.mrf.mxu0
        %v3236 = vadd.f32 0.0, %v3235
        %v3237 = vpop.f32.mrf.mxu0
        %v3238 = vpop.f32.mrf.mxu0
        %v3239 = vadd.f32 0.0, %v3238
        %v3240 = vpop.f32.mrf.mxu0
        %3241 = vmatprep.mubr.bf16.mxu0 0
        %3242 = vmatmul.mubr.bf16.gmra.mxu0 %v3188
        %v3243 = vpop.f32.mrf.mxu0
        %v3244 = vadd.f32 0.0, %v3243
        %v3245 = vpop.f32.mrf.mxu0
        %v3246 = vpop.f32.mrf.mxu0
        %v3247 = vadd.f32 0.0, %v3246
        %v3248 = vpop.f32.mrf.mxu0
        %3249 = vmatprep.mubr.bf16.mxu0 0
        %3250 = vmatmul.mubr.bf16.gmra.mxu0 %v3191
        %v3251 = vpop.f32.mrf.mxu0
        %v3252 = vadd.f32 0.0, %v3251
        %v3253 = vpop.f32.mrf.mxu0
        %v3254 = vpop.f32.mrf.mxu0
        %v3255 = vadd.f32 0.0, %v3254
        %v3256 = vpop.f32.mrf.mxu0
        %3257 = vdwg.mxu0
        %v3259 = vsel %vm2110, %v2715, 0
        %v3262 = vsel %vm2110, %v2716, 0
        %v3265 = vsel %vm2110, %v2717, 0
        %v3268 = vsel %vm2110, %v2718, 0
        %3270 = vmatprep.subr.bf16.mxu0 0
        %3271 = vmatpush1.bf16.msra.mxu0 0
        %3272 = vmatprep.subr.bf16.mxu0 0
        %3273 = vmatpush1.bf16.msra.mxu0 0
        %3274 = vmatprep.subr.bf16.mxu0 0
        %3275 = vmatpush1.bf16.msra.mxu0 0
        %3276 = vmatprep.subr.bf16.mxu0 0
        %3277 = vmatpush1.bf16.msra.mxu0 0
        %3278 = vmatprep.subr.bf16.mxu0 0
        %3279 = vmatpush1.bf16.msra.mxu0 %v1292
        %3280 = vmatprep.subr.bf16.mxu0 0
        %3281 = vmatpush1.bf16.msra.mxu0 %v1290
        %3282 = vmatprep.subr.bf16.mxu0 0
        %3283 = vmatpush1.bf16.msra.mxu0 %v1288
        %3284 = vmatprep.subr.bf16.mxu0 0
        %3285 = vmatpush1.bf16.msra.mxu0 %v1286
        %3286 = vmatprep.subr.bf16.mxu0 0
        %3287 = vmatpush2.bf16.msra.mxu0 0
        %3288 = vmatprep.subr.bf16.mxu0 0
        %3289 = vmatpush2.bf16.msra.mxu0 0
        %3290 = vmatprep.subr.bf16.mxu0 0
        %3291 = vmatpush2.bf16.msra.mxu0 0
        %3292 = vmatprep.subr.bf16.mxu0 0
        %3293 = vmatpush2.bf16.msra.mxu0 0
        %3294 = vmatprep.subr.bf16.mxu0 0
        %3295 = vmatpush2.bf16.msra.mxu0 0
        %3296 = vmatprep.subr.bf16.mxu0 0
        %3297 = vmatpush2.bf16.msra.mxu0 0
        %3298 = vmatprep.subr.bf16.mxu0 0
        %3299 = vmatpush2.bf16.msra.mxu0 0
        %3300 = vmatprep.subr.bf16.mxu0 0
        %3301 = vmatpush2.bf16.msra.mxu0 0
        %3302 = vmatprep.mubr.bf16.mxu0 0
        %3303 = vmatmul.mubr.bf16.gmra.mxu0 %v3259
        %v3304 = vpop.f32.mrf.mxu0
        %v3305 = vadd.f32 0.0, %v3304
        %v3306 = vpop.f32.mrf.mxu0
        %v3307 = vpop.f32.mrf.mxu0
        %v3308 = vadd.f32 0.0, %v3307
        %v3309 = vpop.f32.mrf.mxu0
        %3310 = vmatprep.mubr.bf16.mxu0 0
        %3311 = vmatmul.mubr.bf16.gmra.mxu0 %v3262
        %v3312 = vpop.f32.mrf.mxu0
        %v3313 = vadd.f32 0.0, %v3312
        %v3314 = vpop.f32.mrf.mxu0
        %v3315 = vpop.f32.mrf.mxu0
        %v3316 = vadd.f32 0.0, %v3315
        %v3317 = vpop.f32.mrf.mxu0
        %3318 = vmatprep.mubr.bf16.mxu0 0
        %3319 = vmatmul.mubr.bf16.gmra.mxu0 %v3265
        %v3320 = vpop.f32.mrf.mxu0
        %v3321 = vadd.f32 0.0, %v3320
        %v3322 = vpop.f32.mrf.mxu0
        %v3323 = vpop.f32.mrf.mxu0
        %v3324 = vadd.f32 0.0, %v3323
        %v3325 = vpop.f32.mrf.mxu0
        %3326 = vmatprep.mubr.bf16.mxu0 0
        %3327 = vmatmul.mubr.bf16.gmra.mxu0 %v3268
        %v3328 = vpop.f32.mrf.mxu0
        %v3329 = vadd.f32 0.0, %v3328
        %v3330 = vpop.f32.mrf.mxu0
        %v3331 = vpop.f32.mrf.mxu0
        %v3332 = vadd.f32 0.0, %v3331
        %v3333 = vpop.f32.mrf.mxu0
        %3334 = vdwg.mxu0
        %v3335 = vrcp.pop %v2497
        %v3336 = vrcp.pop %v2500
        %v3337 = vrcp.pop %v2503
        %v3338 = vrcp.pop %v2506
        %v3339 = vrcp.pop %v2509
        %v3340 = vrcp.pop %v2512
        %v3341 = vrcp.pop %v2515
        %v3342 = vrcp.pop %v2518
        %v3343 = vrcp.pop %v2521
        %v3344 = vrcp.pop %v2524
        %v3345 = vrcp.pop %v2527
        %v3346 = vrcp.pop %v2530
        %v3347 = vrcp.pop %v2533
        %v3348 = vrcp.pop %v2536
        %v3349 = vrcp.pop %v2539
        %v3350 = vrcp.pop %v2542
        %v3351 = vrcp.pop %v2545
        %v3352 = vrcp.pop %v2548
        %v3353 = vrcp.pop %v2551
        %v3354 = vrcp.pop %v2554
        %v3355 = vrcp.pop %v2557
        %v3356 = vrcp.pop %v2560
        %v3357 = vrcp.pop %v2563
        %v3358 = vrcp.pop %v2566
        %v3359 = vrcp.pop %v2569
        %v3360 = vrcp.pop %v2572
        %v3361 = vrcp.pop %v2575
        %v3362 = vrcp.pop %v2578
        %v3363 = vrcp.pop %v2581
        %v3364 = vrcp.pop %v2584
        %v3365 = vrcp.pop %v2587
        %v3366 = vrcp.pop %v2590
        %v3367 = vrcp.pop %v2593
        %v3368 = vrcp.pop %v2596
        %v3369 = vrcp.pop %v2599
        %v3370 = vrcp.pop %v2602
        %v3371 = vrcp.pop %v2605
        %v3372 = vrcp.pop %v2608
        %v3373 = vrcp.pop %v2611
        %v3374 = vrcp.pop %v2614
        %v3375 = vrcp.pop %v2617
        %v3376 = vrcp.pop %v2620
        %v3377 = vrcp.pop %v2623
        %v3378 = vrcp.pop %v2626
        %v3379 = vrcp.pop %v2629
        %v3380 = vrcp.pop %v2632
        %v3381 = vrcp.pop %v2635
        %v3382 = vrcp.pop %v2638
        %v3383 = vrcp.pop %v2641
        %v3384 = vrcp.pop %v2644
        %v3385 = vrcp.pop %v2647
        %v3386 = vrcp.pop %v2650
        %v3387 = vrcp.pop %v2653
        %v3388 = vrcp.pop %v2656
        %v3389 = vrcp.pop %v2659
        %v3390 = vrcp.pop %v2662
        %v3391 = vrcp.pop %v2665
        %v3392 = vrcp.pop %v2668
        %v3393 = vrcp.pop %v2671
        %v3394 = vrcp.pop %v2674
        %v3395 = vrcp.pop %v2677
        %v3396 = vrcp.pop %v2680
        %v3397 = vrcp.pop %v2683
        %v3398 = vrcp.pop %v2686
        %v3399 = vmul.f32 %v2766, %v3335
        %v3400 = vmul.f32 %v2769, %v3336
        %v3401 = vmul.f32 %v2774, %v3337
        %v3402 = vmul.f32 %v2777, %v3338
        %v3403 = vmul.f32 %v2782, %v3339
        %v3404 = vmul.f32 %v2785, %v3340
        %v3405 = vmul.f32 %v2790, %v3341
        %v3406 = vmul.f32 %v2793, %v3342
        %v3407 = vmul.f32 %v2843, %v3343
        %v3408 = vmul.f32 %v2846, %v3344
        %v3409 = vmul.f32 %v2851, %v3345
        %v3410 = vmul.f32 %v2854, %v3346
        %v3411 = vmul.f32 %v2859, %v3347
        %v3412 = vmul.f32 %v2862, %v3348
        %v3413 = vmul.f32 %v2867, %v3349
        %v3414 = vmul.f32 %v2870, %v3350
        %v3415 = vmul.f32 %v2920, %v3351
        %v3416 = vmul.f32 %v2923, %v3352
        %v3417 = vmul.f32 %v2928, %v3353
        %v3418 = vmul.f32 %v2931, %v3354
        %v3419 = vmul.f32 %v2936, %v3355
        %v3420 = vmul.f32 %v2939, %v3356
        %v3421 = vmul.f32 %v2944, %v3357
        %v3422 = vmul.f32 %v2947, %v3358
        %v3423 = vmul.f32 %v2997, %v3359
        %v3424 = vmul.f32 %v3000, %v3360
        %v3425 = vmul.f32 %v3005, %v3361
        %v3426 = vmul.f32 %v3008, %v3362
        %v3427 = vmul.f32 %v3013, %v3363
        %v3428 = vmul.f32 %v3016, %v3364
        %v3429 = vmul.f32 %v3021, %v3365
        %v3430 = vmul.f32 %v3024, %v3366
        %v3431 = vmul.f32 %v3074, %v3367
        %v3432 = vmul.f32 %v3077, %v3368
        %v3433 = vmul.f32 %v3082, %v3369
        %v3434 = vmul.f32 %v3085, %v3370
        %v3435 = vmul.f32 %v3090, %v3371
        %v3436 = vmul.f32 %v3093, %v3372
        %v3437 = vmul.f32 %v3098, %v3373
        %v3438 = vmul.f32 %v3101, %v3374
        %v3439 = vmul.f32 %v3151, %v3375
        %v3440 = vmul.f32 %v3154, %v3376
        %v3441 = vmul.f32 %v3159, %v3377
        %v3442 = vmul.f32 %v3162, %v3378
        %v3443 = vmul.f32 %v3167, %v3379
        %v3444 = vmul.f32 %v3170, %v3380
        %v3445 = vmul.f32 %v3175, %v3381
        %v3446 = vmul.f32 %v3178, %v3382
        %v3447 = vmul.f32 %v3228, %v3383
        %v3448 = vmul.f32 %v3231, %v3384
        %v3449 = vmul.f32 %v3236, %v3385
        %v3450 = vmul.f32 %v3239, %v3386
        %v3451 = vmul.f32 %v3244, %v3387
        %v3452 = vmul.f32 %v3247, %v3388
        %v3453 = vmul.f32 %v3252, %v3389
        %v3454 = vmul.f32 %v3255, %v3390
        %v3455 = vmul.f32 %v3305, %v3391
        %v3456 = vmul.f32 %v3308, %v3392
        %v3457 = vmul.f32 %v3313, %v3393
        %v3458 = vmul.f32 %v3316, %v3394
        %v3459 = vmul.f32 %v3321, %v3395
        %v3460 = vmul.f32 %v3324, %v3396
        %v3461 = vmul.f32 %v3329, %v3397
        %v3462 = vmul.f32 %v3332, %v3398
        %3479 = vrot.lane.b32.xlu0 %v3415, 32
        %v3480 = vpop.permute.xlu0 %3479
        %3481 = vrot.lane.b32.xlu0 %v3416, 32
        %v3482 = vpop.permute.xlu0 %3481
        %3483 = vrot.lane.b32.xlu0 %v3417, 32
        %v3484 = vpop.permute.xlu0 %3483
        %3485 = vrot.lane.b32.xlu0 %v3418, 32
        %v3486 = vpop.permute.xlu0 %3485
        %3487 = vrot.lane.b32.xlu0 %v3419, 32
        %v3488 = vpop.permute.xlu0 %3487
        %3489 = vrot.lane.b32.xlu0 %v3420, 32
        %v3490 = vpop.permute.xlu0 %3489
        %3491 = vrot.lane.b32.xlu0 %v3421, 32
        %v3492 = vpop.permute.xlu0 %3491
        %3493 = vrot.lane.b32.xlu0 %v3422, 32
        %v3494 = vpop.permute.xlu0 %3493
        %3495 = vrot.lane.b32.xlu0 %v3423, 32
        %v3496 = vpop.permute.xlu0 %3495
        %3497 = vrot.lane.b32.xlu0 %v3424, 32
        %v3498 = vpop.permute.xlu0 %3497
        %3499 = vrot.lane.b32.xlu0 %v3425, 32
        %v3500 = vpop.permute.xlu0 %3499
        %3501 = vrot.lane.b32.xlu0 %v3426, 32
        %v3502 = vpop.permute.xlu0 %3501
        %3503 = vrot.lane.b32.xlu0 %v3427, 32
        %v3504 = vpop.permute.xlu0 %3503
        %3505 = vrot.lane.b32.xlu0 %v3428, 32
        %v3506 = vpop.permute.xlu0 %3505
        %3507 = vrot.lane.b32.xlu0 %v3429, 32
        %v3508 = vpop.permute.xlu0 %3507
        %3509 = vrot.lane.b32.xlu0 %v3430, 32
        %v3510 = vpop.permute.xlu0 %3509
        %3543 = vrot.lane.b32.xlu0 %v3431, 64
        %v3544 = vpop.permute.xlu0 %3543
        %3545 = vrot.lane.b32.xlu0 %v3432, 64
        %v3546 = vpop.permute.xlu0 %3545
        %3547 = vrot.lane.b32.xlu0 %v3433, 64
        %v3548 = vpop.permute.xlu0 %3547
        %3549 = vrot.lane.b32.xlu0 %v3434, 64
        %v3550 = vpop.permute.xlu0 %3549
        %3551 = vrot.lane.b32.xlu0 %v3435, 64
        %v3552 = vpop.permute.xlu0 %3551
        %3553 = vrot.lane.b32.xlu0 %v3436, 64
        %v3554 = vpop.permute.xlu0 %3553
        %3555 = vrot.lane.b32.xlu0 %v3437, 64
        %v3556 = vpop.permute.xlu0 %3555
        %3557 = vrot.lane.b32.xlu0 %v3438, 64
        %v3558 = vpop.permute.xlu0 %3557
        %3559 = vrot.lane.b32.xlu0 %v3439, 64
        %v3560 = vpop.permute.xlu0 %3559
        %3561 = vrot.lane.b32.xlu0 %v3440, 64
        %v3562 = vpop.permute.xlu0 %3561
        %3563 = vrot.lane.b32.xlu0 %v3441, 64
        %v3564 = vpop.permute.xlu0 %3563
        %3565 = vrot.lane.b32.xlu0 %v3442, 64
        %v3566 = vpop.permute.xlu0 %3565
        %3567 = vrot.lane.b32.xlu0 %v3443, 64
        %v3568 = vpop.permute.xlu0 %3567
        %3569 = vrot.lane.b32.xlu0 %v3444, 64
        %v3570 = vpop.permute.xlu0 %3569
        %3571 = vrot.lane.b32.xlu0 %v3445, 64
        %v3572 = vpop.permute.xlu0 %3571
        %3573 = vrot.lane.b32.xlu0 %v3446, 64
        %v3574 = vpop.permute.xlu0 %3573
        %3607 = vrot.lane.b32.xlu0 %v3447, 96
        %v3608 = vpop.permute.xlu0 %3607
        %3609 = vrot.lane.b32.xlu0 %v3448, 96
        %v3610 = vpop.permute.xlu0 %3609
        %3611 = vrot.lane.b32.xlu0 %v3449, 96
        %v3612 = vpop.permute.xlu0 %3611
        %3613 = vrot.lane.b32.xlu0 %v3450, 96
        %v3614 = vpop.permute.xlu0 %3613
        %3615 = vrot.lane.b32.xlu0 %v3451, 96
        %v3616 = vpop.permute.xlu0 %3615
        %3617 = vrot.lane.b32.xlu0 %v3452, 96
        %v3618 = vpop.permute.xlu0 %3617
        %3619 = vrot.lane.b32.xlu0 %v3453, 96
        %v3620 = vpop.permute.xlu0 %3619
        %3621 = vrot.lane.b32.xlu0 %v3454, 96
        %v3622 = vpop.permute.xlu0 %3621
        %3623 = vrot.lane.b32.xlu0 %v3455, 96
        %v3624 = vpop.permute.xlu0 %3623
        %3625 = vrot.lane.b32.xlu0 %v3456, 96
        %v3626 = vpop.permute.xlu0 %3625
        %3627 = vrot.lane.b32.xlu0 %v3457, 96
        %v3628 = vpop.permute.xlu0 %3627
        %3629 = vrot.lane.b32.xlu0 %v3458, 96
        %v3630 = vpop.permute.xlu0 %3629
        %3631 = vrot.lane.b32.xlu0 %v3459, 96
        %v3632 = vpop.permute.xlu0 %3631
        %3633 = vrot.lane.b32.xlu0 %v3460, 96
        %v3634 = vpop.permute.xlu0 %3633
        %3635 = vrot.lane.b32.xlu0 %v3461, 96
        %v3636 = vpop.permute.xlu0 %3635
        %3637 = vrot.lane.b32.xlu0 %v3462, 96
        %v3638 = vpop.permute.xlu0 %3637
        %v3655 = vsel %vm1301, %v3399, %v3480
        %v3656 = vsel %vm1301, %v3400, %v3482
        %v3657 = vsel %vm1301, %v3401, %v3484
        %v3658 = vsel %vm1301, %v3402, %v3486
        %v3659 = vsel %vm1301, %v3403, %v3488
        %v3660 = vsel %vm1301, %v3404, %v3490
        %v3661 = vsel %vm1301, %v3405, %v3492
        %v3662 = vsel %vm1301, %v3406, %v3494
        %v3663 = vsel %vm1301, %v3407, %v3496
        %v3664 = vsel %vm1301, %v3408, %v3498
        %v3665 = vsel %vm1301, %v3409, %v3500
        %v3666 = vsel %vm1301, %v3410, %v3502
        %v3667 = vsel %vm1301, %v3411, %v3504
        %v3668 = vsel %vm1301, %v3412, %v3506
        %v3669 = vsel %vm1301, %v3413, %v3508
        %v3670 = vsel %vm1301, %v3414, %v3510
        %v3671 = vsel %vm2110, %v3655, %v3544
        %v3672 = vsel %vm2110, %v3656, %v3546
        %v3673 = vsel %vm2110, %v3657, %v3548
        %v3674 = vsel %vm2110, %v3658, %v3550
        %v3675 = vsel %vm2110, %v3659, %v3552
        %v3676 = vsel %vm2110, %v3660, %v3554
        %v3677 = vsel %vm2110, %v3661, %v3556
        %v3678 = vsel %vm2110, %v3662, %v3558
        %v3679 = vsel %vm2110, %v3663, %v3560
        %v3680 = vsel %vm2110, %v3664, %v3562
        %v3681 = vsel %vm2110, %v3665, %v3564
        %v3682 = vsel %vm2110, %v3666, %v3566
        %v3683 = vsel %vm2110, %v3667, %v3568
        %v3684 = vsel %vm2110, %v3668, %v3570
        %v3685 = vsel %vm2110, %v3669, %v3572
        %v3686 = vsel %vm2110, %v3670, %v3574
        %vm3687 = vcmask 785408
        %v3688 = vsel %vm3687, %v3671, %v3608
        %v3689 = vsel %vm3687, %v3672, %v3610
        %v3690 = vsel %vm3687, %v3673, %v3612
        %v3691 = vsel %vm3687, %v3674, %v3614
        %v3692 = vsel %vm3687, %v3675, %v3616
        %v3693 = vsel %vm3687, %v3676, %v3618
        %v3694 = vsel %vm3687, %v3677, %v3620
        %v3695 = vsel %vm3687, %v3678, %v3622
        %v3696 = vsel %vm3687, %v3679, %v3624
        %v3697 = vsel %vm3687, %v3680, %v3626
        %v3698 = vsel %vm3687, %v3681, %v3628
        %v3699 = vsel %vm3687, %v3682, %v3630
        %v3700 = vsel %vm3687, %v3683, %v3632
        %v3701 = vsel %vm3687, %v3684, %v3634
        %v3702 = vsel %vm3687, %v3685, %v3636
        %v3703 = vsel %vm3687, %v3686, %v3638
        %v3704 = vpack.c.bf16 %v3689, %v3688
        %v3705 = vpack.c.bf16 %v3691, %v3690
        %v3706 = vpack.c.bf16 %v3693, %v3692
        %v3707 = vpack.c.bf16 %v3695, %v3694
        %v3708 = vpack.c.bf16 %v3697, %v3696
        %v3709 = vpack.c.bf16 %v3699, %v3698
        %v3710 = vpack.c.bf16 %v3701, %v3700
        %v3711 = vpack.c.bf16 %v3703, %v3702
        %v3712 = vld [vmem:[#allocation11] sm:$0xf]
        %v3713 = vld [vmem:[#allocation11 + $0x4] sm:$0xf]
        %v3714 = vld [vmem:[#allocation11 + $0x8] sm:$0xf]
        %v3715 = vld [vmem:[#allocation11 + $0xc] sm:$0xf]
        %v3716 = vld [vmem:[#allocation11 + $0x10] sm:$0xf]
        %v3717 = vld [vmem:[#allocation11 + $0x14] sm:$0xf]
        %v3718 = vld [vmem:[#allocation11 + $0x18] sm:$0xf]
        %v3719 = vld [vmem:[#allocation11 + $0x1c] sm:$0xf]
        %v3720 = vld [vmem:[#allocation11 + $0x20] sm:$0xf]
        %v3721 = vld [vmem:[#allocation11 + $0x24] sm:$0xf]
        %v3722 = vld [vmem:[#allocation11 + $0x28] sm:$0xf]
        %v3723 = vld [vmem:[#allocation11 + $0x2c] sm:$0xf]
        %v3724 = vld [vmem:[#allocation11 + $0x30] sm:$0xf]
        %v3725 = vld [vmem:[#allocation11 + $0x34] sm:$0xf]
        %v3726 = vld [vmem:[#allocation11 + $0x38] sm:$0xf]
        %v3727 = vld [vmem:[#allocation11 + $0x3c] sm:$0xf]
        %v3728 = vld [vmem:[%s9] sm:$0x1]
        %v3729 = vunpack.c.l.bf16 %v3728
        %v3730 = vlaneseq
        %v3731 = vshrl.u32 %v3730, 7
        %v3732 = vsub.s32 0, %v3731
        %v3733 = vrot.slane %v3729, %v3732
        %v3750 = vunpack.c.l.b16 %v3712
        %v3751 = vunpack.c.l.b16 %v3713
        %v3752 = vunpack.c.l.b16 %v3714
        %v3753 = vunpack.c.l.b16 %v3715
        %v3754 = vunpack.c.l.b16 %v3716
        %v3755 = vunpack.c.l.b16 %v3717
        %v3756 = vunpack.c.l.b16 %v3718
        %v3757 = vunpack.c.l.b16 %v3719
        %v3758 = vunpack.c.l.b16 %v3720
        %v3759 = vunpack.c.l.b16 %v3721
        %v3760 = vunpack.c.l.b16 %v3722
        %v3761 = vunpack.c.l.b16 %v3723
        %v3762 = vunpack.c.l.b16 %v3724
        %v3763 = vunpack.c.l.b16 %v3725
        %v3764 = vunpack.c.l.b16 %v3726
        %v3765 = vunpack.c.l.b16 %v3727
        %v3766 = vpack.c.b16 %v3751, %v3750
        %v3767 = vpack.c.b16 %v3753, %v3752
        %v3768 = vpack.c.b16 %v3755, %v3754
        %v3769 = vpack.c.b16 %v3757, %v3756
        %v3770 = vpack.c.b16 %v3759, %v3758
        %v3771 = vpack.c.b16 %v3761, %v3760
        %v3772 = vpack.c.b16 %v3763, %v3762
        %v3773 = vpack.c.b16 %v3765, %v3764
        %3782 = vmatprep.subr.bf16.mxu0 0
        %3783 = vmatpush1.bf16.msra.mxu0 %v3773
        %3784 = vmatprep.subr.bf16.mxu0 0
        %3785 = vmatpush1.bf16.msra.mxu0 %v3772
        %3786 = vmatprep.subr.bf16.mxu0 0
        %3787 = vmatpush1.bf16.msra.mxu0 %v3771
        %3788 = vmatprep.subr.bf16.mxu0 0
        %3789 = vmatpush1.bf16.msra.mxu0 %v3770
        %3790 = vmatprep.subr.bf16.mxu0 0
        %3791 = vmatpush1.bf16.msra.mxu0 %v3769
        %3792 = vmatprep.subr.bf16.mxu0 0
        %3793 = vmatpush1.bf16.msra.mxu0 %v3768
        %3794 = vmatprep.subr.bf16.mxu0 0
        %3795 = vmatpush1.bf16.msra.mxu0 %v3767
        %3796 = vmatprep.subr.bf16.mxu0 0
        %3797 = vmatpush1.bf16.msra.mxu0 %v3766
        %3798 = vmatprep.subr.bf16.mxu0 0
        %3799 = vmatpush2.bf16.msra.mxu0 0
        %3800 = vmatprep.subr.bf16.mxu0 0
        %3801 = vmatpush2.bf16.msra.mxu0 0
        %3802 = vmatprep.subr.bf16.mxu0 0
        %3803 = vmatpush2.bf16.msra.mxu0 0
        %3804 = vmatprep.subr.bf16.mxu0 0
        %3805 = vmatpush2.bf16.msra.mxu0 0
        %3806 = vmatprep.subr.bf16.mxu0 0
        %3807 = vmatpush2.bf16.msra.mxu0 0
        %3808 = vmatprep.subr.bf16.mxu0 0
        %3809 = vmatpush2.bf16.msra.mxu0 0
        %3810 = vmatprep.subr.bf16.mxu0 0
        %3811 = vmatpush2.bf16.msra.mxu0 0
        %3812 = vmatprep.subr.bf16.mxu0 0
        %3813 = vmatpush2.bf16.msra.mxu0 0
        %3814 = vmatprep.mubr.bf16.mxu0 0
        %3815 = vmatmul.mubr.bf16.gmra.mxu0 %v3704
        %v3816 = vpop.f32.mrf.mxu0
        %v3817 = vadd.f32 %v3733, %v3816
        %v3818 = vpop.f32.mrf.mxu0
        %v3819 = vpop.f32.mrf.mxu0
        %v3820 = vadd.f32 %v3733, %v3819
        %v3821 = vpop.f32.mrf.mxu0
        %3822 = vmatprep.mubr.bf16.mxu0 0
        %3823 = vmatmul.mubr.bf16.gmra.mxu0 %v3705
        %v3824 = vpop.f32.mrf.mxu0
        %v3825 = vadd.f32 %v3733, %v3824
        %v3826 = vpop.f32.mrf.mxu0
        %v3827 = vpop.f32.mrf.mxu0
        %v3828 = vadd.f32 %v3733, %v3827
        %v3829 = vpop.f32.mrf.mxu0
        %3830 = vmatprep.mubr.bf16.mxu0 0
        %3831 = vmatmul.mubr.bf16.gmra.mxu0 %v3706
        %v3832 = vpop.f32.mrf.mxu0
        %v3833 = vadd.f32 %v3733, %v3832
        %v3834 = vpop.f32.mrf.mxu0
        %v3835 = vpop.f32.mrf.mxu0
        %v3836 = vadd.f32 %v3733, %v3835
        %v3837 = vpop.f32.mrf.mxu0
        %3838 = vmatprep.mubr.bf16.mxu0 0
        %3839 = vmatmul.mubr.bf16.gmra.mxu0 %v3707
        %v3840 = vpop.f32.mrf.mxu0
        %v3841 = vadd.f32 %v3733, %v3840
        %v3842 = vpop.f32.mrf.mxu0
        %v3843 = vpop.f32.mrf.mxu0
        %v3844 = vadd.f32 %v3733, %v3843
        %v3845 = vpop.f32.mrf.mxu0
        %3846 = vmatprep.mubr.bf16.mxu0 0
        %3847 = vmatmul.mubr.bf16.gmra.mxu0 %v3708
        %v3848 = vpop.f32.mrf.mxu0
        %v3849 = vadd.f32 %v3733, %v3848
        %v3850 = vpop.f32.mrf.mxu0
        %v3851 = vpop.f32.mrf.mxu0
        %v3852 = vadd.f32 %v3733, %v3851
        %v3853 = vpop.f32.mrf.mxu0
        %3854 = vmatprep.mubr.bf16.mxu0 0
        %3855 = vmatmul.mubr.bf16.gmra.mxu0 %v3709
        %v3856 = vpop.f32.mrf.mxu0
        %v3857 = vadd.f32 %v3733, %v3856
        %v3858 = vpop.f32.mrf.mxu0
        %v3859 = vpop.f32.mrf.mxu0
        %v3860 = vadd.f32 %v3733, %v3859
        %v3861 = vpop.f32.mrf.mxu0
        %3862 = vmatprep.mubr.bf16.mxu0 0
        %3863 = vmatmul.mubr.bf16.gmra.mxu0 %v3710
        %v3864 = vpop.f32.mrf.mxu0
        %v3865 = vadd.f32 %v3733, %v3864
        %v3866 = vpop.f32.mrf.mxu0
        %v3867 = vpop.f32.mrf.mxu0
        %v3868 = vadd.f32 %v3733, %v3867
        %v3869 = vpop.f32.mrf.mxu0
        %3870 = vmatprep.mubr.bf16.mxu0 0
        %3871 = vmatmul.mubr.bf16.gmra.mxu0 %v3711
        %v3872 = vpop.f32.mrf.mxu0
        %v3873 = vadd.f32 %v3733, %v3872
        %v3874 = vpop.f32.mrf.mxu0
        %v3875 = vpop.f32.mrf.mxu0
        %v3876 = vadd.f32 %v3733, %v3875
        %v3877 = vpop.f32.mrf.mxu0
        %3878 = vdwg.mxu0
        %3879 = vst [vmem:[%s516] sm:$0xff] %v3817
        %3880 = vst [vmem:[%s516 + $0x8] sm:$0xff] %v3820
        %3881 = vst [vmem:[%s516 + $0x10] sm:$0xff] %v3825
        %3882 = vst [vmem:[%s516 + $0x18] sm:$0xff] %v3828
        %3883 = vst [vmem:[%s516 + $0x20] sm:$0xff] %v3833
        %3884 = vst [vmem:[%s516 + $0x28] sm:$0xff] %v3836
        %3885 = vst [vmem:[%s516 + $0x30] sm:$0xff] %v3841
        %3886 = vst [vmem:[%s516 + $0x38] sm:$0xff] %v3844
        %3887 = vst [vmem:[%s516 + $0x40] sm:$0xff] %v3849
        %3888 = vst [vmem:[%s516 + $0x48] sm:$0xff] %v3852
        %3889 = vst [vmem:[%s516 + $0x50] sm:$0xff] %v3857
        %3890 = vst [vmem:[%s516 + $0x58] sm:$0xff] %v3860
        %3891 = vst [vmem:[%s516 + $0x60] sm:$0xff] %v3865
        %3892 = vst [vmem:[%s516 + $0x68] sm:$0xff] %v3868
        %3893 = vst [vmem:[%s516 + $0x70] sm:$0xff] %v3873
        %3894 = vst [vmem:[%s516 + $0x78] sm:$0xff] %v3876
        %s3895 = sand.u32 %s273, 1
        %s3896 = scalar_lea.sflag [#allocation4], %s3895
        %s3897 = sand.u32 %s273, 1
        %s3898 = smul.addr %s3897, 128
        %s3899 = scalar_lea.vmem [#allocation12], %s3898
        // Predicated region
        $region85: #{tpu_custom_call.1} parent=59 // pred_check
          %p3900 = pneg %p283
        $region86: #{tpu_custom_call.1} parent=59 // pred_check_branch
          %3902 = sbr.rel (%p3900) target = $region88
        $region87: #{tpu_custom_call.1} parent=59 // pred_region
          #allocation16 [shape = 'u32[6]{0}', space=smem, size = 0x18, scoped, tag = 'DMA stride descriptor']
          %s3903 = smul.u32 2, %s34
          %s3905 = ssub.s32 2048, 2048
          %3906 = vsyncadd %s3896, %s3905
          %s3907 = smul.addr %s33, 8
          %s3908 = smul.addr %s3903, 32
          %s3909 = sadd.s32 %s3907, %s3908
          %s3910 = smul.addr %s3909, 128
          %s3911 = scalar_lea.hbm %s10, %s3910
          %s3913 = sshll.u32 1, 14
          %s3914 = sxor.u32 4294967295, %s3913
          %s3917 = sshll.u32 7, 18
          %s3918 = sxor.u32 4294967295, %s3917
          %s3919 = sand.u32 0, %s3918
          %s3921 = sor.u32 %s3919, 0
          %s3922 = sshll.u32 %s3899, 4
          %s3923 = int_to_ptr.vmem [resolvable:$true] %s3922
          %3929 = sst [smem:[#allocation16]] 1024
          %s3930 = scalar_lea.smem [#allocation16], 1
          %3931 = sst [smem:[%s3930]] 4096
          %s3932 = scalar_lea.smem [#allocation16], 2
          %3933 = sst [smem:[%s3932]] 8
          %s3934 = scalar_lea.smem [#allocation16], 3
          %3935 = sst [smem:[%s3934]] 128
          %s3936 = scalar_lea.smem [#allocation16], 4
          %3937 = sst [smem:[%s3936]] 128
          %s3938 = scalar_lea.smem [#allocation16], 5
          %3939 = sst [smem:[%s3938]] 8
          %3941 = dma.general %s3923, 2048, %s3911, %s3896, 131072, [#allocation16], %s3921, 0
        $region88: #{tpu_custom_call.1} parent=59 // pred_fallthru
          _
      $region60: #{tpu_custom_call.1} parent=5 // pred_fallthru
        _
      %p3942 = scmp.le.s32.totalorder 2, %s24
      // Predicated region
      $region89: #{tpu_custom_call.1} parent=5 // pred_check
        %p3943 = pneg %p3942
      $region90: #{tpu_custom_call.1} parent=5 // pred_check_branch
        %3945 = sbr.rel (%p3943) target = $region92
      $region91: #{tpu_custom_call.1} parent=5 // pred_region
        %s3946 = ssub.s32 %s24, 2
        // Predicated region
        $region93: #{tpu_custom_call.1} parent=91 // pred_check
          %p3947 = pneg %p289
        $region94: #{tpu_custom_call.1} parent=91 // pred_check_branch
          %3949 = sbr.rel (%p3947) target = $region96
        $region95: #{tpu_custom_call.1} parent=91 // pred_region
          %s3950 = sand.u32 %s274, 1
          %s3951 = scalar_lea.sflag [#allocation4], %s3950
          %s3952 = sand.u32 %s274, 1
          %s3953 = smul.addr %s3952, 128
          %s3954 = scalar_lea.vmem [#allocation12], %s3953
          %3955 = dma.done %s3951, 2048
        $region96: #{tpu_custom_call.1} parent=91 // pred_fallthru
          _
      $region92: #{tpu_custom_call.1} parent=5 // pred_fallthru
        _
    $region6: #{tpu_custom_call.1} parent=1 // loop_footer
      %s28 = sadd.s32 1, %s24
    $region7: #{tpu_custom_call.1} parent=1 // loop_footer_branch
      %23 = sbr.rel target = $region3
    $region8: #{tpu_custom_call.1} parent=1 // loop_exit
      _
    %3956 = vsyncpa [#allocation3], 1
    %s3957 = scalar_lea.sflag [#allocation3], 1
    %3958 = vsyncpa %s3957, 1
    %3959 = vsyncpa [#allocation6], 1
    %3960 = vsyncpa [#allocation9], 1
    %3961 = vsyncpa [#allocation4], 1
    %s3962 = scalar_lea.sflag [#allocation4], 1
    %3963 = vsyncpa %s3962, 1

</llo_original>
